<compile_context>
chip_gen: v7x
topology: tpu7x:2x2x1
jax: 0.10.0
libtpu: 0.0.40
codegen_flags: <defaults>
</compile_context>

<pallas_src>
import functools

import jax
import jax.numpy as jnp
from jax.experimental import pallas as pl
from jax.experimental.pallas import tpu as pltpu

EPS = 1e-12      # F.normalize default eps
LANE = 128
GW = 128         # per-encoder group width in the fused encoder output (lane aligned)
ENC_W = 64       # encoder hidden width


def _round_up(n, m):
    return ((n + m - 1) // m) * m


def _l2_normalize(v):
    # F.normalize(v, dim=-1): v / max(||v||, eps) == v * rsqrt(max(sum v^2, eps^2))
    ss = jnp.sum(v * v, axis=-1, keepdims=True)
    return v * jax.lax.rsqrt(jnp.maximum(ss, EPS * EPS))


def _critic_up_kernel(h_dim,
                      in_ref, w_enc_ref, b_enc_ref, wa_enc_ref, wa_h_ref,
                      b_add_ref, w_dec_ref, b_dec_ref, out_ref):
    f32 = jnp.float32
    xin = in_ref[...]                                     # (tb, 128) lane-dense

    # Fused block-diagonal encoder: one K=128 / N=640 matmul replaces 5 tiny matmuls.
    enc = jnp.dot(xin, w_enc_ref[...], preferred_element_type=f32) + b_enc_ref[...]

    # Per-encoder L2 norm + tanh on 128-lane aligned groups (padded cols are exact 0,
    # so the norm over 128 lanes equals the norm over the real 64).
    groups = [jnp.tanh(_l2_normalize(enc[:, g * GW:(g + 1) * GW])) for g in range(5)]
    enc_t = jnp.concatenate(groups, axis=-1)              # (tb, 640), vreg-aligned concat

    # h passes through untouched (bit-exact slice of the fused input), then tanh.
    th = jnp.tanh(xin[:, :h_dim])

    # add_h_encoder: exact split of tanh(cat([xn, mn, un, u0n, rn, h])) @ W_add.
    pre = (jnp.dot(enc_t, wa_enc_ref[...], preferred_element_type=f32)
           + jnp.dot(th, wa_h_ref[...], preferred_element_type=f32)
           + b_add_ref[...])
    combined = jnp.tanh(pre)                              # (tb, 128); cols 64:128 are 0

    # Fused decoders: one K=128 / N=256 matmul = [msg_decoder | h_decoder] (zero padded).
    dec = jnp.dot(combined, w_dec_ref[...], preferred_element_type=f32) + b_dec_ref[...]
    msg = _l2_normalize(dec[:, :LANE])                    # padded msg cols are 0 -> exact
    hid = jnp.tanh(dec[:, LANE:])
    out_ref[...] = jnp.concatenate([msg, hid], axis=-1)   # one lane-dense (tb, 256) store


def init_params(key, state_dim, action_dim, action_dim_0, reward_dim_0,
                msg_dim, h_dim, max_children):
    """Deterministic synthetic parameters. Weights stored (in, out)."""
    dims = {
        "obs_encoder": (state_dim, ENC_W),
        "act_encoder": (action_dim, ENC_W),
        "act_0_encoder": (action_dim_0, ENC_W),
        "rew_encoder": (reward_dim_0, ENC_W),
        "msg_encoder": (msg_dim * max_children, ENC_W),
        "add_h_encoder": (ENC_W * 5 + h_dim, ENC_W),
        "msg_decoder": (ENC_W, msg_dim),
        "h_decoder": (ENC_W, h_dim),
    }
    params = {}
    keys = jax.random.split(key, 2 * len(dims))
    for i, (name, (din, dout)) in enumerate(dims.items()):
        params[name + "_w"] = 0.1 * jax.random.normal(keys[2 * i], (din, dout), jnp.float32)
        params[name + "_b"] = 0.1 * jax.random.normal(keys[2 * i + 1], (dout,), jnp.float32)
    return params


def prep_params(params):
    """One-time parameter packing: block-diagonal fused encoder, 128-row-aligned add_h
    split, fused (padded) decoders.  Hoisted out of the forward call."""
    f32 = jnp.float32
    e = ENC_W
    state_dim = params["obs_encoder_w"].shape[0]
    msg_in = params["msg_encoder_w"].shape[0]
    act_dim = params["act_encoder_w"].shape[0]
    act0_dim = params["act_0_encoder_w"].shape[0]
    rew_dim = params["rew_encoder_w"].shape[0]
    h_dim = params["h_decoder_w"].shape[1]
    msg_dim = params["msg_decoder_w"].shape[1]

    # Fused input column layout: [h | x | m | u | u0 | r | zero-pad to multiple of 128].
    seg_dims = [h_dim, state_dim, msg_in, act_dim, act0_dim, rew_dim]
    offs, o = [], 0
    for d in seg_dims:
        offs.append(o)
        o += d
    d_all = o
    k_in = _round_up(d_all, LANE)
    _, off_x, off_m, off_u, off_u0, off_r = offs

    # Encoder group order matches the reference combined vector [xn, mn, un, u0n, rn].
    enc_order = [
        (off_x, params["obs_encoder_w"], params["obs_encoder_b"]),
        (off_m, params["msg_encoder_w"], params["msg_encoder_b"]),
        (off_u, params["act_encoder_w"], params["act_encoder_b"]),
        (off_u0, params["act_0_encoder_w"], params["act_0_encoder_b"]),
        (off_r, params["rew_encoder_w"], params["rew_encoder_b"]),
    ]

    w_enc = jnp.zeros((k_in, 5 * GW), f32)                # block-diagonal fused encoder
    b_enc = jnp.zeros((1, 5 * GW), f32)
    wa = params["add_h_encoder_w"].astype(f32)            # rows: [x, m, u, u0, r, h]
    wa_enc = jnp.zeros((5 * GW, LANE), f32)               # 128-row-aligned add_h split
    for g, (off, w, b) in enumerate(enc_order):
        w_enc = w_enc.at[off:off + w.shape[0], g * GW:g * GW + e].set(w.astype(f32))
        b_enc = b_enc.at[:, g * GW:g * GW + e].set(b.astype(f32).reshape(1, -1))
        wa_enc = wa_enc.at[g * GW:g * GW + e, :e].set(wa[g * e:(g + 1) * e])
    wa_h = jnp.zeros((h_dim, LANE), f32).at[:, :e].set(wa[5 * e:5 * e + h_dim])
    b_add = jnp.zeros((1, LANE), f32).at[:, :e].set(
        params["add_h_encoder_b"].astype(f32).reshape(1, -1))

    # Fused decoder: [msg_decoder (pad to 128) | h_decoder (pad to 128)].
    w_dec = jnp.zeros((LANE, 2 * LANE), f32)
    w_dec = w_dec.at[:e, :msg_dim].set(params["msg_decoder_w"].astype(f32))
    w_dec = w_dec.at[:e, LANE:LANE + h_dim].set(params["h_decoder_w"].astype(f32))
    b_dec = jnp.zeros((1, 2 * LANE), f32)
    b_dec = b_dec.at[:, :msg_dim].set(params["msg_decoder_b"].astype(f32).reshape(1, -1))
    b_dec = b_dec.at[:, LANE:LANE + h_dim].set(
        params["h_decoder_b"].astype(f32).reshape(1, -1))

    weights = (w_enc, b_enc, wa_enc, wa_h, b_add, w_dec, b_dec)
    return {"weights": weights, "k_in": k_in, "d_all": d_all,
            "msg_dim": msg_dim, "h_dim": h_dim}


def critic_up_mem_aug_forward(prepped, x, u_0, u, r, h, *m, block_b=1024):
    """Pallas-backed CriticUp_MemAug.forward(x, u_0, u, r, h, *m) -> (msg_up, new_hidden).

    On v7x, pass block_b ~= round_up(ceil(B/2), 8) so the batch splits into 2 parallel
    grid steps and uses both TensorCores; on v5e/v6e the default keeps grid=(1,) for
    small batches and tb<=1024 tiles for large ones.
    """
    m_cat = jnp.concatenate(m, axis=-1)
    B = x.shape[0]
    k_in = prepped["k_in"]
    d_all = prepped["d_all"]
    h_dim = prepped["h_dim"]
    msg_dim = prepped["msg_dim"]
    weights = prepped["weights"]

    # One lane-dense fused activation: [h | x | m | u | u0 | r | 0-pad to k_in].
    fused = jnp.concatenate(
        [a.astype(jnp.float32) for a in (h, x, m_cat, u, u_0, r)], axis=-1)

    tb = min(_round_up(block_b, 8), _round_up(B, 8))
    Bp = _round_up(B, tb)
    fused = jnp.pad(fused, ((0, Bp - B), (0, k_in - d_all)))

    grid = (Bp // tb,)
    in_specs = ([pl.BlockSpec((tb, k_in), lambda i: (i, 0))]
                + [pl.BlockSpec(w.shape, lambda i: (0, 0)) for w in weights])
    out_spec = pl.BlockSpec((tb, 2 * LANE), lambda i: (i, 0))

    flops = int(2 * Bp * (k_in * 5 * GW + 5 * GW * LANE + h_dim * LANE
                          + LANE * 2 * LANE))
    transcendentals = int(Bp * (5 * GW + h_dim + LANE + LANE + 7))
    bytes_accessed = int(4 * (Bp * (k_in + 2 * LANE)
                              + (Bp // tb) * sum(int(w.size) for w in weights)))

    out = pl.pallas_call(
        functools.partial(_critic_up_kernel, h_dim),
        grid=grid,
        in_specs=in_specs,
        out_specs=out_spec,
        out_shape=jax.ShapeDtypeStruct((Bp, 2 * LANE), jnp.float32),
        compiler_params=pltpu.CompilerParams(dimension_semantics=("parallel",)),
        cost_estimate=pl.CostEstimate(flops=flops,
                                      transcendentals=transcendentals,
                                      bytes_accessed=bytes_accessed),
    )(fused, *weights)

    return out[:B, :msg_dim], out[:B, LANE:LANE + h_dim]


def critic_up_mem_aug_ref(params, x, u_0, u, r, h, *m):
    """Pure-JAX reference matching the PyTorch forward literally."""
    def normalize(v):
        n = jnp.sqrt(jnp.sum(v * v, axis=-1, keepdims=True))
        return v / jnp.maximum(n, EPS)

    m_cat = jnp.concatenate(m, axis=-1)
    xn = normalize(x @ params["obs_encoder_w"] + params["obs_encoder_b"])
    u0n = normalize(u_0 @ params["act_0_encoder_w"] + params["act_0_encoder_b"])
    un = normalize(u @ params["act_encoder_w"] + params["act_encoder_b"])
    rn = normalize(r @ params["rew_encoder_w"] + params["rew_encoder_b"])
    mn = normalize(m_cat @ params["msg_encoder_w"] + params["msg_encoder_b"])
    combined = jnp.concatenate([xn, mn, un, u0n, rn, h], axis=-1)
    combined = jnp.tanh(jnp.tanh(combined) @ params["add_h_encoder_w"]
                        + params["add_h_encoder_b"])
    msg_up = normalize(combined @ params["msg_decoder_w"] + params["msg_decoder_b"])
    new_hidden = jnp.tanh(combined @ params["h_decoder_w"] + params["h_decoder_b"])
    return msg_up, new_hidden


if __name__ == "__main__":
    state_dim, action_dim, action_dim_0 = 12, 4, 6
    reward_dim_0, msg_dim, h_dim, max_children = 2, 8, 32, 2
    batch = 200   # all tree nodes/limbs stacked on the batch axis; NOT a multiple of 8

    key = jax.random.PRNGKey(0)
    kp, kx, ku0, ku, kr, kh, km1, km2 = jax.random.split(key, 8)
    params = init_params(kp, state_dim, action_dim, action_dim_0,
                         reward_dim_0, msg_dim, h_dim, max_children)
    prepped = prep_params(params)   # one-time weight packing / padding

    x = jax.random.normal(kx, (batch, state_dim), jnp.float32)
    u_0 = jax.random.normal(ku0, (batch, action_dim_0), jnp.float32)
    u = jax.random.normal(ku, (batch, action_dim), jnp.float32)
    r = jax.random.normal(kr, (batch, reward_dim_0), jnp.float32)
    h = jax.random.normal(kh, (batch, h_dim), jnp.float32)
    m1 = jax.random.normal(km1, (batch, msg_dim), jnp.float32)
    m2 = jax.random.normal(km2, (batch, msg_dim), jnp.float32)

    msg_up, new_hidden = critic_up_mem_aug_forward(prepped, x, u_0, u, r, h, m1, m2)
    msg_up, new_hidden = jax.block_until_ready((msg_up, new_hidden))

    ref_msg, ref_h = critic_up_mem_aug_ref(params, x, u_0, u, r, h, m1, m2)
    assert msg_up.shape == (batch, msg_dim)
    assert new_hidden.shape == (batch, h_dim)
    assert jnp.allclose(msg_up, ref_msg, atol=1e-5, rtol=1e-5), "msg_up mismatch vs reference"
    assert jnp.allclose(new_hidden, ref_h, atol=1e-5, rtol=1e-5), "new_hidden mismatch vs reference"

    print("KERNEL_OK")
</pallas_src>

<mosaic_0001>
module attributes {stable_mosaic.version = 11 : i64} {
  func.func @_critic_up_kernel(%arg0: i32, %arg1: memref<200x128xf32, #tpu.memory_space<vmem>>, %arg2: memref<128x640xf32, #tpu.memory_space<vmem>>, %arg3: memref<1x640xf32, #tpu.memory_space<vmem>>, %arg4: memref<640x128xf32, #tpu.memory_space<vmem>>, %arg5: memref<32x128xf32, #tpu.memory_space<vmem>>, %arg6: memref<1x128xf32, #tpu.memory_space<vmem>>, %arg7: memref<128x256xf32, #tpu.memory_space<vmem>>, %arg8: memref<1x256xf32, #tpu.memory_space<vmem>>, %arg9: memref<200x256xf32, #tpu.memory_space<vmem>>) attributes {dimension_semantics = [#tpu.dimension_semantics<parallel>], iteration_bounds = array<i64: 1>, scalar_prefetch = 0 : i64, scratch_operands = 0 : i64, tpu.core_type = #tpu.core_type<tc>, window_params = [{transform_indices = @transform_0, window_bounds = array<i64: 200, 128>}, {pipeline_mode = #tpu.pipeline_mode<synchronous>, transform_indices = @transform_1, window_bounds = array<i64: 128, 640>}, {pipeline_mode = #tpu.pipeline_mode<synchronous>, transform_indices = @transform_2, window_bounds = array<i64: 1, 640>}, {pipeline_mode = #tpu.pipeline_mode<synchronous>, transform_indices = @transform_3, window_bounds = array<i64: 640, 128>}, {pipeline_mode = #tpu.pipeline_mode<synchronous>, transform_indices = @transform_4, window_bounds = array<i64: 32, 128>}, {pipeline_mode = #tpu.pipeline_mode<synchronous>, transform_indices = @transform_5, window_bounds = array<i64: 1, 128>}, {pipeline_mode = #tpu.pipeline_mode<synchronous>, transform_indices = @transform_6, window_bounds = array<i64: 128, 256>}, {pipeline_mode = #tpu.pipeline_mode<synchronous>, transform_indices = @transform_7, window_bounds = array<i64: 1, 256>}, {transform_indices = @transform_8, window_bounds = array<i64: 200, 256>}]} {
    %c0 = arith.constant 0 : index
    %c0_0 = arith.constant 0 : index
    %0 = vector.load %arg1[%c0, %c0_0] : memref<200x128xf32, #tpu.memory_space<vmem>>, vector<200x128xf32>
    %c0_1 = arith.constant 0 : index
    %c0_2 = arith.constant 0 : index
    %1 = vector.load %arg2[%c0_1, %c0_2] : memref<128x640xf32, #tpu.memory_space<vmem>>, vector<128x640xf32>
    %cst = arith.constant dense<0.000000e+00> : vector<200x640xf32>
    %2 = tpu.matmul %0, %1, %cst {dimension_numbers = #tpu.dot_dimension_numbers<[1], [0], [0], [1], [0, 0, 1, 1], [], []>} : vector<200x128xf32>, vector<128x640xf32>, vector<200x640xf32> -> vector<200x640xf32>
    %c0_3 = arith.constant 0 : index
    %c0_4 = arith.constant 0 : index
    %3 = vector.load %arg3[%c0_3, %c0_4] : memref<1x640xf32, #tpu.memory_space<vmem>>, vector<1x640xf32>
    %4 = vector.broadcast %3 : vector<1x640xf32> to vector<200x640xf32>
    %5 = arith.addf %2, %4 : vector<200x640xf32>
    %6 = vector.extract_strided_slice %5 {offsets = [0, 0], sizes = [200, 128], strides = [1, 1]} : vector<200x640xf32> to vector<200x128xf32>
    %7 = arith.mulf %6, %6 : vector<200x128xf32>
    %cst_5 = arith.constant dense<0.000000e+00> : vector<200xf32>
    %8 = vector.multi_reduction <add>, %7, %cst_5 [1] : vector<200x128xf32> to vector<200xf32>
    %9 = vector.shape_cast %8 : vector<200xf32> to vector<200x1xf32>
    %cst_6 = arith.constant 1.000000e-24 : f32
    %10 = vector.broadcast %cst_6 : f32 to vector<200x1xf32>
    %11 = arith.maximumf %9, %10 : vector<200x1xf32>
    %12 = math.rsqrt %11 : vector<200x1xf32>
    %13 = vector.broadcast %12 : vector<200x1xf32> to vector<200x128xf32>
    %14 = arith.mulf %6, %13 : vector<200x128xf32>
    %15 = math.tanh %14 : vector<200x128xf32>
    %16 = vector.extract_strided_slice %5 {offsets = [0, 128], sizes = [200, 128], strides = [1, 1]} : vector<200x640xf32> to vector<200x128xf32>
    %17 = arith.mulf %16, %16 : vector<200x128xf32>
    %cst_7 = arith.constant dense<0.000000e+00> : vector<200xf32>
    %18 = vector.multi_reduction <add>, %17, %cst_7 [1] : vector<200x128xf32> to vector<200xf32>
    %19 = vector.shape_cast %18 : vector<200xf32> to vector<200x1xf32>
    %cst_8 = arith.constant 1.000000e-24 : f32
    %20 = vector.broadcast %cst_8 : f32 to vector<200x1xf32>
    %21 = arith.maximumf %19, %20 : vector<200x1xf32>
    %22 = math.rsqrt %21 : vector<200x1xf32>
    %23 = vector.broadcast %22 : vector<200x1xf32> to vector<200x128xf32>
    %24 = arith.mulf %16, %23 : vector<200x128xf32>
    %25 = math.tanh %24 : vector<200x128xf32>
    %26 = vector.extract_strided_slice %5 {offsets = [0, 256], sizes = [200, 128], strides = [1, 1]} : vector<200x640xf32> to vector<200x128xf32>
    %27 = arith.mulf %26, %26 : vector<200x128xf32>
    %cst_9 = arith.constant dense<0.000000e+00> : vector<200xf32>
    %28 = vector.multi_reduction <add>, %27, %cst_9 [1] : vector<200x128xf32> to vector<200xf32>
    %29 = vector.shape_cast %28 : vector<200xf32> to vector<200x1xf32>
    %cst_10 = arith.constant 1.000000e-24 : f32
    %30 = vector.broadcast %cst_10 : f32 to vector<200x1xf32>
    %31 = arith.maximumf %29, %30 : vector<200x1xf32>
    %32 = math.rsqrt %31 : vector<200x1xf32>
    %33 = vector.broadcast %32 : vector<200x1xf32> to vector<200x128xf32>
    %34 = arith.mulf %26, %33 : vector<200x128xf32>
    %35 = math.tanh %34 : vector<200x128xf32>
    %36 = vector.extract_strided_slice %5 {offsets = [0, 384], sizes = [200, 128], strides = [1, 1]} : vector<200x640xf32> to vector<200x128xf32>
    %37 = arith.mulf %36, %36 : vector<200x128xf32>
    %cst_11 = arith.constant dense<0.000000e+00> : vector<200xf32>
    %38 = vector.multi_reduction <add>, %37, %cst_11 [1] : vector<200x128xf32> to vector<200xf32>
    %39 = vector.shape_cast %38 : vector<200xf32> to vector<200x1xf32>
    %cst_12 = arith.constant 1.000000e-24 : f32
    %40 = vector.broadcast %cst_12 : f32 to vector<200x1xf32>
    %41 = arith.maximumf %39, %40 : vector<200x1xf32>
    %42 = math.rsqrt %41 : vector<200x1xf32>
    %43 = vector.broadcast %42 : vector<200x1xf32> to vector<200x128xf32>
    %44 = arith.mulf %36, %43 : vector<200x128xf32>
    %45 = math.tanh %44 : vector<200x128xf32>
    %46 = vector.extract_strided_slice %5 {offsets = [0, 512], sizes = [200, 128], strides = [1, 1]} : vector<200x640xf32> to vector<200x128xf32>
    %47 = arith.mulf %46, %46 : vector<200x128xf32>
    %cst_13 = arith.constant dense<0.000000e+00> : vector<200xf32>
    %48 = vector.multi_reduction <add>, %47, %cst_13 [1] : vector<200x128xf32> to vector<200xf32>
    %49 = vector.shape_cast %48 : vector<200xf32> to vector<200x1xf32>
    %cst_14 = arith.constant 1.000000e-24 : f32
    %50 = vector.broadcast %cst_14 : f32 to vector<200x1xf32>
    %51 = arith.maximumf %49, %50 : vector<200x1xf32>
    %52 = math.rsqrt %51 : vector<200x1xf32>
    %53 = vector.broadcast %52 : vector<200x1xf32> to vector<200x128xf32>
    %54 = arith.mulf %46, %53 : vector<200x128xf32>
    %55 = math.tanh %54 : vector<200x128xf32>
    %56 = tpu.concatenate %15, %25, %35, %45, %55 in 1 : vector<200x128xf32>, vector<200x128xf32>, vector<200x128xf32>, vector<200x128xf32>, vector<200x128xf32> -> vector<200x640xf32>
    %57 = vector.extract_strided_slice %0 {offsets = [0, 0], sizes = [200, 32], strides = [1, 1]} : vector<200x128xf32> to vector<200x32xf32>
    %58 = math.tanh %57 : vector<200x32xf32>
    %c0_15 = arith.constant 0 : index
    %c0_16 = arith.constant 0 : index
    %59 = vector.load %arg4[%c0_15, %c0_16] : memref<640x128xf32, #tpu.memory_space<vmem>>, vector<640x128xf32>
    %cst_17 = arith.constant dense<0.000000e+00> : vector<200x128xf32>
    %60 = tpu.matmul %56, %59, %cst_17 {dimension_numbers = #tpu.dot_dimension_numbers<[1], [0], [0], [1], [0, 0, 1, 1], [], []>} : vector<200x640xf32>, vector<640x128xf32>, vector<200x128xf32> -> vector<200x128xf32>
    %c0_18 = arith.constant 0 : index
    %c0_19 = arith.constant 0 : index
    %61 = vector.load %arg5[%c0_18, %c0_19] : memref<32x128xf32, #tpu.memory_space<vmem>>, vector<32x128xf32>
    %cst_20 = arith.constant dense<0.000000e+00> : vector<200x128xf32>
    %62 = tpu.matmul %58, %61, %cst_20 {dimension_numbers = #tpu.dot_dimension_numbers<[1], [0], [0], [1], [0, 0, 1, 1], [], []>} : vector<200x32xf32>, vector<32x128xf32>, vector<200x128xf32> -> vector<200x128xf32>
    %63 = arith.addf %60, %62 : vector<200x128xf32>
    %c0_21 = arith.constant 0 : index
    %c0_22 = arith.constant 0 : index
    %64 = vector.load %arg6[%c0_21, %c0_22] : memref<1x128xf32, #tpu.memory_space<vmem>>, vector<1x128xf32>
    %65 = vector.broadcast %64 : vector<1x128xf32> to vector<200x128xf32>
    %66 = arith.addf %63, %65 : vector<200x128xf32>
    %67 = math.tanh %66 : vector<200x128xf32>
    %c0_23 = arith.constant 0 : index
    %c0_24 = arith.constant 0 : index
    %68 = vector.load %arg7[%c0_23, %c0_24] : memref<128x256xf32, #tpu.memory_space<vmem>>, vector<128x256xf32>
    %cst_25 = arith.constant dense<0.000000e+00> : vector<200x256xf32>
    %69 = tpu.matmul %67, %68, %cst_25 {dimension_numbers = #tpu.dot_dimension_numbers<[1], [0], [0], [1], [0, 0, 1, 1], [], []>} : vector<200x128xf32>, vector<128x256xf32>, vector<200x256xf32> -> vector<200x256xf32>
    %c0_26 = arith.constant 0 : index
    %c0_27 = arith.constant 0 : index
    %70 = vector.load %arg8[%c0_26, %c0_27] : memref<1x256xf32, #tpu.memory_space<vmem>>, vector<1x256xf32>
    %71 = vector.broadcast %70 : vector<1x256xf32> to vector<200x256xf32>
    %72 = arith.addf %69, %71 : vector<200x256xf32>
    %73 = vector.extract_strided_slice %72 {offsets = [0, 0], sizes = [200, 128], strides = [1, 1]} : vector<200x256xf32> to vector<200x128xf32>
    %74 = arith.mulf %73, %73 : vector<200x128xf32>
    %cst_28 = arith.constant dense<0.000000e+00> : vector<200xf32>
    %75 = vector.multi_reduction <add>, %74, %cst_28 [1] : vector<200x128xf32> to vector<200xf32>
    %76 = vector.shape_cast %75 : vector<200xf32> to vector<200x1xf32>
    %cst_29 = arith.constant 1.000000e-24 : f32
    %77 = vector.broadcast %cst_29 : f32 to vector<200x1xf32>
    %78 = arith.maximumf %76, %77 : vector<200x1xf32>
    %79 = math.rsqrt %78 : vector<200x1xf32>
    %80 = vector.broadcast %79 : vector<200x1xf32> to vector<200x128xf32>
    %81 = arith.mulf %73, %80 : vector<200x128xf32>
    %82 = vector.extract_strided_slice %72 {offsets = [0, 128], sizes = [200, 128], strides = [1, 1]} : vector<200x256xf32> to vector<200x128xf32>
    %83 = math.tanh %82 : vector<200x128xf32>
    %84 = tpu.concatenate %81, %83 in 1 : vector<200x128xf32>, vector<200x128xf32> -> vector<200x256xf32>
    %c0_30 = arith.constant 0 : index
    %c0_31 = arith.constant 0 : index
    %85 = vector.load %arg9[%c0_30, %c0_31] : memref<200x256xf32, #tpu.memory_space<vmem>>, vector<200x256xf32>
    tpu.vector_store %arg9[%c0_30, %c0_31], %84 {strides = array<i32>} : memref<200x256xf32, #tpu.memory_space<vmem>>, vector<200x256xf32>,
    return
  }
  func.func @transform_0(%arg0: i32) -> (i32, i32) {
    %c0_i32 = arith.constant 0 : i32
    %c0_i32_0 = arith.constant 0 : i32
    return %arg0, %c0_i32 : i32, i32
  }
  func.func @transform_1(%arg0: i32) -> (i32, i32) {
    %c0_i32 = arith.constant 0 : i32
    %c0_i32_0 = arith.constant 0 : i32
    %c0_i32_1 = arith.constant 0 : i32
    return %c0_i32, %c0_i32_0 : i32, i32
  }
  func.func @transform_2(%arg0: i32) -> (i32, i32) {
    %c0_i32 = arith.constant 0 : i32
    %c0_i32_0 = arith.constant 0 : i32
    %c0_i32_1 = arith.constant 0 : i32
    return %c0_i32, %c0_i32_0 : i32, i32
  }
  func.func @transform_3(%arg0: i32) -> (i32, i32) {
    %c0_i32 = arith.constant 0 : i32
    %c0_i32_0 = arith.constant 0 : i32
    %c0_i32_1 = arith.constant 0 : i32
    return %c0_i32, %c0_i32_0 : i32, i32
  }
  func.func @transform_4(%arg0: i32) -> (i32, i32) {
    %c0_i32 = arith.constant 0 : i32
    %c0_i32_0 = arith.constant 0 : i32
    %c0_i32_1 = arith.constant 0 : i32
    return %c0_i32, %c0_i32_0 : i32, i32
  }
  func.func @transform_5(%arg0: i32) -> (i32, i32) {
    %c0_i32 = arith.constant 0 : i32
    %c0_i32_0 = arith.constant 0 : i32
    %c0_i32_1 = arith.constant 0 : i32
    return %c0_i32, %c0_i32_0 : i32, i32
  }
  func.func @transform_6(%arg0: i32) -> (i32, i32) {
    %c0_i32 = arith.constant 0 : i32
    %c0_i32_0 = arith.constant 0 : i32
    %c0_i32_1 = arith.constant 0 : i32
    return %c0_i32, %c0_i32_0 : i32, i32
  }
  func.func @transform_7(%arg0: i32) -> (i32, i32) {
    %c0_i32 = arith.constant 0 : i32
    %c0_i32_0 = arith.constant 0 : i32
    %c0_i32_1 = arith.constant 0 : i32
    return %c0_i32, %c0_i32_0 : i32, i32
  }
  func.func @transform_8(%arg0: i32) -> (i32, i32) {
    %c0_i32 = arith.constant 0 : i32
    %c0_i32_0 = arith.constant 0 : i32
    return %arg0, %c0_i32 : i32, i32
  }
}

</mosaic_0001>

<llo_original>
// kernel: tpu_custom_call.1
$region0: #{tpu_custom_call.1}
  #allocation0 [shape = 'u32[]', space=smem, size = 0x4, offset = 0x4, fixed_abs, tag = 'smem constant byte address 0x4 - core index']
  #allocation1 [shape = 'u32[144,128]{1,0:T(1,128)}', space=vmem, size = 0x12000, scoped, tag = 'internal scratch']
  %s0 = inlined_call_operand.hbm [shape: f32[200,128], index: 0, kind: input, shape index: {}]
  %s1 = inlined_call_operand.hbm [shape: f32[128,640], index: 1, kind: input, shape index: {}]
  %s2 = inlined_call_operand.vmem [shape: f32[1,640], index: 2, kind: input, shape index: {}]
  %s3 = inlined_call_operand.hbm [shape: f32[640,128], index: 3, kind: input, shape index: {}]
  %s4 = inlined_call_operand.hbm [shape: f32[32,128], index: 4, kind: input, shape index: {}]
  %s5 = inlined_call_operand.vmem [shape: f32[1,128], index: 5, kind: input, shape index: {}]
  %s6 = inlined_call_operand.hbm [shape: f32[128,256], index: 6, kind: input, shape index: {}]
  %s7 = inlined_call_operand.vmem [shape: f32[1,256], index: 7, kind: input, shape index: {}]
  %s8 = inlined_call_operand.hbm [shape: f32[200,256], index: 8, kind: output, shape index: {}]
  %s9 = sld [smem:[#allocation0]]
  $region62: #{tpu_custom_call.1} parent=0
    _
  %s11 = ssub.s32 1, %s9
  %s12 = scalar_select 0, %s11, %s9
  $region1: #{tpu_custom_call.1} parent=0
    #allocation2 [shape = 'u8[102400]{0}', space=vmem, size = 0x19000, scoped, tag = 'input window, operand 0, single buffered']
    #allocation3 [shape = 's32[1]{0}', space=sflag, size = 0x4, scoped, tag = 'scoped memory for tpu_custom_call.1']
    #allocation4 [shape = 's32[1]{0}', space=sflag, size = 0x4, scoped, tag = 'scoped memory for tpu_custom_call.1']
    #allocation5 [shape = 'u8[327680]{0}', space=vmem, size = 0x50000, scoped, tag = 'input window, operand 1, single buffered']
    #allocation6 [shape = 's32[1]{0}', space=sflag, size = 0x4, scoped, tag = 'scoped memory for tpu_custom_call.1']
    #allocation7 [shape = 'u8[327680]{0}', space=vmem, size = 0x50000, scoped, tag = 'input window, operand 3, single buffered']
    #allocation8 [shape = 'u8[16384]{0}', space=vmem, size = 0x4000, scoped, tag = 'input window, operand 4, single buffered']
    #allocation9 [shape = 's32[1]{0}', space=sflag, size = 0x4, scoped, tag = 'scoped memory for tpu_custom_call.1']
    #allocation10 [shape = 'u8[131072]{0}', space=vmem, size = 0x20000, scoped, tag = 'input window, operand 6, single buffered']
    #allocation11 [shape = 'u8[204800]{0}', space=vmem, size = 0x32000, scoped, tag = 'output window, operand 0, single buffered']
    %13 = vsyncpa [#allocation3], 0
    %14 = vsyncpa [#allocation6], 0
    %15 = vsyncpa [#allocation9], 0
    %16 = vsyncpa [#allocation4], 0
    // Predicated region
    $region2: #{tpu_custom_call.1} parent=1 // pred_check
      _
    $region3: #{tpu_custom_call.1} parent=1 // pred_check_branch
      %18 = sbr.rel (0) target = $region5
    $region4: #{tpu_custom_call.1} parent=1 // pred_region
      %s20 = ssub.s32 3200, 3200
      %21 = vsyncadd [#allocation3], %s20
      %s22 = sshll.u32 [#allocation2], 4
      %s23 = int_to_ptr.vmem [resolvable:$true] %s22
      %28 = dma.hbm_to_vmem [thread:$0]  %s0, 3200, %s23, [#allocation3], 128, 128, 8
    $region5: #{tpu_custom_call.1} parent=1 // pred_fallthru
      _
    // Predicated region
    $region6: #{tpu_custom_call.1} parent=1 // pred_check
      _
    $region7: #{tpu_custom_call.1} parent=1 // pred_check_branch
      %30 = sbr.rel (0) target = $region9
    $region8: #{tpu_custom_call.1} parent=1 // pred_region
      %s32 = ssub.s32 10240, 10240
      %33 = vsyncadd [#allocation6], %s32
      %s34 = sshll.u32 [#allocation5], 4
      %s35 = int_to_ptr.vmem [resolvable:$true] %s34
      %40 = dma.hbm_to_vmem [thread:$0]  %s1, 10240, %s35, [#allocation6], 640, 640, 40
    $region9: #{tpu_custom_call.1} parent=1 // pred_fallthru
      _
    // Predicated region
    $region10: #{tpu_custom_call.1} parent=1 // pred_check
      _
    $region11: #{tpu_custom_call.1} parent=1 // pred_check_branch
      %42 = sbr.rel (0) target = $region13
    $region12: #{tpu_custom_call.1} parent=1 // pred_region
      _
    $region13: #{tpu_custom_call.1} parent=1 // pred_fallthru
      _
    // Predicated region
    $region14: #{tpu_custom_call.1} parent=1 // pred_check
      _
    $region15: #{tpu_custom_call.1} parent=1 // pred_check_branch
      %44 = sbr.rel (0) target = $region17
    $region16: #{tpu_custom_call.1} parent=1 // pred_region
      %s46 = ssub.s32 10240, 10240
      %47 = vsyncadd [#allocation6], %s46
      %s48 = sshll.u32 [#allocation7], 4
      %s49 = int_to_ptr.vmem [resolvable:$true] %s48
      %54 = dma.hbm_to_vmem [thread:$0]  %s3, 10240, %s49, [#allocation6], 128, 128, 8
    $region17: #{tpu_custom_call.1} parent=1 // pred_fallthru
      _
    // Predicated region
    $region18: #{tpu_custom_call.1} parent=1 // pred_check
      _
    $region19: #{tpu_custom_call.1} parent=1 // pred_check_branch
      %56 = sbr.rel (0) target = $region21
    $region20: #{tpu_custom_call.1} parent=1 // pred_region
      %s58 = ssub.s32 512, 512
      %59 = vsyncadd [#allocation9], %s58
      %s60 = sshll.u32 [#allocation8], 4
      %s61 = int_to_ptr.vmem [resolvable:$true] %s60
      %66 = dma.hbm_to_vmem [thread:$0]  %s4, 512, %s61, [#allocation9], 128, 128, 8
    $region21: #{tpu_custom_call.1} parent=1 // pred_fallthru
      _
    // Predicated region
    $region22: #{tpu_custom_call.1} parent=1 // pred_check
      _
    $region23: #{tpu_custom_call.1} parent=1 // pred_check_branch
      %68 = sbr.rel (0) target = $region25
    $region24: #{tpu_custom_call.1} parent=1 // pred_region
      _
    $region25: #{tpu_custom_call.1} parent=1 // pred_fallthru
      _
    // Predicated region
    $region26: #{tpu_custom_call.1} parent=1 // pred_check
      _
    $region27: #{tpu_custom_call.1} parent=1 // pred_check_branch
      %70 = sbr.rel (0) target = $region29
    $region28: #{tpu_custom_call.1} parent=1 // pred_region
      %s72 = ssub.s32 4096, 4096
      %73 = vsyncadd [#allocation9], %s72
      %s74 = sshll.u32 [#allocation10], 4
      %s75 = int_to_ptr.vmem [resolvable:$true] %s74
      %80 = dma.hbm_to_vmem [thread:$0]  %s6, 4096, %s75, [#allocation9], 256, 256, 16
    $region29: #{tpu_custom_call.1} parent=1 // pred_fallthru
      _
    // Predicated region
    $region30: #{tpu_custom_call.1} parent=1 // pred_check
      _
    $region31: #{tpu_custom_call.1} parent=1 // pred_check_branch
      %82 = sbr.rel (0) target = $region33
    $region32: #{tpu_custom_call.1} parent=1 // pred_region
      _
    $region33: #{tpu_custom_call.1} parent=1 // pred_fallthru
      _
    // Predicated region
    $region34: #{tpu_custom_call.1} parent=1 // pred_check
      _
    $region35: #{tpu_custom_call.1} parent=1 // pred_check_branch
      %84 = sbr.rel (0) target = $region37
    $region36: #{tpu_custom_call.1} parent=1 // pred_region
      %85 = dma.done [#allocation3], 3200
    $region37: #{tpu_custom_call.1} parent=1 // pred_fallthru
      _
    // Predicated region
    $region38: #{tpu_custom_call.1} parent=1 // pred_check
      _
    $region39: #{tpu_custom_call.1} parent=1 // pred_check_branch
      %87 = sbr.rel (0) target = $region41
    $region40: #{tpu_custom_call.1} parent=1 // pred_region
      %88 = dma.done [#allocation6], 10240
    $region41: #{tpu_custom_call.1} parent=1 // pred_fallthru
      _
    // Predicated region
    $region42: #{tpu_custom_call.1} parent=1 // pred_check
      _
    $region43: #{tpu_custom_call.1} parent=1 // pred_check_branch
      %90 = sbr.rel (0) target = $region45
    $region44: #{tpu_custom_call.1} parent=1 // pred_region
      %91 = dma.done [#allocation6], 10240
    $region45: #{tpu_custom_call.1} parent=1 // pred_fallthru
      _
    // Predicated region
    $region46: #{tpu_custom_call.1} parent=1 // pred_check
      _
    $region47: #{tpu_custom_call.1} parent=1 // pred_check_branch
      %93 = sbr.rel (0) target = $region49
    $region48: #{tpu_custom_call.1} parent=1 // pred_region
      %94 = dma.done [#allocation9], 512
    $region49: #{tpu_custom_call.1} parent=1 // pred_fallthru
      _
    // Predicated region
    $region50: #{tpu_custom_call.1} parent=1 // pred_check
      _
    $region51: #{tpu_custom_call.1} parent=1 // pred_check_branch
      %96 = sbr.rel (0) target = $region53
    $region52: #{tpu_custom_call.1} parent=1 // pred_region
      %97 = dma.done [#allocation9], 4096
    $region53: #{tpu_custom_call.1} parent=1 // pred_fallthru
      _
    %v98 = vld [vmem:[#allocation2] sm:$0xff]
    %v99 = vld [vmem:[#allocation2 + $0x8] sm:$0xff]
    %v100 = vld [vmem:[#allocation2 + $0x10] sm:$0xff]
    %v101 = vld [vmem:[#allocation2 + $0x18] sm:$0xff]
    %v102 = vld [vmem:[#allocation2 + $0x20] sm:$0xff]
    %v103 = vld [vmem:[#allocation2 + $0x28] sm:$0xff]
    %v104 = vld [vmem:[#allocation2 + $0x30] sm:$0xff]
    %v105 = vld [vmem:[#allocation2 + $0x38] sm:$0xff]
    %v106 = vld [vmem:[#allocation2 + $0x40] sm:$0xff]
    %v107 = vld [vmem:[#allocation2 + $0x48] sm:$0xff]
    %v108 = vld [vmem:[#allocation2 + $0x50] sm:$0xff]
    %v109 = vld [vmem:[#allocation2 + $0x58] sm:$0xff]
    %v110 = vld [vmem:[#allocation2 + $0x60] sm:$0xff]
    %v111 = vld [vmem:[#allocation2 + $0x68] sm:$0xff]
    %v112 = vld [vmem:[#allocation2 + $0x70] sm:$0xff]
    %v113 = vld [vmem:[#allocation2 + $0x78] sm:$0xff]
    %v114 = vld [vmem:[#allocation2 + $0x80] sm:$0xff]
    %v115 = vld [vmem:[#allocation2 + $0x88] sm:$0xff]
    %v116 = vld [vmem:[#allocation2 + $0x90] sm:$0xff]
    %v117 = vld [vmem:[#allocation2 + $0x98] sm:$0xff]
    %v118 = vld [vmem:[#allocation2 + $0xa0] sm:$0xff]
    %v119 = vld [vmem:[#allocation2 + $0xa8] sm:$0xff]
    %v120 = vld [vmem:[#allocation2 + $0xb0] sm:$0xff]
    %v121 = vld [vmem:[#allocation2 + $0xb8] sm:$0xff]
    %v122 = vld [vmem:[#allocation2 + $0xc0] sm:$0xff]
    %v123 = vld [vmem:[#allocation5] sm:$0xff]
    %v124 = vld [vmem:[#allocation5 + $0x8] sm:$0xff]
    %v125 = vld [vmem:[#allocation5 + $0x10] sm:$0xff]
    %v126 = vld [vmem:[#allocation5 + $0x18] sm:$0xff]
    %v127 = vld [vmem:[#allocation5 + $0x20] sm:$0xff]
    %v128 = vld [vmem:[#allocation5 + $0x28] sm:$0xff]
    %v129 = vld [vmem:[#allocation5 + $0x30] sm:$0xff]
    %v130 = vld [vmem:[#allocation5 + $0x38] sm:$0xff]
    %v131 = vld [vmem:[#allocation5 + $0x40] sm:$0xff]
    %v132 = vld [vmem:[#allocation5 + $0x48] sm:$0xff]
    %v133 = vld [vmem:[#allocation5 + $0x50] sm:$0xff]
    %v134 = vld [vmem:[#allocation5 + $0x58] sm:$0xff]
    %v135 = vld [vmem:[#allocation5 + $0x60] sm:$0xff]
    %v136 = vld [vmem:[#allocation5 + $0x68] sm:$0xff]
    %v137 = vld [vmem:[#allocation5 + $0x70] sm:$0xff]
    %v138 = vld [vmem:[#allocation5 + $0x78] sm:$0xff]
    %v139 = vld [vmem:[#allocation5 + $0x80] sm:$0xff]
    %v140 = vld [vmem:[#allocation5 + $0x88] sm:$0xff]
    %v141 = vld [vmem:[#allocation5 + $0x90] sm:$0xff]
    %v142 = vld [vmem:[#allocation5 + $0x98] sm:$0xff]
    %v143 = vld [vmem:[#allocation5 + $0xa0] sm:$0xff]
    %v144 = vld [vmem:[#allocation5 + $0xa8] sm:$0xff]
    %v145 = vld [vmem:[#allocation5 + $0xb0] sm:$0xff]
    %v146 = vld [vmem:[#allocation5 + $0xb8] sm:$0xff]
    %v147 = vld [vmem:[#allocation5 + $0xc0] sm:$0xff]
    %v148 = vld [vmem:[#allocation5 + $0xc8] sm:$0xff]
    %v149 = vld [vmem:[#allocation5 + $0xd0] sm:$0xff]
    %v150 = vld [vmem:[#allocation5 + $0xd8] sm:$0xff]
    %v151 = vld [vmem:[#allocation5 + $0xe0] sm:$0xff]
    %v152 = vld [vmem:[#allocation5 + $0xe8] sm:$0xff]
    %v153 = vld [vmem:[#allocation5 + $0xf0] sm:$0xff]
    %v154 = vld [vmem:[#allocation5 + $0xf8] sm:$0xff]
    %v155 = vld [vmem:[#allocation5 + $0x100] sm:$0xff]
    %v156 = vld [vmem:[#allocation5 + $0x108] sm:$0xff]
    %v157 = vld [vmem:[#allocation5 + $0x110] sm:$0xff]
    %v158 = vld [vmem:[#allocation5 + $0x118] sm:$0xff]
    %v159 = vld [vmem:[#allocation5 + $0x120] sm:$0xff]
    %v160 = vld [vmem:[#allocation5 + $0x128] sm:$0xff]
    %v161 = vld [vmem:[#allocation5 + $0x130] sm:$0xff]
    %v162 = vld [vmem:[#allocation5 + $0x138] sm:$0xff]
    %v163 = vld [vmem:[#allocation5 + $0x140] sm:$0xff]
    %v164 = vld [vmem:[#allocation5 + $0x148] sm:$0xff]
    %v165 = vld [vmem:[#allocation5 + $0x150] sm:$0xff]
    %v166 = vld [vmem:[#allocation5 + $0x158] sm:$0xff]
    %v167 = vld [vmem:[#allocation5 + $0x160] sm:$0xff]
    %v168 = vld [vmem:[#allocation5 + $0x168] sm:$0xff]
    %v169 = vld [vmem:[#allocation5 + $0x170] sm:$0xff]
    %v170 = vld [vmem:[#allocation5 + $0x178] sm:$0xff]
    %v171 = vld [vmem:[#allocation5 + $0x180] sm:$0xff]
    %v172 = vld [vmem:[#allocation5 + $0x188] sm:$0xff]
    %v173 = vld [vmem:[#allocation5 + $0x190] sm:$0xff]
    %v174 = vld [vmem:[#allocation5 + $0x198] sm:$0xff]
    %v175 = vld [vmem:[#allocation5 + $0x1a0] sm:$0xff]
    %v176 = vld [vmem:[#allocation5 + $0x1a8] sm:$0xff]
    %v177 = vld [vmem:[#allocation5 + $0x1b0] sm:$0xff]
    %v178 = vld [vmem:[#allocation5 + $0x1b8] sm:$0xff]
    %v179 = vld [vmem:[#allocation5 + $0x1c0] sm:$0xff]
    %v180 = vld [vmem:[#allocation5 + $0x1c8] sm:$0xff]
    %v181 = vld [vmem:[#allocation5 + $0x1d0] sm:$0xff]
    %v182 = vld [vmem:[#allocation5 + $0x1d8] sm:$0xff]
    %v183 = vld [vmem:[#allocation5 + $0x1e0] sm:$0xff]
    %v184 = vld [vmem:[#allocation5 + $0x1e8] sm:$0xff]
    %v185 = vld [vmem:[#allocation5 + $0x1f0] sm:$0xff]
    %v186 = vld [vmem:[#allocation5 + $0x1f8] sm:$0xff]
    %v187 = vld [vmem:[#allocation5 + $0x200] sm:$0xff]
    %v188 = vld [vmem:[#allocation5 + $0x208] sm:$0xff]
    %v189 = vld [vmem:[#allocation5 + $0x210] sm:$0xff]
    %v190 = vld [vmem:[#allocation5 + $0x218] sm:$0xff]
    %v191 = vld [vmem:[#allocation5 + $0x220] sm:$0xff]
    %v192 = vld [vmem:[#allocation5 + $0x228] sm:$0xff]
    %v193 = vld [vmem:[#allocation5 + $0x230] sm:$0xff]
    %v194 = vld [vmem:[#allocation5 + $0x238] sm:$0xff]
    %v195 = vld [vmem:[#allocation5 + $0x240] sm:$0xff]
    %v196 = vld [vmem:[#allocation5 + $0x248] sm:$0xff]
    %v197 = vld [vmem:[#allocation5 + $0x250] sm:$0xff]
    %v198 = vld [vmem:[#allocation5 + $0x258] sm:$0xff]
    %v199 = vld [vmem:[#allocation5 + $0x260] sm:$0xff]
    %v200 = vld [vmem:[#allocation5 + $0x268] sm:$0xff]
    %v201 = vld [vmem:[#allocation5 + $0x270] sm:$0xff]
    %v202 = vld [vmem:[#allocation5 + $0x278] sm:$0xff]
    %v203 = vld [vmem:[%s2] sm:$0x1f]
    %v205 = vlaneseq
    %v206 = vshrl.u32 %v205, 7
    %v207 = vsub.s32 0, %v206
    %v208 = vrot.slane %v203, %v207
    %v209 = vlaneseq
    %v210 = vshrl.u32 %v209, 7
    %v211 = vsub.s32 1, %v210
    %v212 = vrot.slane %v203, %v211
    %v213 = vlaneseq
    %v214 = vshrl.u32 %v213, 7
    %v215 = vsub.s32 2, %v214
    %v216 = vrot.slane %v203, %v215
    %v217 = vlaneseq
    %v218 = vshrl.u32 %v217, 7
    %v219 = vsub.s32 3, %v218
    %v220 = vrot.slane %v203, %v219
    %v221 = vlaneseq
    %v222 = vshrl.u32 %v221, 7
    %v223 = vsub.s32 4, %v222
    %v224 = vrot.slane %v203, %v223
    %230 = vmatprep.subr.mxu0 %v124
    %231 = vmatpush1.msra.mxu0 %v123
    %232 = vmatprep.subr.mxu0 %v129
    %233 = vmatpush1.msra.mxu0 %v128
    %234 = vmatprep.subr.mxu0 %v134
    %235 = vmatpush1.msra.mxu0 %v133
    %236 = vmatprep.subr.mxu0 %v139
    %237 = vmatpush1.msra.mxu0 %v138
    %238 = vmatprep.subr.mxu0 %v144
    %239 = vmatpush1.msra.mxu0 %v143
    %240 = vmatprep.subr.mxu0 %v149
    %241 = vmatpush1.msra.mxu0 %v148
    %242 = vmatprep.subr.mxu0 %v154
    %243 = vmatpush1.msra.mxu0 %v153
    %244 = vmatprep.subr.mxu0 %v159
    %245 = vmatpush1.msra.mxu0 %v158
    %246 = vmatprep.subr.mxu0 %v164
    %247 = vmatpush1.msra.mxu0 %v163
    %248 = vmatprep.subr.mxu0 %v169
    %249 = vmatpush1.msra.mxu0 %v168
    %250 = vmatprep.subr.mxu0 %v174
    %251 = vmatpush1.msra.mxu0 %v173
    %252 = vmatprep.subr.mxu0 %v179
    %253 = vmatpush1.msra.mxu0 %v178
    %254 = vmatprep.subr.mxu0 %v184
    %255 = vmatpush1.msra.mxu0 %v183
    %256 = vmatprep.subr.mxu0 %v189
    %257 = vmatpush1.msra.mxu0 %v188
    %258 = vmatprep.subr.mxu0 %v194
    %259 = vmatpush1.msra.mxu0 %v193
    %260 = vmatprep.subr.mxu0 %v199
    %261 = vmatpush1.msra.mxu0 %v198
    %262 = vmatprep.subr.mxu0 0.0
    %263 = vmatpush1.msra.mxu0 0.0
    %264 = vmatprep.subr.mxu0 0.0
    %265 = vmatpush1.msra.mxu0 0.0
    %266 = vmatprep.subr.mxu0 0.0
    %267 = vmatpush1.msra.mxu0 0.0
    %268 = vmatprep.subr.mxu0 0.0
    %269 = vmatpush1.msra.mxu0 0.0
    %270 = vmatprep.subr.mxu0 0.0
    %271 = vmatpush1.msra.mxu0 0.0
    %272 = vmatprep.subr.mxu0 0.0
    %273 = vmatpush1.msra.mxu0 0.0
    %274 = vmatprep.subr.mxu0 0.0
    %275 = vmatpush1.msra.mxu0 0.0
    %276 = vmatprep.subr.mxu0 0.0
    %277 = vmatpush1.msra.mxu0 0.0
    %278 = vmatprep.subr.mxu0 0.0
    %279 = vmatpush1.msra.mxu0 0.0
    %280 = vmatprep.subr.mxu0 0.0
    %281 = vmatpush1.msra.mxu0 0.0
    %282 = vmatprep.subr.mxu0 0.0
    %283 = vmatpush1.msra.mxu0 0.0
    %284 = vmatprep.subr.mxu0 0.0
    %285 = vmatpush1.msra.mxu0 0.0
    %286 = vmatprep.subr.mxu0 0.0
    %287 = vmatpush1.msra.mxu0 0.0
    %288 = vmatprep.subr.mxu0 0.0
    %289 = vmatpush1.msra.mxu0 0.0
    %290 = vmatprep.subr.mxu0 0.0
    %291 = vmatpush1.msra.mxu0 0.0
    %292 = vmatprep.subr.mxu0 0.0
    %293 = vmatpush1.msra.mxu0 0.0
    %294 = vmatprep.mubr.f32.mxu0 0.0
    %295 = vmatmul.mubr.f32.gmra.mrb[0].mxu0 %v98
    %v296 = vpop.f32.mrb[0].mxu0
    %v297 = vadd.f32 %v208, %v296
    %v298 = vpop.f32.mrb[0].mxu0
    %v299 = vadd.f32 %v212, %v298
    %300 = vmatprep.mubr.f32.mxu0 0.0
    %301 = vmatmul.mubr.f32.gmra.mrb[0].mxu0 %v99
    %v302 = vpop.f32.mrb[0].mxu0
    %v303 = vadd.f32 %v208, %v302
    %v304 = vpop.f32.mrb[0].mxu0
    %v305 = vadd.f32 %v212, %v304
    %306 = vmatprep.mubr.f32.mxu0 0.0
    %307 = vmatmul.mubr.f32.gmra.mrb[0].mxu0 %v100
    %v308 = vpop.f32.mrb[0].mxu0
    %v309 = vadd.f32 %v208, %v308
    %v310 = vpop.f32.mrb[0].mxu0
    %v311 = vadd.f32 %v212, %v310
    %312 = vmatprep.mubr.f32.mxu0 0.0
    %313 = vmatmul.mubr.f32.gmra.mrb[0].mxu0 %v101
    %v314 = vpop.f32.mrb[0].mxu0
    %v315 = vadd.f32 %v208, %v314
    %v316 = vpop.f32.mrb[0].mxu0
    %v317 = vadd.f32 %v212, %v316
    %318 = vmatprep.mubr.f32.mxu0 0.0
    %319 = vmatmul.mubr.f32.gmra.mrb[0].mxu0 %v102
    %v320 = vpop.f32.mrb[0].mxu0
    %v321 = vadd.f32 %v208, %v320
    %v322 = vpop.f32.mrb[0].mxu0
    %v323 = vadd.f32 %v212, %v322
    %324 = vmatprep.mubr.f32.mxu0 0.0
    %325 = vmatmul.mubr.f32.gmra.mrb[0].mxu0 %v103
    %v326 = vpop.f32.mrb[0].mxu0
    %v327 = vadd.f32 %v208, %v326
    %v328 = vpop.f32.mrb[0].mxu0
    %v329 = vadd.f32 %v212, %v328
    %330 = vmatprep.mubr.f32.mxu0 0.0
    %331 = vmatmul.mubr.f32.gmra.mrb[0].mxu0 %v104
    %v332 = vpop.f32.mrb[0].mxu0
    %v333 = vadd.f32 %v208, %v332
    %v334 = vpop.f32.mrb[0].mxu0
    %v335 = vadd.f32 %v212, %v334
    %336 = vmatprep.mubr.f32.mxu0 0.0
    %337 = vmatmul.mubr.f32.gmra.mrb[0].mxu0 %v105
    %v338 = vpop.f32.mrb[0].mxu0
    %v339 = vadd.f32 %v208, %v338
    %v340 = vpop.f32.mrb[0].mxu0
    %v341 = vadd.f32 %v212, %v340
    %342 = vmatprep.mubr.f32.mxu0 0.0
    %343 = vmatmul.mubr.f32.gmra.mrb[0].mxu0 %v106
    %v344 = vpop.f32.mrb[0].mxu0
    %v345 = vadd.f32 %v208, %v344
    %v346 = vpop.f32.mrb[0].mxu0
    %v347 = vadd.f32 %v212, %v346
    %348 = vmatprep.mubr.f32.mxu0 0.0
    %349 = vmatmul.mubr.f32.gmra.mrb[0].mxu0 %v107
    %v350 = vpop.f32.mrb[0].mxu0
    %v351 = vadd.f32 %v208, %v350
    %v352 = vpop.f32.mrb[0].mxu0
    %v353 = vadd.f32 %v212, %v352
    %354 = vmatprep.mubr.f32.mxu0 0.0
    %355 = vmatmul.mubr.f32.gmra.mrb[0].mxu0 %v108
    %v356 = vpop.f32.mrb[0].mxu0
    %v357 = vadd.f32 %v208, %v356
    %v358 = vpop.f32.mrb[0].mxu0
    %v359 = vadd.f32 %v212, %v358
    %360 = vmatprep.mubr.f32.mxu0 0.0
    %361 = vmatmul.mubr.f32.gmra.mrb[0].mxu0 %v109
    %v362 = vpop.f32.mrb[0].mxu0
    %v363 = vadd.f32 %v208, %v362
    %v364 = vpop.f32.mrb[0].mxu0
    %v365 = vadd.f32 %v212, %v364
    %366 = vmatprep.mubr.f32.mxu0 0.0
    %367 = vmatmul.mubr.f32.gmra.mrb[0].mxu0 %v110
    %v368 = vpop.f32.mrb[0].mxu0
    %v369 = vadd.f32 %v208, %v368
    %v370 = vpop.f32.mrb[0].mxu0
    %v371 = vadd.f32 %v212, %v370
    %372 = vmatprep.mubr.f32.mxu0 0.0
    %373 = vmatmul.mubr.f32.gmra.mrb[0].mxu0 %v111
    %v374 = vpop.f32.mrb[0].mxu0
    %v375 = vadd.f32 %v208, %v374
    %v376 = vpop.f32.mrb[0].mxu0
    %v377 = vadd.f32 %v212, %v376
    %378 = vmatprep.mubr.f32.mxu0 0.0
    %379 = vmatmul.mubr.f32.gmra.mrb[0].mxu0 %v112
    %v380 = vpop.f32.mrb[0].mxu0
    %v381 = vadd.f32 %v208, %v380
    %v382 = vpop.f32.mrb[0].mxu0
    %v383 = vadd.f32 %v212, %v382
    %384 = vmatprep.mubr.f32.mxu0 0.0
    %385 = vmatmul.mubr.f32.gmra.mrb[0].mxu0 %v113
    %v386 = vpop.f32.mrb[0].mxu0
    %v387 = vadd.f32 %v208, %v386
    %v388 = vpop.f32.mrb[0].mxu0
    %v389 = vadd.f32 %v212, %v388
    %390 = vmatprep.mubr.f32.mxu0 0.0
    %391 = vmatmul.mubr.f32.gmra.mrb[0].mxu0 %v114
    %v392 = vpop.f32.mrb[0].mxu0
    %v393 = vadd.f32 %v208, %v392
    %v394 = vpop.f32.mrb[0].mxu0
    %v395 = vadd.f32 %v212, %v394
    %396 = vmatprep.mubr.f32.mxu0 0.0
    %397 = vmatmul.mubr.f32.gmra.mrb[0].mxu0 %v115
    %v398 = vpop.f32.mrb[0].mxu0
    %v399 = vadd.f32 %v208, %v398
    %v400 = vpop.f32.mrb[0].mxu0
    %v401 = vadd.f32 %v212, %v400
    %402 = vmatprep.mubr.f32.mxu0 0.0
    %403 = vmatmul.mubr.f32.gmra.mrb[0].mxu0 %v116
    %v404 = vpop.f32.mrb[0].mxu0
    %v405 = vadd.f32 %v208, %v404
    %v406 = vpop.f32.mrb[0].mxu0
    %v407 = vadd.f32 %v212, %v406
    %408 = vmatprep.mubr.f32.mxu0 0.0
    %409 = vmatmul.mubr.f32.gmra.mrb[0].mxu0 %v117
    %v410 = vpop.f32.mrb[0].mxu0
    %v411 = vadd.f32 %v208, %v410
    %v412 = vpop.f32.mrb[0].mxu0
    %v413 = vadd.f32 %v212, %v412
    %414 = vmatprep.mubr.f32.mxu0 0.0
    %415 = vmatmul.mubr.f32.gmra.mrb[0].mxu0 %v118
    %v416 = vpop.f32.mrb[0].mxu0
    %v417 = vadd.f32 %v208, %v416
    %v418 = vpop.f32.mrb[0].mxu0
    %v419 = vadd.f32 %v212, %v418
    %420 = vmatprep.mubr.f32.mxu0 0.0
    %421 = vmatmul.mubr.f32.gmra.mrb[0].mxu0 %v119
    %v422 = vpop.f32.mrb[0].mxu0
    %v423 = vadd.f32 %v208, %v422
    %v424 = vpop.f32.mrb[0].mxu0
    %v425 = vadd.f32 %v212, %v424
    %426 = vmatprep.mubr.f32.mxu0 0.0
    %427 = vmatmul.mubr.f32.gmra.mrb[0].mxu0 %v120
    %v428 = vpop.f32.mrb[0].mxu0
    %v429 = vadd.f32 %v208, %v428
    %v430 = vpop.f32.mrb[0].mxu0
    %v431 = vadd.f32 %v212, %v430
    %432 = vmatprep.mubr.f32.mxu0 0.0
    %433 = vmatmul.mubr.f32.gmra.mrb[0].mxu0 %v121
    %v434 = vpop.f32.mrb[0].mxu0
    %v435 = vadd.f32 %v208, %v434
    %v436 = vpop.f32.mrb[0].mxu0
    %v437 = vadd.f32 %v212, %v436
    %438 = vmatprep.mubr.f32.mxu0 0.0
    %439 = vmatmul.mubr.f32.gmra.mrb[0].mxu0 %v122
    %v440 = vpop.f32.mrb[0].mxu0
    %v441 = vadd.f32 %v208, %v440
    %v442 = vpop.f32.mrb[0].mxu0
    %v443 = vadd.f32 %v212, %v442
    %444 = vdwg.mxu0
    %445 = vmatprep.subr.mxu0 %v126
    %446 = vmatpush1.msra.mxu0 %v125
    %447 = vmatprep.subr.mxu0 %v131
    %448 = vmatpush1.msra.mxu0 %v130
    %449 = vmatprep.subr.mxu0 %v136
    %450 = vmatpush1.msra.mxu0 %v135
    %451 = vmatprep.subr.mxu0 %v141
    %452 = vmatpush1.msra.mxu0 %v140
    %453 = vmatprep.subr.mxu0 %v146
    %454 = vmatpush1.msra.mxu0 %v145
    %455 = vmatprep.subr.mxu0 %v151
    %456 = vmatpush1.msra.mxu0 %v150
    %457 = vmatprep.subr.mxu0 %v156
    %458 = vmatpush1.msra.mxu0 %v155
    %459 = vmatprep.subr.mxu0 %v161
    %460 = vmatpush1.msra.mxu0 %v160
    %461 = vmatprep.subr.mxu0 %v166
    %462 = vmatpush1.msra.mxu0 %v165
    %463 = vmatprep.subr.mxu0 %v171
    %464 = vmatpush1.msra.mxu0 %v170
    %465 = vmatprep.subr.mxu0 %v176
    %466 = vmatpush1.msra.mxu0 %v175
    %467 = vmatprep.subr.mxu0 %v181
    %468 = vmatpush1.msra.mxu0 %v180
    %469 = vmatprep.subr.mxu0 %v186
    %470 = vmatpush1.msra.mxu0 %v185
    %471 = vmatprep.subr.mxu0 %v191
    %472 = vmatpush1.msra.mxu0 %v190
    %473 = vmatprep.subr.mxu0 %v196
    %474 = vmatpush1.msra.mxu0 %v195
    %475 = vmatprep.subr.mxu0 %v201
    %476 = vmatpush1.msra.mxu0 %v200
    %477 = vmatprep.subr.mxu0 0.0
    %478 = vmatpush1.msra.mxu0 0.0
    %479 = vmatprep.subr.mxu0 0.0
    %480 = vmatpush1.msra.mxu0 0.0
    %481 = vmatprep.subr.mxu0 0.0
    %482 = vmatpush1.msra.mxu0 0.0
    %483 = vmatprep.subr.mxu0 0.0
    %484 = vmatpush1.msra.mxu0 0.0
    %485 = vmatprep.subr.mxu0 0.0
    %486 = vmatpush1.msra.mxu0 0.0
    %487 = vmatprep.subr.mxu0 0.0
    %488 = vmatpush1.msra.mxu0 0.0
    %489 = vmatprep.subr.mxu0 0.0
    %490 = vmatpush1.msra.mxu0 0.0
    %491 = vmatprep.subr.mxu0 0.0
    %492 = vmatpush1.msra.mxu0 0.0
    %493 = vmatprep.subr.mxu0 0.0
    %494 = vmatpush1.msra.mxu0 0.0
    %495 = vmatprep.subr.mxu0 0.0
    %496 = vmatpush1.msra.mxu0 0.0
    %497 = vmatprep.subr.mxu0 0.0
    %498 = vmatpush1.msra.mxu0 0.0
    %499 = vmatprep.subr.mxu0 0.0
    %500 = vmatpush1.msra.mxu0 0.0
    %501 = vmatprep.subr.mxu0 0.0
    %502 = vmatpush1.msra.mxu0 0.0
    %503 = vmatprep.subr.mxu0 0.0
    %504 = vmatpush1.msra.mxu0 0.0
    %505 = vmatprep.subr.mxu0 0.0
    %506 = vmatpush1.msra.mxu0 0.0
    %507 = vmatprep.subr.mxu0 0.0
    %508 = vmatpush1.msra.mxu0 0.0
    %509 = vmatprep.mubr.f32.mxu0 0.0
    %510 = vmatmul.mubr.f32.gmra.mrb[0].mxu0 %v98
    %v511 = vpop.f32.mrb[0].mxu0
    %v512 = vadd.f32 %v216, %v511
    %v513 = vpop.f32.mrb[0].mxu0
    %v514 = vadd.f32 %v220, %v513
    %515 = vmatprep.mubr.f32.mxu0 0.0
    %516 = vmatmul.mubr.f32.gmra.mrb[0].mxu0 %v99
    %v517 = vpop.f32.mrb[0].mxu0
    %v518 = vadd.f32 %v216, %v517
    %v519 = vpop.f32.mrb[0].mxu0
    %v520 = vadd.f32 %v220, %v519
    %521 = vmatprep.mubr.f32.mxu0 0.0
    %522 = vmatmul.mubr.f32.gmra.mrb[0].mxu0 %v100
    %v523 = vpop.f32.mrb[0].mxu0
    %v524 = vadd.f32 %v216, %v523
    %v525 = vpop.f32.mrb[0].mxu0
    %v526 = vadd.f32 %v220, %v525
    %527 = vmatprep.mubr.f32.mxu0 0.0
    %528 = vmatmul.mubr.f32.gmra.mrb[0].mxu0 %v101
    %v529 = vpop.f32.mrb[0].mxu0
    %v530 = vadd.f32 %v216, %v529
    %v531 = vpop.f32.mrb[0].mxu0
    %v532 = vadd.f32 %v220, %v531
    %533 = vmatprep.mubr.f32.mxu0 0.0
    %534 = vmatmul.mubr.f32.gmra.mrb[0].mxu0 %v102
    %v535 = vpop.f32.mrb[0].mxu0
    %v536 = vadd.f32 %v216, %v535
    %v537 = vpop.f32.mrb[0].mxu0
    %v538 = vadd.f32 %v220, %v537
    %539 = vmatprep.mubr.f32.mxu0 0.0
    %540 = vmatmul.mubr.f32.gmra.mrb[0].mxu0 %v103
    %v541 = vpop.f32.mrb[0].mxu0
    %v542 = vadd.f32 %v216, %v541
    %v543 = vpop.f32.mrb[0].mxu0
    %v544 = vadd.f32 %v220, %v543
    %545 = vmatprep.mubr.f32.mxu0 0.0
    %546 = vmatmul.mubr.f32.gmra.mrb[0].mxu0 %v104
    %v547 = vpop.f32.mrb[0].mxu0
    %v548 = vadd.f32 %v216, %v547
    %v549 = vpop.f32.mrb[0].mxu0
    %v550 = vadd.f32 %v220, %v549
    %551 = vmatprep.mubr.f32.mxu0 0.0
    %552 = vmatmul.mubr.f32.gmra.mrb[0].mxu0 %v105
    %v553 = vpop.f32.mrb[0].mxu0
    %v554 = vadd.f32 %v216, %v553
    %v555 = vpop.f32.mrb[0].mxu0
    %v556 = vadd.f32 %v220, %v555
    %557 = vmatprep.mubr.f32.mxu0 0.0
    %558 = vmatmul.mubr.f32.gmra.mrb[0].mxu0 %v106
    %v559 = vpop.f32.mrb[0].mxu0
    %v560 = vadd.f32 %v216, %v559
    %v561 = vpop.f32.mrb[0].mxu0
    %v562 = vadd.f32 %v220, %v561
    %563 = vmatprep.mubr.f32.mxu0 0.0
    %564 = vmatmul.mubr.f32.gmra.mrb[0].mxu0 %v107
    %v565 = vpop.f32.mrb[0].mxu0
    %v566 = vadd.f32 %v216, %v565
    %v567 = vpop.f32.mrb[0].mxu0
    %v568 = vadd.f32 %v220, %v567
    %569 = vmatprep.mubr.f32.mxu0 0.0
    %570 = vmatmul.mubr.f32.gmra.mrb[0].mxu0 %v108
    %v571 = vpop.f32.mrb[0].mxu0
    %v572 = vadd.f32 %v216, %v571
    %v573 = vpop.f32.mrb[0].mxu0
    %v574 = vadd.f32 %v220, %v573
    %575 = vmatprep.mubr.f32.mxu0 0.0
    %576 = vmatmul.mubr.f32.gmra.mrb[0].mxu0 %v109
    %v577 = vpop.f32.mrb[0].mxu0
    %v578 = vadd.f32 %v216, %v577
    %v579 = vpop.f32.mrb[0].mxu0
    %v580 = vadd.f32 %v220, %v579
    %581 = vmatprep.mubr.f32.mxu0 0.0
    %582 = vmatmul.mubr.f32.gmra.mrb[0].mxu0 %v110
    %v583 = vpop.f32.mrb[0].mxu0
    %v584 = vadd.f32 %v216, %v583
    %v585 = vpop.f32.mrb[0].mxu0
    %v586 = vadd.f32 %v220, %v585
    %587 = vmatprep.mubr.f32.mxu0 0.0
    %588 = vmatmul.mubr.f32.gmra.mrb[0].mxu0 %v111
    %v589 = vpop.f32.mrb[0].mxu0
    %v590 = vadd.f32 %v216, %v589
    %v591 = vpop.f32.mrb[0].mxu0
    %v592 = vadd.f32 %v220, %v591
    %593 = vmatprep.mubr.f32.mxu0 0.0
    %594 = vmatmul.mubr.f32.gmra.mrb[0].mxu0 %v112
    %v595 = vpop.f32.mrb[0].mxu0
    %v596 = vadd.f32 %v216, %v595
    %v597 = vpop.f32.mrb[0].mxu0
    %v598 = vadd.f32 %v220, %v597
    %599 = vmatprep.mubr.f32.mxu0 0.0
    %600 = vmatmul.mubr.f32.gmra.mrb[0].mxu0 %v113
    %v601 = vpop.f32.mrb[0].mxu0
    %v602 = vadd.f32 %v216, %v601
    %v603 = vpop.f32.mrb[0].mxu0
    %v604 = vadd.f32 %v220, %v603
    %605 = vmatprep.mubr.f32.mxu0 0.0
    %606 = vmatmul.mubr.f32.gmra.mrb[0].mxu0 %v114
    %v607 = vpop.f32.mrb[0].mxu0
    %v608 = vadd.f32 %v216, %v607
    %v609 = vpop.f32.mrb[0].mxu0
    %v610 = vadd.f32 %v220, %v609
    %611 = vmatprep.mubr.f32.mxu0 0.0
    %612 = vmatmul.mubr.f32.gmra.mrb[0].mxu0 %v115
    %v613 = vpop.f32.mrb[0].mxu0
    %v614 = vadd.f32 %v216, %v613
    %v615 = vpop.f32.mrb[0].mxu0
    %v616 = vadd.f32 %v220, %v615
    %617 = vmatprep.mubr.f32.mxu0 0.0
    %618 = vmatmul.mubr.f32.gmra.mrb[0].mxu0 %v116
    %v619 = vpop.f32.mrb[0].mxu0
    %v620 = vadd.f32 %v216, %v619
    %v621 = vpop.f32.mrb[0].mxu0
    %v622 = vadd.f32 %v220, %v621
    %623 = vmatprep.mubr.f32.mxu0 0.0
    %624 = vmatmul.mubr.f32.gmra.mrb[0].mxu0 %v117
    %v625 = vpop.f32.mrb[0].mxu0
    %v626 = vadd.f32 %v216, %v625
    %v627 = vpop.f32.mrb[0].mxu0
    %v628 = vadd.f32 %v220, %v627
    %629 = vmatprep.mubr.f32.mxu0 0.0
    %630 = vmatmul.mubr.f32.gmra.mrb[0].mxu0 %v118
    %v631 = vpop.f32.mrb[0].mxu0
    %v632 = vadd.f32 %v216, %v631
    %v633 = vpop.f32.mrb[0].mxu0
    %v634 = vadd.f32 %v220, %v633
    %635 = vmatprep.mubr.f32.mxu0 0.0
    %636 = vmatmul.mubr.f32.gmra.mrb[0].mxu0 %v119
    %v637 = vpop.f32.mrb[0].mxu0
    %v638 = vadd.f32 %v216, %v637
    %v639 = vpop.f32.mrb[0].mxu0
    %v640 = vadd.f32 %v220, %v639
    %641 = vmatprep.mubr.f32.mxu0 0.0
    %642 = vmatmul.mubr.f32.gmra.mrb[0].mxu0 %v120
    %v643 = vpop.f32.mrb[0].mxu0
    %v644 = vadd.f32 %v216, %v643
    %v645 = vpop.f32.mrb[0].mxu0
    %v646 = vadd.f32 %v220, %v645
    %647 = vmatprep.mubr.f32.mxu0 0.0
    %648 = vmatmul.mubr.f32.gmra.mrb[0].mxu0 %v121
    %v649 = vpop.f32.mrb[0].mxu0
    %v650 = vadd.f32 %v216, %v649
    %v651 = vpop.f32.mrb[0].mxu0
    %v652 = vadd.f32 %v220, %v651
    %653 = vmatprep.mubr.f32.mxu0 0.0
    %654 = vmatmul.mubr.f32.gmra.mrb[0].mxu0 %v122
    %v655 = vpop.f32.mrb[0].mxu0
    %v656 = vadd.f32 %v216, %v655
    %v657 = vpop.f32.mrb[0].mxu0
    %v658 = vadd.f32 %v220, %v657
    %659 = vdwg.mxu0
    %660 = vmatprep.subr.mxu0 0.0
    %661 = vmatpush1.msra.mxu0 %v127
    %662 = vmatprep.subr.mxu0 0.0
    %663 = vmatpush1.msra.mxu0 %v132
    %664 = vmatprep.subr.mxu0 0.0
    %665 = vmatpush1.msra.mxu0 %v137
    %666 = vmatprep.subr.mxu0 0.0
    %667 = vmatpush1.msra.mxu0 %v142
    %668 = vmatprep.subr.mxu0 0.0
    %669 = vmatpush1.msra.mxu0 %v147
    %670 = vmatprep.subr.mxu0 0.0
    %671 = vmatpush1.msra.mxu0 %v152
    %672 = vmatprep.subr.mxu0 0.0
    %673 = vmatpush1.msra.mxu0 %v157
    %674 = vmatprep.subr.mxu0 0.0
    %675 = vmatpush1.msra.mxu0 %v162
    %676 = vmatprep.subr.mxu0 0.0
    %677 = vmatpush1.msra.mxu0 %v167
    %678 = vmatprep.subr.mxu0 0.0
    %679 = vmatpush1.msra.mxu0 %v172
    %680 = vmatprep.subr.mxu0 0.0
    %681 = vmatpush1.msra.mxu0 %v177
    %682 = vmatprep.subr.mxu0 0.0
    %683 = vmatpush1.msra.mxu0 %v182
    %684 = vmatprep.subr.mxu0 0.0
    %685 = vmatpush1.msra.mxu0 %v187
    %686 = vmatprep.subr.mxu0 0.0
    %687 = vmatpush1.msra.mxu0 %v192
    %688 = vmatprep.subr.mxu0 0.0
    %689 = vmatpush1.msra.mxu0 %v197
    %690 = vmatprep.subr.mxu0 0.0
    %691 = vmatpush1.msra.mxu0 %v202
    %692 = vmatprep.subr.mxu0 0.0
    %693 = vmatpush1.msra.mxu0 0.0
    %694 = vmatprep.subr.mxu0 0.0
    %695 = vmatpush1.msra.mxu0 0.0
    %696 = vmatprep.subr.mxu0 0.0
    %697 = vmatpush1.msra.mxu0 0.0
    %698 = vmatprep.subr.mxu0 0.0
    %699 = vmatpush1.msra.mxu0 0.0
    %700 = vmatprep.subr.mxu0 0.0
    %701 = vmatpush1.msra.mxu0 0.0
    %702 = vmatprep.subr.mxu0 0.0
    %703 = vmatpush1.msra.mxu0 0.0
    %704 = vmatprep.subr.mxu0 0.0
    %705 = vmatpush1.msra.mxu0 0.0
    %706 = vmatprep.subr.mxu0 0.0
    %707 = vmatpush1.msra.mxu0 0.0
    %708 = vmatprep.subr.mxu0 0.0
    %709 = vmatpush1.msra.mxu0 0.0
    %710 = vmatprep.subr.mxu0 0.0
    %711 = vmatpush1.msra.mxu0 0.0
    %712 = vmatprep.subr.mxu0 0.0
    %713 = vmatpush1.msra.mxu0 0.0
    %714 = vmatprep.subr.mxu0 0.0
    %715 = vmatpush1.msra.mxu0 0.0
    %716 = vmatprep.subr.mxu0 0.0
    %717 = vmatpush1.msra.mxu0 0.0
    %718 = vmatprep.subr.mxu0 0.0
    %719 = vmatpush1.msra.mxu0 0.0
    %720 = vmatprep.subr.mxu0 0.0
    %721 = vmatpush1.msra.mxu0 0.0
    %722 = vmatprep.subr.mxu0 0.0
    %723 = vmatpush1.msra.mxu0 0.0
    %724 = vmatprep.mubr.f32.mxu0 0.0
    %725 = vmatmul.mubr.f32.gmra.mrb[0].mxu0 %v98
    %v726 = vpop.f32.mrb[0].mxu0
    %v727 = vadd.f32 %v224, %v726
    %v728 = vpop.f32.mrb[0].mxu0
    %729 = vmatprep.mubr.f32.mxu0 0.0
    %730 = vmatmul.mubr.f32.gmra.mrb[0].mxu0 %v99
    %v731 = vpop.f32.mrb[0].mxu0
    %v732 = vadd.f32 %v224, %v731
    %v733 = vpop.f32.mrb[0].mxu0
    %734 = vmatprep.mubr.f32.mxu0 0.0
    %735 = vmatmul.mubr.f32.gmra.mrb[0].mxu0 %v100
    %v736 = vpop.f32.mrb[0].mxu0
    %v737 = vadd.f32 %v224, %v736
    %v738 = vpop.f32.mrb[0].mxu0
    %739 = vmatprep.mubr.f32.mxu0 0.0
    %740 = vmatmul.mubr.f32.gmra.mrb[0].mxu0 %v101
    %v741 = vpop.f32.mrb[0].mxu0
    %v742 = vadd.f32 %v224, %v741
    %v743 = vpop.f32.mrb[0].mxu0
    %744 = vmatprep.mubr.f32.mxu0 0.0
    %745 = vmatmul.mubr.f32.gmra.mrb[0].mxu0 %v102
    %v746 = vpop.f32.mrb[0].mxu0
    %v747 = vadd.f32 %v224, %v746
    %v748 = vpop.f32.mrb[0].mxu0
    %749 = vmatprep.mubr.f32.mxu0 0.0
    %750 = vmatmul.mubr.f32.gmra.mrb[0].mxu0 %v103
    %v751 = vpop.f32.mrb[0].mxu0
    %v752 = vadd.f32 %v224, %v751
    %v753 = vpop.f32.mrb[0].mxu0
    %754 = vmatprep.mubr.f32.mxu0 0.0
    %755 = vmatmul.mubr.f32.gmra.mrb[0].mxu0 %v104
    %v756 = vpop.f32.mrb[0].mxu0
    %v757 = vadd.f32 %v224, %v756
    %v758 = vpop.f32.mrb[0].mxu0
    %759 = vmatprep.mubr.f32.mxu0 0.0
    %760 = vmatmul.mubr.f32.gmra.mrb[0].mxu0 %v105
    %v761 = vpop.f32.mrb[0].mxu0
    %v762 = vadd.f32 %v224, %v761
    %v763 = vpop.f32.mrb[0].mxu0
    %764 = vmatprep.mubr.f32.mxu0 0.0
    %765 = vmatmul.mubr.f32.gmra.mrb[0].mxu0 %v106
    %v766 = vpop.f32.mrb[0].mxu0
    %v767 = vadd.f32 %v224, %v766
    %v768 = vpop.f32.mrb[0].mxu0
    %769 = vmatprep.mubr.f32.mxu0 0.0
    %770 = vmatmul.mubr.f32.gmra.mrb[0].mxu0 %v107
    %v771 = vpop.f32.mrb[0].mxu0
    %v772 = vadd.f32 %v224, %v771
    %v773 = vpop.f32.mrb[0].mxu0
    %774 = vmatprep.mubr.f32.mxu0 0.0
    %775 = vmatmul.mubr.f32.gmra.mrb[0].mxu0 %v108
    %v776 = vpop.f32.mrb[0].mxu0
    %v777 = vadd.f32 %v224, %v776
    %v778 = vpop.f32.mrb[0].mxu0
    %779 = vmatprep.mubr.f32.mxu0 0.0
    %780 = vmatmul.mubr.f32.gmra.mrb[0].mxu0 %v109
    %v781 = vpop.f32.mrb[0].mxu0
    %v782 = vadd.f32 %v224, %v781
    %v783 = vpop.f32.mrb[0].mxu0
    %784 = vmatprep.mubr.f32.mxu0 0.0
    %785 = vmatmul.mubr.f32.gmra.mrb[0].mxu0 %v110
    %v786 = vpop.f32.mrb[0].mxu0
    %v787 = vadd.f32 %v224, %v786
    %v788 = vpop.f32.mrb[0].mxu0
    %789 = vmatprep.mubr.f32.mxu0 0.0
    %790 = vmatmul.mubr.f32.gmra.mrb[0].mxu0 %v111
    %v791 = vpop.f32.mrb[0].mxu0
    %v792 = vadd.f32 %v224, %v791
    %v793 = vpop.f32.mrb[0].mxu0
    %794 = vmatprep.mubr.f32.mxu0 0.0
    %795 = vmatmul.mubr.f32.gmra.mrb[0].mxu0 %v112
    %v796 = vpop.f32.mrb[0].mxu0
    %v797 = vadd.f32 %v224, %v796
    %v798 = vpop.f32.mrb[0].mxu0
    %799 = vmatprep.mubr.f32.mxu0 0.0
    %800 = vmatmul.mubr.f32.gmra.mrb[0].mxu0 %v113
    %v801 = vpop.f32.mrb[0].mxu0
    %v802 = vadd.f32 %v224, %v801
    %v803 = vpop.f32.mrb[0].mxu0
    %804 = vmatprep.mubr.f32.mxu0 0.0
    %805 = vmatmul.mubr.f32.gmra.mrb[0].mxu0 %v114
    %v806 = vpop.f32.mrb[0].mxu0
    %v807 = vadd.f32 %v224, %v806
    %v808 = vpop.f32.mrb[0].mxu0
    %809 = vmatprep.mubr.f32.mxu0 0.0
    %810 = vmatmul.mubr.f32.gmra.mrb[0].mxu0 %v115
    %v811 = vpop.f32.mrb[0].mxu0
    %v812 = vadd.f32 %v224, %v811
    %v813 = vpop.f32.mrb[0].mxu0
    %814 = vmatprep.mubr.f32.mxu0 0.0
    %815 = vmatmul.mubr.f32.gmra.mrb[0].mxu0 %v116
    %v816 = vpop.f32.mrb[0].mxu0
    %v817 = vadd.f32 %v224, %v816
    %v818 = vpop.f32.mrb[0].mxu0
    %819 = vmatprep.mubr.f32.mxu0 0.0
    %820 = vmatmul.mubr.f32.gmra.mrb[0].mxu0 %v117
    %v821 = vpop.f32.mrb[0].mxu0
    %v822 = vadd.f32 %v224, %v821
    %v823 = vpop.f32.mrb[0].mxu0
    %824 = vmatprep.mubr.f32.mxu0 0.0
    %825 = vmatmul.mubr.f32.gmra.mrb[0].mxu0 %v118
    %v826 = vpop.f32.mrb[0].mxu0
    %v827 = vadd.f32 %v224, %v826
    %v828 = vpop.f32.mrb[0].mxu0
    %829 = vmatprep.mubr.f32.mxu0 0.0
    %830 = vmatmul.mubr.f32.gmra.mrb[0].mxu0 %v119
    %v831 = vpop.f32.mrb[0].mxu0
    %v832 = vadd.f32 %v224, %v831
    %v833 = vpop.f32.mrb[0].mxu0
    %834 = vmatprep.mubr.f32.mxu0 0.0
    %835 = vmatmul.mubr.f32.gmra.mrb[0].mxu0 %v120
    %v836 = vpop.f32.mrb[0].mxu0
    %v837 = vadd.f32 %v224, %v836
    %v838 = vpop.f32.mrb[0].mxu0
    %839 = vmatprep.mubr.f32.mxu0 0.0
    %840 = vmatmul.mubr.f32.gmra.mrb[0].mxu0 %v121
    %v841 = vpop.f32.mrb[0].mxu0
    %v842 = vadd.f32 %v224, %v841
    %v843 = vpop.f32.mrb[0].mxu0
    %844 = vmatprep.mubr.f32.mxu0 0.0
    %845 = vmatmul.mubr.f32.gmra.mrb[0].mxu0 %v122
    %v846 = vpop.f32.mrb[0].mxu0
    %v847 = vadd.f32 %v224, %v846
    %v848 = vpop.f32.mrb[0].mxu0
    %849 = vdwg.mxu0
    %v850 = vmul.f32 %v297, %v297
    %v851 = vmul.f32 %v303, %v303
    %v852 = vmul.f32 %v309, %v309
    %v853 = vmul.f32 %v315, %v315
    %v854 = vmul.f32 %v321, %v321
    %v855 = vmul.f32 %v327, %v327
    %v856 = vmul.f32 %v333, %v333
    %v857 = vmul.f32 %v339, %v339
    %v858 = vmul.f32 %v345, %v345
    %v859 = vmul.f32 %v351, %v351
    %v860 = vmul.f32 %v357, %v357
    %v861 = vmul.f32 %v363, %v363
    %v862 = vmul.f32 %v369, %v369
    %v863 = vmul.f32 %v375, %v375
    %v864 = vmul.f32 %v381, %v381
    %v865 = vmul.f32 %v387, %v387
    %v866 = vmul.f32 %v393, %v393
    %v867 = vmul.f32 %v399, %v399
    %v868 = vmul.f32 %v405, %v405
    %v869 = vmul.f32 %v411, %v411
    %v870 = vmul.f32 %v417, %v417
    %v871 = vmul.f32 %v423, %v423
    %v872 = vmul.f32 %v429, %v429
    %v873 = vmul.f32 %v435, %v435
    %v874 = vmul.f32 %v441, %v441
    %875 = vadd.xlane.f32.xlu0 %v850
    %v876 = vpop.xlane.xlu0 %875
    %877 = vadd.xlane.f32.xlu0 %v851
    %v878 = vpop.xlane.xlu0 %877
    %879 = vadd.xlane.f32.xlu0 %v852
    %v880 = vpop.xlane.xlu0 %879
    %881 = vadd.xlane.f32.xlu0 %v853
    %v882 = vpop.xlane.xlu0 %881
    %883 = vadd.xlane.f32.xlu0 %v854
    %v884 = vpop.xlane.xlu0 %883
    %885 = vadd.xlane.f32.xlu0 %v855
    %v886 = vpop.xlane.xlu0 %885
    %887 = vadd.xlane.f32.xlu0 %v856
    %v888 = vpop.xlane.xlu0 %887
    %889 = vadd.xlane.f32.xlu0 %v857
    %v890 = vpop.xlane.xlu0 %889
    %891 = vadd.xlane.f32.xlu0 %v858
    %v892 = vpop.xlane.xlu0 %891
    %893 = vadd.xlane.f32.xlu0 %v859
    %v894 = vpop.xlane.xlu0 %893
    %895 = vadd.xlane.f32.xlu0 %v860
    %v896 = vpop.xlane.xlu0 %895
    %897 = vadd.xlane.f32.xlu0 %v861
    %v898 = vpop.xlane.xlu0 %897
    %899 = vadd.xlane.f32.xlu0 %v862
    %v900 = vpop.xlane.xlu0 %899
    %901 = vadd.xlane.f32.xlu0 %v863
    %v902 = vpop.xlane.xlu0 %901
    %903 = vadd.xlane.f32.xlu0 %v864
    %v904 = vpop.xlane.xlu0 %903
    %905 = vadd.xlane.f32.xlu0 %v865
    %v906 = vpop.xlane.xlu0 %905
    %907 = vadd.xlane.f32.xlu0 %v866
    %v908 = vpop.xlane.xlu0 %907
    %909 = vadd.xlane.f32.xlu0 %v867
    %v910 = vpop.xlane.xlu0 %909
    %911 = vadd.xlane.f32.xlu0 %v868
    %v912 = vpop.xlane.xlu0 %911
    %913 = vadd.xlane.f32.xlu0 %v869
    %v914 = vpop.xlane.xlu0 %913
    %915 = vadd.xlane.f32.xlu0 %v870
    %v916 = vpop.xlane.xlu0 %915
    %917 = vadd.xlane.f32.xlu0 %v871
    %v918 = vpop.xlane.xlu0 %917
    %919 = vadd.xlane.f32.xlu0 %v872
    %v920 = vpop.xlane.xlu0 %919
    %921 = vadd.xlane.f32.xlu0 %v873
    %v922 = vpop.xlane.xlu0 %921
    %923 = vadd.xlane.f32.xlu0 %v874
    %v924 = vpop.xlane.xlu0 %923
    %v925 = vmax.f32 %v876, 1e-24
    %v926 = vmax.f32 %v878, 1e-24
    %v927 = vmax.f32 %v880, 1e-24
    %v928 = vmax.f32 %v882, 1e-24
    %v929 = vmax.f32 %v884, 1e-24
    %v930 = vmax.f32 %v886, 1e-24
    %v931 = vmax.f32 %v888, 1e-24
    %v932 = vmax.f32 %v890, 1e-24
    %v933 = vmax.f32 %v892, 1e-24
    %v934 = vmax.f32 %v894, 1e-24
    %v935 = vmax.f32 %v896, 1e-24
    %v936 = vmax.f32 %v898, 1e-24
    %v937 = vmax.f32 %v900, 1e-24
    %v938 = vmax.f32 %v902, 1e-24
    %v939 = vmax.f32 %v904, 1e-24
    %v940 = vmax.f32 %v906, 1e-24
    %v941 = vmax.f32 %v908, 1e-24
    %v942 = vmax.f32 %v910, 1e-24
    %v943 = vmax.f32 %v912, 1e-24
    %v944 = vmax.f32 %v914, 1e-24
    %v945 = vmax.f32 %v916, 1e-24
    %v946 = vmax.f32 %v918, 1e-24
    %v947 = vmax.f32 %v920, 1e-24
    %v948 = vmax.f32 %v922, 1e-24
    %v949 = vmax.f32 %v924, 1e-24
    %v950 = vrsqrt.pop %v925
    %v951 = vrsqrt.pop %v926
    %v952 = vrsqrt.pop %v927
    %v953 = vrsqrt.pop %v928
    %v954 = vrsqrt.pop %v929
    %v955 = vrsqrt.pop %v930
    %v956 = vrsqrt.pop %v931
    %v957 = vrsqrt.pop %v932
    %v958 = vrsqrt.pop %v933
    %v959 = vrsqrt.pop %v934
    %v960 = vrsqrt.pop %v935
    %v961 = vrsqrt.pop %v936
    %v962 = vrsqrt.pop %v937
    %v963 = vrsqrt.pop %v938
    %v964 = vrsqrt.pop %v939
    %v965 = vrsqrt.pop %v940
    %v966 = vrsqrt.pop %v941
    %v967 = vrsqrt.pop %v942
    %v968 = vrsqrt.pop %v943
    %v969 = vrsqrt.pop %v944
    %v970 = vrsqrt.pop %v945
    %v971 = vrsqrt.pop %v946
    %v972 = vrsqrt.pop %v947
    %v973 = vrsqrt.pop %v948
    %v974 = vrsqrt.pop %v949
    %v975 = vmul.f32 %v297, %v950
    %v976 = vmul.f32 %v303, %v951
    %v977 = vmul.f32 %v309, %v952
    %v978 = vmul.f32 %v315, %v953
    %v979 = vmul.f32 %v321, %v954
    %v980 = vmul.f32 %v327, %v955
    %v981 = vmul.f32 %v333, %v956
    %v982 = vmul.f32 %v339, %v957
    %v983 = vmul.f32 %v345, %v958
    %v984 = vmul.f32 %v351, %v959
    %v985 = vmul.f32 %v357, %v960
    %v986 = vmul.f32 %v363, %v961
    %v987 = vmul.f32 %v369, %v962
    %v988 = vmul.f32 %v375, %v963
    %v989 = vmul.f32 %v381, %v964
    %v990 = vmul.f32 %v387, %v965
    %v991 = vmul.f32 %v393, %v966
    %v992 = vmul.f32 %v399, %v967
    %v993 = vmul.f32 %v405, %v968
    %v994 = vmul.f32 %v411, %v969
    %v995 = vmul.f32 %v417, %v970
    %v996 = vmul.f32 %v423, %v971
    %v997 = vmul.f32 %v429, %v972
    %v998 = vmul.f32 %v435, %v973
    %v999 = vmul.f32 %v441, %v974
    %v1000 = vtanh.pop %v975
    %v1001 = vtanh.pop %v976
    %v1002 = vtanh.pop %v977
    %v1003 = vtanh.pop %v978
    %v1004 = vtanh.pop %v979
    %v1005 = vtanh.pop %v980
    %v1006 = vtanh.pop %v981
    %v1007 = vtanh.pop %v982
    %v1008 = vtanh.pop %v983
    %v1009 = vtanh.pop %v984
    %v1010 = vtanh.pop %v985
    %v1011 = vtanh.pop %v986
    %v1012 = vtanh.pop %v987
    %v1013 = vtanh.pop %v988
    %v1014 = vtanh.pop %v989
    %v1015 = vtanh.pop %v990
    %v1016 = vtanh.pop %v991
    %v1017 = vtanh.pop %v992
    %v1018 = vtanh.pop %v993
    %v1019 = vtanh.pop %v994
    %v1020 = vtanh.pop %v995
    %v1021 = vtanh.pop %v996
    %v1022 = vtanh.pop %v997
    %v1023 = vtanh.pop %v998
    %v1024 = vtanh.pop %v999
    %v1025 = vmul.f32 %v299, %v299
    %v1026 = vmul.f32 %v305, %v305
    %v1027 = vmul.f32 %v311, %v311
    %v1028 = vmul.f32 %v317, %v317
    %v1029 = vmul.f32 %v323, %v323
    %v1030 = vmul.f32 %v329, %v329
    %v1031 = vmul.f32 %v335, %v335
    %v1032 = vmul.f32 %v341, %v341
    %v1033 = vmul.f32 %v347, %v347
    %v1034 = vmul.f32 %v353, %v353
    %v1035 = vmul.f32 %v359, %v359
    %v1036 = vmul.f32 %v365, %v365
    %v1037 = vmul.f32 %v371, %v371
    %v1038 = vmul.f32 %v377, %v377
    %v1039 = vmul.f32 %v383, %v383
    %v1040 = vmul.f32 %v389, %v389
    %v1041 = vmul.f32 %v395, %v395
    %v1042 = vmul.f32 %v401, %v401
    %v1043 = vmul.f32 %v407, %v407
    %v1044 = vmul.f32 %v413, %v413
    %v1045 = vmul.f32 %v419, %v419
    %v1046 = vmul.f32 %v425, %v425
    %v1047 = vmul.f32 %v431, %v431
    %v1048 = vmul.f32 %v437, %v437
    %v1049 = vmul.f32 %v443, %v443
    %1050 = vadd.xlane.f32.xlu0 %v1025
    %v1051 = vpop.xlane.xlu0 %1050
    %1052 = vadd.xlane.f32.xlu0 %v1026
    %v1053 = vpop.xlane.xlu0 %1052
    %1054 = vadd.xlane.f32.xlu0 %v1027
    %v1055 = vpop.xlane.xlu0 %1054
    %1056 = vadd.xlane.f32.xlu0 %v1028
    %v1057 = vpop.xlane.xlu0 %1056
    %1058 = vadd.xlane.f32.xlu0 %v1029
    %v1059 = vpop.xlane.xlu0 %1058
    %1060 = vadd.xlane.f32.xlu0 %v1030
    %v1061 = vpop.xlane.xlu0 %1060
    %1062 = vadd.xlane.f32.xlu0 %v1031
    %v1063 = vpop.xlane.xlu0 %1062
    %1064 = vadd.xlane.f32.xlu0 %v1032
    %v1065 = vpop.xlane.xlu0 %1064
    %1066 = vadd.xlane.f32.xlu0 %v1033
    %v1067 = vpop.xlane.xlu0 %1066
    %1068 = vadd.xlane.f32.xlu0 %v1034
    %v1069 = vpop.xlane.xlu0 %1068
    %1070 = vadd.xlane.f32.xlu0 %v1035
    %v1071 = vpop.xlane.xlu0 %1070
    %1072 = vadd.xlane.f32.xlu0 %v1036
    %v1073 = vpop.xlane.xlu0 %1072
    %1074 = vadd.xlane.f32.xlu0 %v1037
    %v1075 = vpop.xlane.xlu0 %1074
    %1076 = vadd.xlane.f32.xlu0 %v1038
    %v1077 = vpop.xlane.xlu0 %1076
    %1078 = vadd.xlane.f32.xlu0 %v1039
    %v1079 = vpop.xlane.xlu0 %1078
    %1080 = vadd.xlane.f32.xlu0 %v1040
    %v1081 = vpop.xlane.xlu0 %1080
    %1082 = vadd.xlane.f32.xlu0 %v1041
    %v1083 = vpop.xlane.xlu0 %1082
    %1084 = vadd.xlane.f32.xlu0 %v1042
    %v1085 = vpop.xlane.xlu0 %1084
    %1086 = vadd.xlane.f32.xlu0 %v1043
    %v1087 = vpop.xlane.xlu0 %1086
    %1088 = vadd.xlane.f32.xlu0 %v1044
    %v1089 = vpop.xlane.xlu0 %1088
    %1090 = vadd.xlane.f32.xlu0 %v1045
    %v1091 = vpop.xlane.xlu0 %1090
    %1092 = vadd.xlane.f32.xlu0 %v1046
    %v1093 = vpop.xlane.xlu0 %1092
    %1094 = vadd.xlane.f32.xlu0 %v1047
    %v1095 = vpop.xlane.xlu0 %1094
    %1096 = vadd.xlane.f32.xlu0 %v1048
    %v1097 = vpop.xlane.xlu0 %1096
    %1098 = vadd.xlane.f32.xlu0 %v1049
    %v1099 = vpop.xlane.xlu0 %1098
    %v1100 = vmax.f32 %v1051, 1e-24
    %v1101 = vmax.f32 %v1053, 1e-24
    %v1102 = vmax.f32 %v1055, 1e-24
    %v1103 = vmax.f32 %v1057, 1e-24
    %v1104 = vmax.f32 %v1059, 1e-24
    %v1105 = vmax.f32 %v1061, 1e-24
    %v1106 = vmax.f32 %v1063, 1e-24
    %v1107 = vmax.f32 %v1065, 1e-24
    %v1108 = vmax.f32 %v1067, 1e-24
    %v1109 = vmax.f32 %v1069, 1e-24
    %v1110 = vmax.f32 %v1071, 1e-24
    %v1111 = vmax.f32 %v1073, 1e-24
    %v1112 = vmax.f32 %v1075, 1e-24
    %v1113 = vmax.f32 %v1077, 1e-24
    %v1114 = vmax.f32 %v1079, 1e-24
    %v1115 = vmax.f32 %v1081, 1e-24
    %v1116 = vmax.f32 %v1083, 1e-24
    %v1117 = vmax.f32 %v1085, 1e-24
    %v1118 = vmax.f32 %v1087, 1e-24
    %v1119 = vmax.f32 %v1089, 1e-24
    %v1120 = vmax.f32 %v1091, 1e-24
    %v1121 = vmax.f32 %v1093, 1e-24
    %v1122 = vmax.f32 %v1095, 1e-24
    %v1123 = vmax.f32 %v1097, 1e-24
    %v1124 = vmax.f32 %v1099, 1e-24
    %v1125 = vrsqrt.pop %v1100
    %v1126 = vrsqrt.pop %v1101
    %v1127 = vrsqrt.pop %v1102
    %v1128 = vrsqrt.pop %v1103
    %v1129 = vrsqrt.pop %v1104
    %v1130 = vrsqrt.pop %v1105
    %v1131 = vrsqrt.pop %v1106
    %v1132 = vrsqrt.pop %v1107
    %v1133 = vrsqrt.pop %v1108
    %v1134 = vrsqrt.pop %v1109
    %v1135 = vrsqrt.pop %v1110
    %v1136 = vrsqrt.pop %v1111
    %v1137 = vrsqrt.pop %v1112
    %v1138 = vrsqrt.pop %v1113
    %v1139 = vrsqrt.pop %v1114
    %v1140 = vrsqrt.pop %v1115
    %v1141 = vrsqrt.pop %v1116
    %v1142 = vrsqrt.pop %v1117
    %v1143 = vrsqrt.pop %v1118
    %v1144 = vrsqrt.pop %v1119
    %v1145 = vrsqrt.pop %v1120
    %v1146 = vrsqrt.pop %v1121
    %v1147 = vrsqrt.pop %v1122
    %v1148 = vrsqrt.pop %v1123
    %v1149 = vrsqrt.pop %v1124
    %v1150 = vmul.f32 %v299, %v1125
    %v1151 = vmul.f32 %v305, %v1126
    %v1152 = vmul.f32 %v311, %v1127
    %v1153 = vmul.f32 %v317, %v1128
    %v1154 = vmul.f32 %v323, %v1129
    %v1155 = vmul.f32 %v329, %v1130
    %v1156 = vmul.f32 %v335, %v1131
    %v1157 = vmul.f32 %v341, %v1132
    %v1158 = vmul.f32 %v347, %v1133
    %v1159 = vmul.f32 %v353, %v1134
    %v1160 = vmul.f32 %v359, %v1135
    %v1161 = vmul.f32 %v365, %v1136
    %v1162 = vmul.f32 %v371, %v1137
    %v1163 = vmul.f32 %v377, %v1138
    %v1164 = vmul.f32 %v383, %v1139
    %v1165 = vmul.f32 %v389, %v1140
    %v1166 = vmul.f32 %v395, %v1141
    %v1167 = vmul.f32 %v401, %v1142
    %v1168 = vmul.f32 %v407, %v1143
    %v1169 = vmul.f32 %v413, %v1144
    %v1170 = vmul.f32 %v419, %v1145
    %v1171 = vmul.f32 %v425, %v1146
    %v1172 = vmul.f32 %v431, %v1147
    %v1173 = vmul.f32 %v437, %v1148
    %v1174 = vmul.f32 %v443, %v1149
    %v1175 = vtanh.pop %v1150
    %v1176 = vtanh.pop %v1151
    %v1177 = vtanh.pop %v1152
    %v1178 = vtanh.pop %v1153
    %v1179 = vtanh.pop %v1154
    %v1180 = vtanh.pop %v1155
    %v1181 = vtanh.pop %v1156
    %v1182 = vtanh.pop %v1157
    %v1183 = vtanh.pop %v1158
    %v1184 = vtanh.pop %v1159
    %v1185 = vtanh.pop %v1160
    %v1186 = vtanh.pop %v1161
    %v1187 = vtanh.pop %v1162
    %v1188 = vtanh.pop %v1163
    %v1189 = vtanh.pop %v1164
    %v1190 = vtanh.pop %v1165
    %v1191 = vtanh.pop %v1166
    %v1192 = vtanh.pop %v1167
    %v1193 = vtanh.pop %v1168
    %v1194 = vtanh.pop %v1169
    %v1195 = vtanh.pop %v1170
    %v1196 = vtanh.pop %v1171
    %v1197 = vtanh.pop %v1172
    %v1198 = vtanh.pop %v1173
    %v1199 = vtanh.pop %v1174
    %v1200 = vmul.f32 %v512, %v512
    %v1201 = vmul.f32 %v518, %v518
    %v1202 = vmul.f32 %v524, %v524
    %v1203 = vmul.f32 %v530, %v530
    %v1204 = vmul.f32 %v536, %v536
    %v1205 = vmul.f32 %v542, %v542
    %v1206 = vmul.f32 %v548, %v548
    %v1207 = vmul.f32 %v554, %v554
    %v1208 = vmul.f32 %v560, %v560
    %v1209 = vmul.f32 %v566, %v566
    %v1210 = vmul.f32 %v572, %v572
    %v1211 = vmul.f32 %v578, %v578
    %v1212 = vmul.f32 %v584, %v584
    %v1213 = vmul.f32 %v590, %v590
    %v1214 = vmul.f32 %v596, %v596
    %v1215 = vmul.f32 %v602, %v602
    %v1216 = vmul.f32 %v608, %v608
    %v1217 = vmul.f32 %v614, %v614
    %v1218 = vmul.f32 %v620, %v620
    %v1219 = vmul.f32 %v626, %v626
    %v1220 = vmul.f32 %v632, %v632
    %v1221 = vmul.f32 %v638, %v638
    %v1222 = vmul.f32 %v644, %v644
    %v1223 = vmul.f32 %v650, %v650
    %v1224 = vmul.f32 %v656, %v656
    %1225 = vadd.xlane.f32.xlu0 %v1200
    %v1226 = vpop.xlane.xlu0 %1225
    %1227 = vadd.xlane.f32.xlu0 %v1201
    %v1228 = vpop.xlane.xlu0 %1227
    %1229 = vadd.xlane.f32.xlu0 %v1202
    %v1230 = vpop.xlane.xlu0 %1229
    %1231 = vadd.xlane.f32.xlu0 %v1203
    %v1232 = vpop.xlane.xlu0 %1231
    %1233 = vadd.xlane.f32.xlu0 %v1204
    %v1234 = vpop.xlane.xlu0 %1233
    %1235 = vadd.xlane.f32.xlu0 %v1205
    %v1236 = vpop.xlane.xlu0 %1235
    %1237 = vadd.xlane.f32.xlu0 %v1206
    %v1238 = vpop.xlane.xlu0 %1237
    %1239 = vadd.xlane.f32.xlu0 %v1207
    %v1240 = vpop.xlane.xlu0 %1239
    %1241 = vadd.xlane.f32.xlu0 %v1208
    %v1242 = vpop.xlane.xlu0 %1241
    %1243 = vadd.xlane.f32.xlu0 %v1209
    %v1244 = vpop.xlane.xlu0 %1243
    %1245 = vadd.xlane.f32.xlu0 %v1210
    %v1246 = vpop.xlane.xlu0 %1245
    %1247 = vadd.xlane.f32.xlu0 %v1211
    %v1248 = vpop.xlane.xlu0 %1247
    %1249 = vadd.xlane.f32.xlu0 %v1212
    %v1250 = vpop.xlane.xlu0 %1249
    %1251 = vadd.xlane.f32.xlu0 %v1213
    %v1252 = vpop.xlane.xlu0 %1251
    %1253 = vadd.xlane.f32.xlu0 %v1214
    %v1254 = vpop.xlane.xlu0 %1253
    %1255 = vadd.xlane.f32.xlu0 %v1215
    %v1256 = vpop.xlane.xlu0 %1255
    %1257 = vadd.xlane.f32.xlu0 %v1216
    %v1258 = vpop.xlane.xlu0 %1257
    %1259 = vadd.xlane.f32.xlu0 %v1217
    %v1260 = vpop.xlane.xlu0 %1259
    %1261 = vadd.xlane.f32.xlu0 %v1218
    %v1262 = vpop.xlane.xlu0 %1261
    %1263 = vadd.xlane.f32.xlu0 %v1219
    %v1264 = vpop.xlane.xlu0 %1263
    %1265 = vadd.xlane.f32.xlu0 %v1220
    %v1266 = vpop.xlane.xlu0 %1265
    %1267 = vadd.xlane.f32.xlu0 %v1221
    %v1268 = vpop.xlane.xlu0 %1267
    %1269 = vadd.xlane.f32.xlu0 %v1222
    %v1270 = vpop.xlane.xlu0 %1269
    %1271 = vadd.xlane.f32.xlu0 %v1223
    %v1272 = vpop.xlane.xlu0 %1271
    %1273 = vadd.xlane.f32.xlu0 %v1224
    %v1274 = vpop.xlane.xlu0 %1273
    %v1275 = vmax.f32 %v1226, 1e-24
    %v1276 = vmax.f32 %v1228, 1e-24
    %v1277 = vmax.f32 %v1230, 1e-24
    %v1278 = vmax.f32 %v1232, 1e-24
    %v1279 = vmax.f32 %v1234, 1e-24
    %v1280 = vmax.f32 %v1236, 1e-24
    %v1281 = vmax.f32 %v1238, 1e-24
    %v1282 = vmax.f32 %v1240, 1e-24
    %v1283 = vmax.f32 %v1242, 1e-24
    %v1284 = vmax.f32 %v1244, 1e-24
    %v1285 = vmax.f32 %v1246, 1e-24
    %v1286 = vmax.f32 %v1248, 1e-24
    %v1287 = vmax.f32 %v1250, 1e-24
    %v1288 = vmax.f32 %v1252, 1e-24
    %v1289 = vmax.f32 %v1254, 1e-24
    %v1290 = vmax.f32 %v1256, 1e-24
    %v1291 = vmax.f32 %v1258, 1e-24
    %v1292 = vmax.f32 %v1260, 1e-24
    %v1293 = vmax.f32 %v1262, 1e-24
    %v1294 = vmax.f32 %v1264, 1e-24
    %v1295 = vmax.f32 %v1266, 1e-24
    %v1296 = vmax.f32 %v1268, 1e-24
    %v1297 = vmax.f32 %v1270, 1e-24
    %v1298 = vmax.f32 %v1272, 1e-24
    %v1299 = vmax.f32 %v1274, 1e-24
    %v1300 = vrsqrt.pop %v1275
    %v1301 = vrsqrt.pop %v1276
    %v1302 = vrsqrt.pop %v1277
    %v1303 = vrsqrt.pop %v1278
    %v1304 = vrsqrt.pop %v1279
    %v1305 = vrsqrt.pop %v1280
    %v1306 = vrsqrt.pop %v1281
    %v1307 = vrsqrt.pop %v1282
    %v1308 = vrsqrt.pop %v1283
    %v1309 = vrsqrt.pop %v1284
    %v1310 = vrsqrt.pop %v1285
    %v1311 = vrsqrt.pop %v1286
    %v1312 = vrsqrt.pop %v1287
    %v1313 = vrsqrt.pop %v1288
    %v1314 = vrsqrt.pop %v1289
    %v1315 = vrsqrt.pop %v1290
    %v1316 = vrsqrt.pop %v1291
    %v1317 = vrsqrt.pop %v1292
    %v1318 = vrsqrt.pop %v1293
    %v1319 = vrsqrt.pop %v1294
    %v1320 = vrsqrt.pop %v1295
    %v1321 = vrsqrt.pop %v1296
    %v1322 = vrsqrt.pop %v1297
    %v1323 = vrsqrt.pop %v1298
    %v1324 = vrsqrt.pop %v1299
    %v1325 = vmul.f32 %v512, %v1300
    %v1326 = vmul.f32 %v518, %v1301
    %v1327 = vmul.f32 %v524, %v1302
    %v1328 = vmul.f32 %v530, %v1303
    %v1329 = vmul.f32 %v536, %v1304
    %v1330 = vmul.f32 %v542, %v1305
    %v1331 = vmul.f32 %v548, %v1306
    %v1332 = vmul.f32 %v554, %v1307
    %v1333 = vmul.f32 %v560, %v1308
    %v1334 = vmul.f32 %v566, %v1309
    %v1335 = vmul.f32 %v572, %v1310
    %v1336 = vmul.f32 %v578, %v1311
    %v1337 = vmul.f32 %v584, %v1312
    %v1338 = vmul.f32 %v590, %v1313
    %v1339 = vmul.f32 %v596, %v1314
    %v1340 = vmul.f32 %v602, %v1315
    %v1341 = vmul.f32 %v608, %v1316
    %v1342 = vmul.f32 %v614, %v1317
    %v1343 = vmul.f32 %v620, %v1318
    %v1344 = vmul.f32 %v626, %v1319
    %v1345 = vmul.f32 %v632, %v1320
    %v1346 = vmul.f32 %v638, %v1321
    %v1347 = vmul.f32 %v644, %v1322
    %v1348 = vmul.f32 %v650, %v1323
    %v1349 = vmul.f32 %v656, %v1324
    %v1350 = vtanh.pop %v1325
    %v1351 = vtanh.pop %v1326
    %v1352 = vtanh.pop %v1327
    %v1353 = vtanh.pop %v1328
    %v1354 = vtanh.pop %v1329
    %v1355 = vtanh.pop %v1330
    %v1356 = vtanh.pop %v1331
    %v1357 = vtanh.pop %v1332
    %v1358 = vtanh.pop %v1333
    %v1359 = vtanh.pop %v1334
    %v1360 = vtanh.pop %v1335
    %v1361 = vtanh.pop %v1336
    %v1362 = vtanh.pop %v1337
    %v1363 = vtanh.pop %v1338
    %v1364 = vtanh.pop %v1339
    %v1365 = vtanh.pop %v1340
    %v1366 = vtanh.pop %v1341
    %v1367 = vtanh.pop %v1342
    %v1368 = vtanh.pop %v1343
    %v1369 = vtanh.pop %v1344
    %v1370 = vtanh.pop %v1345
    %v1371 = vtanh.pop %v1346
    %v1372 = vtanh.pop %v1347
    %v1373 = vtanh.pop %v1348
    %v1374 = vtanh.pop %v1349
    %v1375 = vmul.f32 %v514, %v514
    %v1376 = vmul.f32 %v520, %v520
    %v1377 = vmul.f32 %v526, %v526
    %v1378 = vmul.f32 %v532, %v532
    %v1379 = vmul.f32 %v538, %v538
    %v1380 = vmul.f32 %v544, %v544
    %v1381 = vmul.f32 %v550, %v550
    %v1382 = vmul.f32 %v556, %v556
    %v1383 = vmul.f32 %v562, %v562
    %v1384 = vmul.f32 %v568, %v568
    %v1385 = vmul.f32 %v574, %v574
    %v1386 = vmul.f32 %v580, %v580
    %v1387 = vmul.f32 %v586, %v586
    %v1388 = vmul.f32 %v592, %v592
    %v1389 = vmul.f32 %v598, %v598
    %v1390 = vmul.f32 %v604, %v604
    %v1391 = vmul.f32 %v610, %v610
    %v1392 = vmul.f32 %v616, %v616
    %v1393 = vmul.f32 %v622, %v622
    %v1394 = vmul.f32 %v628, %v628
    %v1395 = vmul.f32 %v634, %v634
    %v1396 = vmul.f32 %v640, %v640
    %v1397 = vmul.f32 %v646, %v646
    %v1398 = vmul.f32 %v652, %v652
    %v1399 = vmul.f32 %v658, %v658
    %1400 = vadd.xlane.f32.xlu0 %v1375
    %v1401 = vpop.xlane.xlu0 %1400
    %1402 = vadd.xlane.f32.xlu0 %v1376
    %v1403 = vpop.xlane.xlu0 %1402
    %1404 = vadd.xlane.f32.xlu0 %v1377
    %v1405 = vpop.xlane.xlu0 %1404
    %1406 = vadd.xlane.f32.xlu0 %v1378
    %v1407 = vpop.xlane.xlu0 %1406
    %1408 = vadd.xlane.f32.xlu0 %v1379
    %v1409 = vpop.xlane.xlu0 %1408
    %1410 = vadd.xlane.f32.xlu0 %v1380
    %v1411 = vpop.xlane.xlu0 %1410
    %1412 = vadd.xlane.f32.xlu0 %v1381
    %v1413 = vpop.xlane.xlu0 %1412
    %1414 = vadd.xlane.f32.xlu0 %v1382
    %v1415 = vpop.xlane.xlu0 %1414
    %1416 = vadd.xlane.f32.xlu0 %v1383
    %v1417 = vpop.xlane.xlu0 %1416
    %1418 = vadd.xlane.f32.xlu0 %v1384
    %v1419 = vpop.xlane.xlu0 %1418
    %1420 = vadd.xlane.f32.xlu0 %v1385
    %v1421 = vpop.xlane.xlu0 %1420
    %1422 = vadd.xlane.f32.xlu0 %v1386
    %v1423 = vpop.xlane.xlu0 %1422
    %1424 = vadd.xlane.f32.xlu0 %v1387
    %v1425 = vpop.xlane.xlu0 %1424
    %1426 = vadd.xlane.f32.xlu0 %v1388
    %v1427 = vpop.xlane.xlu0 %1426
    %1428 = vadd.xlane.f32.xlu0 %v1389
    %v1429 = vpop.xlane.xlu0 %1428
    %1430 = vadd.xlane.f32.xlu0 %v1390
    %v1431 = vpop.xlane.xlu0 %1430
    %1432 = vadd.xlane.f32.xlu0 %v1391
    %v1433 = vpop.xlane.xlu0 %1432
    %1434 = vadd.xlane.f32.xlu0 %v1392
    %v1435 = vpop.xlane.xlu0 %1434
    %1436 = vadd.xlane.f32.xlu0 %v1393
    %v1437 = vpop.xlane.xlu0 %1436
    %1438 = vadd.xlane.f32.xlu0 %v1394
    %v1439 = vpop.xlane.xlu0 %1438
    %1440 = vadd.xlane.f32.xlu0 %v1395
    %v1441 = vpop.xlane.xlu0 %1440
    %1442 = vadd.xlane.f32.xlu0 %v1396
    %v1443 = vpop.xlane.xlu0 %1442
    %1444 = vadd.xlane.f32.xlu0 %v1397
    %v1445 = vpop.xlane.xlu0 %1444
    %1446 = vadd.xlane.f32.xlu0 %v1398
    %v1447 = vpop.xlane.xlu0 %1446
    %1448 = vadd.xlane.f32.xlu0 %v1399
    %v1449 = vpop.xlane.xlu0 %1448
    %v1450 = vmax.f32 %v1401, 1e-24
    %v1451 = vmax.f32 %v1403, 1e-24
    %v1452 = vmax.f32 %v1405, 1e-24
    %v1453 = vmax.f32 %v1407, 1e-24
    %v1454 = vmax.f32 %v1409, 1e-24
    %v1455 = vmax.f32 %v1411, 1e-24
    %v1456 = vmax.f32 %v1413, 1e-24
    %v1457 = vmax.f32 %v1415, 1e-24
    %v1458 = vmax.f32 %v1417, 1e-24
    %v1459 = vmax.f32 %v1419, 1e-24
    %v1460 = vmax.f32 %v1421, 1e-24
    %v1461 = vmax.f32 %v1423, 1e-24
    %v1462 = vmax.f32 %v1425, 1e-24
    %v1463 = vmax.f32 %v1427, 1e-24
    %v1464 = vmax.f32 %v1429, 1e-24
    %v1465 = vmax.f32 %v1431, 1e-24
    %v1466 = vmax.f32 %v1433, 1e-24
    %v1467 = vmax.f32 %v1435, 1e-24
    %v1468 = vmax.f32 %v1437, 1e-24
    %v1469 = vmax.f32 %v1439, 1e-24
    %v1470 = vmax.f32 %v1441, 1e-24
    %v1471 = vmax.f32 %v1443, 1e-24
    %v1472 = vmax.f32 %v1445, 1e-24
    %v1473 = vmax.f32 %v1447, 1e-24
    %v1474 = vmax.f32 %v1449, 1e-24
    %v1475 = vrsqrt.pop %v1450
    %v1476 = vrsqrt.pop %v1451
    %v1477 = vrsqrt.pop %v1452
    %v1478 = vrsqrt.pop %v1453
    %v1479 = vrsqrt.pop %v1454
    %v1480 = vrsqrt.pop %v1455
    %v1481 = vrsqrt.pop %v1456
    %v1482 = vrsqrt.pop %v1457
    %v1483 = vrsqrt.pop %v1458
    %v1484 = vrsqrt.pop %v1459
    %v1485 = vrsqrt.pop %v1460
    %v1486 = vrsqrt.pop %v1461
    %v1487 = vrsqrt.pop %v1462
    %v1488 = vrsqrt.pop %v1463
    %v1489 = vrsqrt.pop %v1464
    %v1490 = vrsqrt.pop %v1465
    %v1491 = vrsqrt.pop %v1466
    %v1492 = vrsqrt.pop %v1467
    %v1493 = vrsqrt.pop %v1468
    %v1494 = vrsqrt.pop %v1469
    %v1495 = vrsqrt.pop %v1470
    %v1496 = vrsqrt.pop %v1471
    %v1497 = vrsqrt.pop %v1472
    %v1498 = vrsqrt.pop %v1473
    %v1499 = vrsqrt.pop %v1474
    %v1500 = vmul.f32 %v514, %v1475
    %v1501 = vmul.f32 %v520, %v1476
    %v1502 = vmul.f32 %v526, %v1477
    %v1503 = vmul.f32 %v532, %v1478
    %v1504 = vmul.f32 %v538, %v1479
    %v1505 = vmul.f32 %v544, %v1480
    %v1506 = vmul.f32 %v550, %v1481
    %v1507 = vmul.f32 %v556, %v1482
    %v1508 = vmul.f32 %v562, %v1483
    %v1509 = vmul.f32 %v568, %v1484
    %v1510 = vmul.f32 %v574, %v1485
    %v1511 = vmul.f32 %v580, %v1486
    %v1512 = vmul.f32 %v586, %v1487
    %v1513 = vmul.f32 %v592, %v1488
    %v1514 = vmul.f32 %v598, %v1489
    %v1515 = vmul.f32 %v604, %v1490
    %v1516 = vmul.f32 %v610, %v1491
    %v1517 = vmul.f32 %v616, %v1492
    %v1518 = vmul.f32 %v622, %v1493
    %v1519 = vmul.f32 %v628, %v1494
    %v1520 = vmul.f32 %v634, %v1495
    %v1521 = vmul.f32 %v640, %v1496
    %v1522 = vmul.f32 %v646, %v1497
    %v1523 = vmul.f32 %v652, %v1498
    %v1524 = vmul.f32 %v658, %v1499
    %v1525 = vtanh.pop %v1500
    %v1526 = vtanh.pop %v1501
    %v1527 = vtanh.pop %v1502
    %v1528 = vtanh.pop %v1503
    %v1529 = vtanh.pop %v1504
    %v1530 = vtanh.pop %v1505
    %v1531 = vtanh.pop %v1506
    %v1532 = vtanh.pop %v1507
    %v1533 = vtanh.pop %v1508
    %v1534 = vtanh.pop %v1509
    %v1535 = vtanh.pop %v1510
    %v1536 = vtanh.pop %v1511
    %v1537 = vtanh.pop %v1512
    %v1538 = vtanh.pop %v1513
    %v1539 = vtanh.pop %v1514
    %v1540 = vtanh.pop %v1515
    %v1541 = vtanh.pop %v1516
    %v1542 = vtanh.pop %v1517
    %v1543 = vtanh.pop %v1518
    %v1544 = vtanh.pop %v1519
    %v1545 = vtanh.pop %v1520
    %v1546 = vtanh.pop %v1521
    %v1547 = vtanh.pop %v1522
    %v1548 = vtanh.pop %v1523
    %v1549 = vtanh.pop %v1524
    %v1550 = vmul.f32 %v727, %v727
    %v1551 = vmul.f32 %v732, %v732
    %v1552 = vmul.f32 %v737, %v737
    %v1553 = vmul.f32 %v742, %v742
    %v1554 = vmul.f32 %v747, %v747
    %v1555 = vmul.f32 %v752, %v752
    %v1556 = vmul.f32 %v757, %v757
    %v1557 = vmul.f32 %v762, %v762
    %v1558 = vmul.f32 %v767, %v767
    %v1559 = vmul.f32 %v772, %v772
    %v1560 = vmul.f32 %v777, %v777
    %v1561 = vmul.f32 %v782, %v782
    %v1562 = vmul.f32 %v787, %v787
    %v1563 = vmul.f32 %v792, %v792
    %v1564 = vmul.f32 %v797, %v797
    %v1565 = vmul.f32 %v802, %v802
    %v1566 = vmul.f32 %v807, %v807
    %v1567 = vmul.f32 %v812, %v812
    %v1568 = vmul.f32 %v817, %v817
    %v1569 = vmul.f32 %v822, %v822
    %v1570 = vmul.f32 %v827, %v827
    %v1571 = vmul.f32 %v832, %v832
    %v1572 = vmul.f32 %v837, %v837
    %v1573 = vmul.f32 %v842, %v842
    %v1574 = vmul.f32 %v847, %v847
    %1575 = vadd.xlane.f32.xlu0 %v1550
    %v1576 = vpop.xlane.xlu0 %1575
    %1577 = vadd.xlane.f32.xlu0 %v1551
    %v1578 = vpop.xlane.xlu0 %1577
    %1579 = vadd.xlane.f32.xlu0 %v1552
    %v1580 = vpop.xlane.xlu0 %1579
    %1581 = vadd.xlane.f32.xlu0 %v1553
    %v1582 = vpop.xlane.xlu0 %1581
    %1583 = vadd.xlane.f32.xlu0 %v1554
    %v1584 = vpop.xlane.xlu0 %1583
    %1585 = vadd.xlane.f32.xlu0 %v1555
    %v1586 = vpop.xlane.xlu0 %1585
    %1587 = vadd.xlane.f32.xlu0 %v1556
    %v1588 = vpop.xlane.xlu0 %1587
    %1589 = vadd.xlane.f32.xlu0 %v1557
    %v1590 = vpop.xlane.xlu0 %1589
    %1591 = vadd.xlane.f32.xlu0 %v1558
    %v1592 = vpop.xlane.xlu0 %1591
    %1593 = vadd.xlane.f32.xlu0 %v1559
    %v1594 = vpop.xlane.xlu0 %1593
    %1595 = vadd.xlane.f32.xlu0 %v1560
    %v1596 = vpop.xlane.xlu0 %1595
    %1597 = vadd.xlane.f32.xlu0 %v1561
    %v1598 = vpop.xlane.xlu0 %1597
    %1599 = vadd.xlane.f32.xlu0 %v1562
    %v1600 = vpop.xlane.xlu0 %1599
    %1601 = vadd.xlane.f32.xlu0 %v1563
    %v1602 = vpop.xlane.xlu0 %1601
    %1603 = vadd.xlane.f32.xlu0 %v1564
    %v1604 = vpop.xlane.xlu0 %1603
    %1605 = vadd.xlane.f32.xlu0 %v1565
    %v1606 = vpop.xlane.xlu0 %1605
    %1607 = vadd.xlane.f32.xlu0 %v1566
    %v1608 = vpop.xlane.xlu0 %1607
    %1609 = vadd.xlane.f32.xlu0 %v1567
    %v1610 = vpop.xlane.xlu0 %1609
    %1611 = vadd.xlane.f32.xlu0 %v1568
    %v1612 = vpop.xlane.xlu0 %1611
    %1613 = vadd.xlane.f32.xlu0 %v1569
    %v1614 = vpop.xlane.xlu0 %1613
    %1615 = vadd.xlane.f32.xlu0 %v1570
    %v1616 = vpop.xlane.xlu0 %1615
    %1617 = vadd.xlane.f32.xlu0 %v1571
    %v1618 = vpop.xlane.xlu0 %1617
    %1619 = vadd.xlane.f32.xlu0 %v1572
    %v1620 = vpop.xlane.xlu0 %1619
    %1621 = vadd.xlane.f32.xlu0 %v1573
    %v1622 = vpop.xlane.xlu0 %1621
    %1623 = vadd.xlane.f32.xlu0 %v1574
    %v1624 = vpop.xlane.xlu0 %1623
    %v1625 = vmax.f32 %v1576, 1e-24
    %v1626 = vmax.f32 %v1578, 1e-24
    %v1627 = vmax.f32 %v1580, 1e-24
    %v1628 = vmax.f32 %v1582, 1e-24
    %v1629 = vmax.f32 %v1584, 1e-24
    %v1630 = vmax.f32 %v1586, 1e-24
    %v1631 = vmax.f32 %v1588, 1e-24
    %v1632 = vmax.f32 %v1590, 1e-24
    %v1633 = vmax.f32 %v1592, 1e-24
    %v1634 = vmax.f32 %v1594, 1e-24
    %v1635 = vmax.f32 %v1596, 1e-24
    %v1636 = vmax.f32 %v1598, 1e-24
    %v1637 = vmax.f32 %v1600, 1e-24
    %v1638 = vmax.f32 %v1602, 1e-24
    %v1639 = vmax.f32 %v1604, 1e-24
    %v1640 = vmax.f32 %v1606, 1e-24
    %v1641 = vmax.f32 %v1608, 1e-24
    %v1642 = vmax.f32 %v1610, 1e-24
    %v1643 = vmax.f32 %v1612, 1e-24
    %v1644 = vmax.f32 %v1614, 1e-24
    %v1645 = vmax.f32 %v1616, 1e-24
    %v1646 = vmax.f32 %v1618, 1e-24
    %v1647 = vmax.f32 %v1620, 1e-24
    %v1648 = vmax.f32 %v1622, 1e-24
    %v1649 = vmax.f32 %v1624, 1e-24
    %v1650 = vrsqrt.pop %v1625
    %v1651 = vrsqrt.pop %v1626
    %v1652 = vrsqrt.pop %v1627
    %v1653 = vrsqrt.pop %v1628
    %v1654 = vrsqrt.pop %v1629
    %v1655 = vrsqrt.pop %v1630
    %v1656 = vrsqrt.pop %v1631
    %v1657 = vrsqrt.pop %v1632
    %v1658 = vrsqrt.pop %v1633
    %v1659 = vrsqrt.pop %v1634
    %v1660 = vrsqrt.pop %v1635
    %v1661 = vrsqrt.pop %v1636
    %v1662 = vrsqrt.pop %v1637
    %v1663 = vrsqrt.pop %v1638
    %v1664 = vrsqrt.pop %v1639
    %v1665 = vrsqrt.pop %v1640
    %v1666 = vrsqrt.pop %v1641
    %v1667 = vrsqrt.pop %v1642
    %v1668 = vrsqrt.pop %v1643
    %v1669 = vrsqrt.pop %v1644
    %v1670 = vrsqrt.pop %v1645
    %v1671 = vrsqrt.pop %v1646
    %v1672 = vrsqrt.pop %v1647
    %v1673 = vrsqrt.pop %v1648
    %v1674 = vrsqrt.pop %v1649
    %v1675 = vmul.f32 %v727, %v1650
    %v1676 = vmul.f32 %v732, %v1651
    %v1677 = vmul.f32 %v737, %v1652
    %v1678 = vmul.f32 %v742, %v1653
    %v1679 = vmul.f32 %v747, %v1654
    %v1680 = vmul.f32 %v752, %v1655
    %v1681 = vmul.f32 %v757, %v1656
    %v1682 = vmul.f32 %v762, %v1657
    %v1683 = vmul.f32 %v767, %v1658
    %v1684 = vmul.f32 %v772, %v1659
    %v1685 = vmul.f32 %v777, %v1660
    %v1686 = vmul.f32 %v782, %v1661
    %v1687 = vmul.f32 %v787, %v1662
    %v1688 = vmul.f32 %v792, %v1663
    %v1689 = vmul.f32 %v797, %v1664
    %v1690 = vmul.f32 %v802, %v1665
    %v1691 = vmul.f32 %v807, %v1666
    %v1692 = vmul.f32 %v812, %v1667
    %v1693 = vmul.f32 %v817, %v1668
    %v1694 = vmul.f32 %v822, %v1669
    %v1695 = vmul.f32 %v827, %v1670
    %v1696 = vmul.f32 %v832, %v1671
    %v1697 = vmul.f32 %v837, %v1672
    %v1698 = vmul.f32 %v842, %v1673
    %v1699 = vmul.f32 %v847, %v1674
    %v1700 = vtanh.pop %v1675
    %v1701 = vtanh.pop %v1676
    %v1702 = vtanh.pop %v1677
    %v1703 = vtanh.pop %v1678
    %v1704 = vtanh.pop %v1679
    %v1705 = vtanh.pop %v1680
    %v1706 = vtanh.pop %v1681
    %v1707 = vtanh.pop %v1682
    %v1708 = vtanh.pop %v1683
    %v1709 = vtanh.pop %v1684
    %v1710 = vtanh.pop %v1685
    %v1711 = vtanh.pop %v1686
    %v1712 = vtanh.pop %v1687
    %v1713 = vtanh.pop %v1688
    %v1714 = vtanh.pop %v1689
    %v1715 = vtanh.pop %v1690
    %v1716 = vtanh.pop %v1691
    %v1717 = vtanh.pop %v1692
    %v1718 = vtanh.pop %v1693
    %v1719 = vtanh.pop %v1694
    %v1720 = vtanh.pop %v1695
    %v1721 = vtanh.pop %v1696
    %v1722 = vtanh.pop %v1697
    %v1723 = vtanh.pop %v1698
    %v1724 = vtanh.pop %v1699
    %v1725 = vtanh.pop %v98
    %v1726 = vtanh.pop %v99
    %v1727 = vtanh.pop %v100
    %v1728 = vtanh.pop %v101
    %v1729 = vtanh.pop %v102
    %v1730 = vtanh.pop %v103
    %v1731 = vtanh.pop %v104
    %v1732 = vtanh.pop %v105
    %v1733 = vtanh.pop %v106
    %v1734 = vtanh.pop %v107
    %v1735 = vtanh.pop %v108
    %v1736 = vtanh.pop %v109
    %v1737 = vtanh.pop %v110
    %v1738 = vtanh.pop %v111
    %v1739 = vtanh.pop %v112
    %v1740 = vtanh.pop %v113
    %v1741 = vtanh.pop %v114
    %v1742 = vtanh.pop %v115
    %v1743 = vtanh.pop %v116
    %v1744 = vtanh.pop %v117
    %v1745 = vtanh.pop %v118
    %v1746 = vtanh.pop %v119
    %v1747 = vtanh.pop %v120
    %v1748 = vtanh.pop %v121
    %v1749 = vtanh.pop %v122
    %v1750 = vld [vmem:[#allocation7] sm:$0xff]
    %v1751 = vld [vmem:[#allocation7 + $0x8] sm:$0xff]
    %v1752 = vld [vmem:[#allocation7 + $0x10] sm:$0xff]
    %v1753 = vld [vmem:[#allocation7 + $0x18] sm:$0xff]
    %v1754 = vld [vmem:[#allocation7 + $0x20] sm:$0xff]
    %v1755 = vld [vmem:[#allocation7 + $0x28] sm:$0xff]
    %v1756 = vld [vmem:[#allocation7 + $0x30] sm:$0xff]
    %v1757 = vld [vmem:[#allocation7 + $0x38] sm:$0xff]
    %v1758 = vld [vmem:[#allocation7 + $0x40] sm:$0xff]
    %v1759 = vld [vmem:[#allocation7 + $0x48] sm:$0xff]
    %v1760 = vld [vmem:[#allocation7 + $0x50] sm:$0xff]
    %v1761 = vld [vmem:[#allocation7 + $0x58] sm:$0xff]
    %v1762 = vld [vmem:[#allocation7 + $0x60] sm:$0xff]
    %v1763 = vld [vmem:[#allocation7 + $0x68] sm:$0xff]
    %v1764 = vld [vmem:[#allocation7 + $0x70] sm:$0xff]
    %v1765 = vld [vmem:[#allocation7 + $0x78] sm:$0xff]
    %v1766 = vld [vmem:[#allocation7 + $0x80] sm:$0xff]
    %v1767 = vld [vmem:[#allocation7 + $0x88] sm:$0xff]
    %v1768 = vld [vmem:[#allocation7 + $0x90] sm:$0xff]
    %v1769 = vld [vmem:[#allocation7 + $0x98] sm:$0xff]
    %v1770 = vld [vmem:[#allocation7 + $0xa0] sm:$0xff]
    %v1771 = vld [vmem:[#allocation7 + $0xa8] sm:$0xff]
    %v1772 = vld [vmem:[#allocation7 + $0xb0] sm:$0xff]
    %v1773 = vld [vmem:[#allocation7 + $0xb8] sm:$0xff]
    %v1774 = vld [vmem:[#allocation7 + $0xc0] sm:$0xff]
    %v1775 = vld [vmem:[#allocation7 + $0xc8] sm:$0xff]
    %v1776 = vld [vmem:[#allocation7 + $0xd0] sm:$0xff]
    %v1777 = vld [vmem:[#allocation7 + $0xd8] sm:$0xff]
    %v1778 = vld [vmem:[#allocation7 + $0xe0] sm:$0xff]
    %v1779 = vld [vmem:[#allocation7 + $0xe8] sm:$0xff]
    %v1780 = vld [vmem:[#allocation7 + $0xf0] sm:$0xff]
    %v1781 = vld [vmem:[#allocation7 + $0xf8] sm:$0xff]
    %v1782 = vld [vmem:[#allocation7 + $0x100] sm:$0xff]
    %v1783 = vld [vmem:[#allocation7 + $0x108] sm:$0xff]
    %v1784 = vld [vmem:[#allocation7 + $0x110] sm:$0xff]
    %v1785 = vld [vmem:[#allocation7 + $0x118] sm:$0xff]
    %v1786 = vld [vmem:[#allocation7 + $0x120] sm:$0xff]
    %v1787 = vld [vmem:[#allocation7 + $0x128] sm:$0xff]
    %v1788 = vld [vmem:[#allocation7 + $0x130] sm:$0xff]
    %v1789 = vld [vmem:[#allocation7 + $0x138] sm:$0xff]
    %v1790 = vld [vmem:[#allocation7 + $0x140] sm:$0xff]
    %v1791 = vld [vmem:[#allocation7 + $0x148] sm:$0xff]
    %v1792 = vld [vmem:[#allocation7 + $0x150] sm:$0xff]
    %v1793 = vld [vmem:[#allocation7 + $0x158] sm:$0xff]
    %v1794 = vld [vmem:[#allocation7 + $0x160] sm:$0xff]
    %v1795 = vld [vmem:[#allocation7 + $0x168] sm:$0xff]
    %v1796 = vld [vmem:[#allocation7 + $0x170] sm:$0xff]
    %v1797 = vld [vmem:[#allocation7 + $0x178] sm:$0xff]
    %v1798 = vld [vmem:[#allocation7 + $0x180] sm:$0xff]
    %v1799 = vld [vmem:[#allocation7 + $0x188] sm:$0xff]
    %v1800 = vld [vmem:[#allocation7 + $0x190] sm:$0xff]
    %v1801 = vld [vmem:[#allocation7 + $0x198] sm:$0xff]
    %v1802 = vld [vmem:[#allocation7 + $0x1a0] sm:$0xff]
    %v1803 = vld [vmem:[#allocation7 + $0x1a8] sm:$0xff]
    %v1804 = vld [vmem:[#allocation7 + $0x1b0] sm:$0xff]
    %v1805 = vld [vmem:[#allocation7 + $0x1b8] sm:$0xff]
    %v1806 = vld [vmem:[#allocation7 + $0x1c0] sm:$0xff]
    %v1807 = vld [vmem:[#allocation7 + $0x1c8] sm:$0xff]
    %v1808 = vld [vmem:[#allocation7 + $0x1d0] sm:$0xff]
    %v1809 = vld [vmem:[#allocation7 + $0x1d8] sm:$0xff]
    %v1810 = vld [vmem:[#allocation7 + $0x1e0] sm:$0xff]
    %v1811 = vld [vmem:[#allocation7 + $0x1e8] sm:$0xff]
    %v1812 = vld [vmem:[#allocation7 + $0x1f0] sm:$0xff]
    %v1813 = vld [vmem:[#allocation7 + $0x1f8] sm:$0xff]
    %v1814 = vld [vmem:[#allocation7 + $0x200] sm:$0xff]
    %v1815 = vld [vmem:[#allocation7 + $0x208] sm:$0xff]
    %v1816 = vld [vmem:[#allocation7 + $0x210] sm:$0xff]
    %v1817 = vld [vmem:[#allocation7 + $0x218] sm:$0xff]
    %v1818 = vld [vmem:[#allocation7 + $0x220] sm:$0xff]
    %v1819 = vld [vmem:[#allocation7 + $0x228] sm:$0xff]
    %v1820 = vld [vmem:[#allocation7 + $0x230] sm:$0xff]
    %v1821 = vld [vmem:[#allocation7 + $0x238] sm:$0xff]
    %v1822 = vld [vmem:[#allocation7 + $0x240] sm:$0xff]
    %v1823 = vld [vmem:[#allocation7 + $0x248] sm:$0xff]
    %v1824 = vld [vmem:[#allocation7 + $0x250] sm:$0xff]
    %v1825 = vld [vmem:[#allocation7 + $0x258] sm:$0xff]
    %v1826 = vld [vmem:[#allocation7 + $0x260] sm:$0xff]
    %v1827 = vld [vmem:[#allocation7 + $0x268] sm:$0xff]
    %v1828 = vld [vmem:[#allocation7 + $0x270] sm:$0xff]
    %v1829 = vld [vmem:[#allocation7 + $0x278] sm:$0xff]
    %v1830 = vld [vmem:[#allocation8] sm:$0xff]
    %v1831 = vld [vmem:[#allocation8 + $0x8] sm:$0xff]
    %v1832 = vld [vmem:[#allocation8 + $0x10] sm:$0xff]
    %v1833 = vld [vmem:[#allocation8 + $0x18] sm:$0xff]
    %vm1834 = vcmask 261120
    %v1836 = vsel %vm1834, %v1725, 0
    %v1839 = vsel %vm1834, %v1726, 0
    %v1842 = vsel %vm1834, %v1727, 0
    %v1845 = vsel %vm1834, %v1728, 0
    %v1848 = vsel %vm1834, %v1729, 0
    %v1851 = vsel %vm1834, %v1730, 0
    %v1854 = vsel %vm1834, %v1731, 0
    %v1857 = vsel %vm1834, %v1732, 0
    %v1860 = vsel %vm1834, %v1733, 0
    %v1863 = vsel %vm1834, %v1734, 0
    %v1866 = vsel %vm1834, %v1735, 0
    %v1869 = vsel %vm1834, %v1736, 0
    %v1872 = vsel %vm1834, %v1737, 0
    %v1875 = vsel %vm1834, %v1738, 0
    %v1878 = vsel %vm1834, %v1739, 0
    %v1881 = vsel %vm1834, %v1740, 0
    %v1884 = vsel %vm1834, %v1741, 0
    %v1887 = vsel %vm1834, %v1742, 0
    %v1890 = vsel %vm1834, %v1743, 0
    %v1893 = vsel %vm1834, %v1744, 0
    %v1896 = vsel %vm1834, %v1745, 0
    %v1899 = vsel %vm1834, %v1746, 0
    %v1902 = vsel %vm1834, %v1747, 0
    %v1905 = vsel %vm1834, %v1748, 0
    %v1908 = vsel %vm1834, %v1749, 0
    %1910 = vmatprep.subr.mxu0 0.0
    %1911 = vmatpush1.msra.mxu0 %v1830
    %1912 = vmatprep.subr.mxu0 0.0
    %1913 = vmatpush1.msra.mxu0 %v1831
    %1914 = vmatprep.subr.mxu0 0.0
    %1915 = vmatpush1.msra.mxu0 %v1832
    %1916 = vmatprep.subr.mxu0 0.0
    %1917 = vmatpush1.msra.mxu0 %v1833
    %1918 = vmatprep.subr.mxu0 0.0
    %1919 = vmatpush1.msra.mxu0 0.0
    %1920 = vmatprep.subr.mxu0 0.0
    %1921 = vmatpush1.msra.mxu0 0.0
    %1922 = vmatprep.subr.mxu0 0.0
    %1923 = vmatpush1.msra.mxu0 0.0
    %1924 = vmatprep.subr.mxu0 0.0
    %1925 = vmatpush1.msra.mxu0 0.0
    %1926 = vmatprep.subr.mxu0 0.0
    %1927 = vmatpush1.msra.mxu0 0.0
    %1928 = vmatprep.subr.mxu0 0.0
    %1929 = vmatpush1.msra.mxu0 0.0
    %1930 = vmatprep.subr.mxu0 0.0
    %1931 = vmatpush1.msra.mxu0 0.0
    %1932 = vmatprep.subr.mxu0 0.0
    %1933 = vmatpush1.msra.mxu0 0.0
    %1934 = vmatprep.subr.mxu0 0.0
    %1935 = vmatpush1.msra.mxu0 0.0
    %1936 = vmatprep.subr.mxu0 0.0
    %1937 = vmatpush1.msra.mxu0 0.0
    %1938 = vmatprep.subr.mxu0 0.0
    %1939 = vmatpush1.msra.mxu0 0.0
    %1940 = vmatprep.subr.mxu0 0.0
    %1941 = vmatpush1.msra.mxu0 0.0
    %1942 = vmatprep.subr.mxu0 0.0
    %1943 = vmatpush1.msra.mxu0 0.0
    %1944 = vmatprep.subr.mxu0 0.0
    %1945 = vmatpush1.msra.mxu0 0.0
    %1946 = vmatprep.subr.mxu0 0.0
    %1947 = vmatpush1.msra.mxu0 0.0
    %1948 = vmatprep.subr.mxu0 0.0
    %1949 = vmatpush1.msra.mxu0 0.0
    %1950 = vmatprep.subr.mxu0 0.0
    %1951 = vmatpush1.msra.mxu0 0.0
    %1952 = vmatprep.subr.mxu0 0.0
    %1953 = vmatpush1.msra.mxu0 0.0
    %1954 = vmatprep.subr.mxu0 0.0
    %1955 = vmatpush1.msra.mxu0 0.0
    %1956 = vmatprep.subr.mxu0 0.0
    %1957 = vmatpush1.msra.mxu0 0.0
    %1958 = vmatprep.subr.mxu0 0.0
    %1959 = vmatpush1.msra.mxu0 0.0
    %1960 = vmatprep.subr.mxu0 0.0
    %1961 = vmatpush1.msra.mxu0 0.0
    %1962 = vmatprep.subr.mxu0 0.0
    %1963 = vmatpush1.msra.mxu0 0.0
    %1964 = vmatprep.subr.mxu0 0.0
    %1965 = vmatpush1.msra.mxu0 0.0
    %1966 = vmatprep.subr.mxu0 0.0
    %1967 = vmatpush1.msra.mxu0 0.0
    %1968 = vmatprep.subr.mxu0 0.0
    %1969 = vmatpush1.msra.mxu0 0.0
    %1970 = vmatprep.subr.mxu0 0.0
    %1971 = vmatpush1.msra.mxu0 0.0
    %1972 = vmatprep.subr.mxu0 0.0
    %1973 = vmatpush1.msra.mxu0 0.0
    %1974 = vmatprep.mubr.f32.mxu0 0.0
    %1975 = vmatmul.mubr.f32.gmra.mrb[0].mxu0 %v1836
    %v1976 = vpop.f32.mrb[0].mxu0
    %v1977 = vadd.f32 0.0, %v1976
    %v1978 = vpop.f32.mrb[0].mxu0
    %1979 = vmatprep.mubr.f32.mxu0 0.0
    %1980 = vmatmul.mubr.f32.gmra.mrb[0].mxu0 %v1839
    %v1981 = vpop.f32.mrb[0].mxu0
    %v1982 = vadd.f32 0.0, %v1981
    %v1983 = vpop.f32.mrb[0].mxu0
    %1984 = vmatprep.mubr.f32.mxu0 0.0
    %1985 = vmatmul.mubr.f32.gmra.mrb[0].mxu0 %v1842
    %v1986 = vpop.f32.mrb[0].mxu0
    %v1987 = vadd.f32 0.0, %v1986
    %v1988 = vpop.f32.mrb[0].mxu0
    %1989 = vmatprep.mubr.f32.mxu0 0.0
    %1990 = vmatmul.mubr.f32.gmra.mrb[0].mxu0 %v1845
    %v1991 = vpop.f32.mrb[0].mxu0
    %v1992 = vadd.f32 0.0, %v1991
    %v1993 = vpop.f32.mrb[0].mxu0
    %1994 = vmatprep.mubr.f32.mxu0 0.0
    %1995 = vmatmul.mubr.f32.gmra.mrb[0].mxu0 %v1848
    %v1996 = vpop.f32.mrb[0].mxu0
    %v1997 = vadd.f32 0.0, %v1996
    %v1998 = vpop.f32.mrb[0].mxu0
    %1999 = vmatprep.mubr.f32.mxu0 0.0
    %2000 = vmatmul.mubr.f32.gmra.mrb[0].mxu0 %v1851
    %v2001 = vpop.f32.mrb[0].mxu0
    %v2002 = vadd.f32 0.0, %v2001
    %v2003 = vpop.f32.mrb[0].mxu0
    %2004 = vmatprep.mubr.f32.mxu0 0.0
    %2005 = vmatmul.mubr.f32.gmra.mrb[0].mxu0 %v1854
    %v2006 = vpop.f32.mrb[0].mxu0
    %v2007 = vadd.f32 0.0, %v2006
    %v2008 = vpop.f32.mrb[0].mxu0
    %2009 = vmatprep.mubr.f32.mxu0 0.0
    %2010 = vmatmul.mubr.f32.gmra.mrb[0].mxu0 %v1857
    %v2011 = vpop.f32.mrb[0].mxu0
    %v2012 = vadd.f32 0.0, %v2011
    %v2013 = vpop.f32.mrb[0].mxu0
    %2014 = vmatprep.mubr.f32.mxu0 0.0
    %2015 = vmatmul.mubr.f32.gmra.mrb[0].mxu0 %v1860
    %v2016 = vpop.f32.mrb[0].mxu0
    %v2017 = vadd.f32 0.0, %v2016
    %v2018 = vpop.f32.mrb[0].mxu0
    %2019 = vmatprep.mubr.f32.mxu0 0.0
    %2020 = vmatmul.mubr.f32.gmra.mrb[0].mxu0 %v1863
    %v2021 = vpop.f32.mrb[0].mxu0
    %v2022 = vadd.f32 0.0, %v2021
    %v2023 = vpop.f32.mrb[0].mxu0
    %2024 = vmatprep.mubr.f32.mxu0 0.0
    %2025 = vmatmul.mubr.f32.gmra.mrb[0].mxu0 %v1866
    %v2026 = vpop.f32.mrb[0].mxu0
    %v2027 = vadd.f32 0.0, %v2026
    %v2028 = vpop.f32.mrb[0].mxu0
    %2029 = vmatprep.mubr.f32.mxu0 0.0
    %2030 = vmatmul.mubr.f32.gmra.mrb[0].mxu0 %v1869
    %v2031 = vpop.f32.mrb[0].mxu0
    %v2032 = vadd.f32 0.0, %v2031
    %v2033 = vpop.f32.mrb[0].mxu0
    %2034 = vmatprep.mubr.f32.mxu0 0.0
    %2035 = vmatmul.mubr.f32.gmra.mrb[0].mxu0 %v1872
    %v2036 = vpop.f32.mrb[0].mxu0
    %v2037 = vadd.f32 0.0, %v2036
    %v2038 = vpop.f32.mrb[0].mxu0
    %2039 = vmatprep.mubr.f32.mxu0 0.0
    %2040 = vmatmul.mubr.f32.gmra.mrb[0].mxu0 %v1875
    %v2041 = vpop.f32.mrb[0].mxu0
    %v2042 = vadd.f32 0.0, %v2041
    %v2043 = vpop.f32.mrb[0].mxu0
    %2044 = vmatprep.mubr.f32.mxu0 0.0
    %2045 = vmatmul.mubr.f32.gmra.mrb[0].mxu0 %v1878
    %v2046 = vpop.f32.mrb[0].mxu0
    %v2047 = vadd.f32 0.0, %v2046
    %v2048 = vpop.f32.mrb[0].mxu0
    %2049 = vmatprep.mubr.f32.mxu0 0.0
    %2050 = vmatmul.mubr.f32.gmra.mrb[0].mxu0 %v1881
    %v2051 = vpop.f32.mrb[0].mxu0
    %v2052 = vadd.f32 0.0, %v2051
    %v2053 = vpop.f32.mrb[0].mxu0
    %2054 = vmatprep.mubr.f32.mxu0 0.0
    %2055 = vmatmul.mubr.f32.gmra.mrb[0].mxu0 %v1884
    %v2056 = vpop.f32.mrb[0].mxu0
    %v2057 = vadd.f32 0.0, %v2056
    %v2058 = vpop.f32.mrb[0].mxu0
    %2059 = vmatprep.mubr.f32.mxu0 0.0
    %2060 = vmatmul.mubr.f32.gmra.mrb[0].mxu0 %v1887
    %v2061 = vpop.f32.mrb[0].mxu0
    %v2062 = vadd.f32 0.0, %v2061
    %v2063 = vpop.f32.mrb[0].mxu0
    %2064 = vmatprep.mubr.f32.mxu0 0.0
    %2065 = vmatmul.mubr.f32.gmra.mrb[0].mxu0 %v1890
    %v2066 = vpop.f32.mrb[0].mxu0
    %v2067 = vadd.f32 0.0, %v2066
    %v2068 = vpop.f32.mrb[0].mxu0
    %2069 = vmatprep.mubr.f32.mxu0 0.0
    %2070 = vmatmul.mubr.f32.gmra.mrb[0].mxu0 %v1893
    %v2071 = vpop.f32.mrb[0].mxu0
    %v2072 = vadd.f32 0.0, %v2071
    %v2073 = vpop.f32.mrb[0].mxu0
    %2074 = vmatprep.mubr.f32.mxu0 0.0
    %2075 = vmatmul.mubr.f32.gmra.mrb[0].mxu0 %v1896
    %v2076 = vpop.f32.mrb[0].mxu0
    %v2077 = vadd.f32 0.0, %v2076
    %v2078 = vpop.f32.mrb[0].mxu0
    %2079 = vmatprep.mubr.f32.mxu0 0.0
    %2080 = vmatmul.mubr.f32.gmra.mrb[0].mxu0 %v1899
    %v2081 = vpop.f32.mrb[0].mxu0
    %v2082 = vadd.f32 0.0, %v2081
    %v2083 = vpop.f32.mrb[0].mxu0
    %2084 = vmatprep.mubr.f32.mxu0 0.0
    %2085 = vmatmul.mubr.f32.gmra.mrb[0].mxu0 %v1902
    %v2086 = vpop.f32.mrb[0].mxu0
    %v2087 = vadd.f32 0.0, %v2086
    %v2088 = vpop.f32.mrb[0].mxu0
    %2089 = vmatprep.mubr.f32.mxu0 0.0
    %2090 = vmatmul.mubr.f32.gmra.mrb[0].mxu0 %v1905
    %v2091 = vpop.f32.mrb[0].mxu0
    %v2092 = vadd.f32 0.0, %v2091
    %v2093 = vpop.f32.mrb[0].mxu0
    %2094 = vmatprep.mubr.f32.mxu0 0.0
    %2095 = vmatmul.mubr.f32.gmra.mrb[0].mxu0 %v1908
    %v2096 = vpop.f32.mrb[0].mxu0
    %v2097 = vadd.f32 0.0, %v2096
    %v2098 = vpop.f32.mrb[0].mxu0
    %2099 = vdwg.mxu0
    %2100 = vmatprep.subr.mxu0 0.0
    %2101 = vmatpush1.msra.mxu0 %v1750
    %2102 = vmatprep.subr.mxu0 0.0
    %2103 = vmatpush1.msra.mxu0 %v1751
    %2104 = vmatprep.subr.mxu0 0.0
    %2105 = vmatpush1.msra.mxu0 %v1752
    %2106 = vmatprep.subr.mxu0 0.0
    %2107 = vmatpush1.msra.mxu0 %v1753
    %2108 = vmatprep.subr.mxu0 0.0
    %2109 = vmatpush1.msra.mxu0 %v1754
    %2110 = vmatprep.subr.mxu0 0.0
    %2111 = vmatpush1.msra.mxu0 %v1755
    %2112 = vmatprep.subr.mxu0 0.0
    %2113 = vmatpush1.msra.mxu0 %v1756
    %2114 = vmatprep.subr.mxu0 0.0
    %2115 = vmatpush1.msra.mxu0 %v1757
    %2116 = vmatprep.subr.mxu0 0.0
    %2117 = vmatpush1.msra.mxu0 %v1758
    %2118 = vmatprep.subr.mxu0 0.0
    %2119 = vmatpush1.msra.mxu0 %v1759
    %2120 = vmatprep.subr.mxu0 0.0
    %2121 = vmatpush1.msra.mxu0 %v1760
    %2122 = vmatprep.subr.mxu0 0.0
    %2123 = vmatpush1.msra.mxu0 %v1761
    %2124 = vmatprep.subr.mxu0 0.0
    %2125 = vmatpush1.msra.mxu0 %v1762
    %2126 = vmatprep.subr.mxu0 0.0
    %2127 = vmatpush1.msra.mxu0 %v1763
    %2128 = vmatprep.subr.mxu0 0.0
    %2129 = vmatpush1.msra.mxu0 %v1764
    %2130 = vmatprep.subr.mxu0 0.0
    %2131 = vmatpush1.msra.mxu0 %v1765
    %2132 = vmatprep.subr.mxu0 0.0
    %2133 = vmatpush1.msra.mxu0 %v1766
    %2134 = vmatprep.subr.mxu0 0.0
    %2135 = vmatpush1.msra.mxu0 %v1767
    %2136 = vmatprep.subr.mxu0 0.0
    %2137 = vmatpush1.msra.mxu0 %v1768
    %2138 = vmatprep.subr.mxu0 0.0
    %2139 = vmatpush1.msra.mxu0 %v1769
    %2140 = vmatprep.subr.mxu0 0.0
    %2141 = vmatpush1.msra.mxu0 %v1770
    %2142 = vmatprep.subr.mxu0 0.0
    %2143 = vmatpush1.msra.mxu0 %v1771
    %2144 = vmatprep.subr.mxu0 0.0
    %2145 = vmatpush1.msra.mxu0 %v1772
    %2146 = vmatprep.subr.mxu0 0.0
    %2147 = vmatpush1.msra.mxu0 %v1773
    %2148 = vmatprep.subr.mxu0 0.0
    %2149 = vmatpush1.msra.mxu0 %v1774
    %2150 = vmatprep.subr.mxu0 0.0
    %2151 = vmatpush1.msra.mxu0 %v1775
    %2152 = vmatprep.subr.mxu0 0.0
    %2153 = vmatpush1.msra.mxu0 %v1776
    %2154 = vmatprep.subr.mxu0 0.0
    %2155 = vmatpush1.msra.mxu0 %v1777
    %2156 = vmatprep.subr.mxu0 0.0
    %2157 = vmatpush1.msra.mxu0 %v1778
    %2158 = vmatprep.subr.mxu0 0.0
    %2159 = vmatpush1.msra.mxu0 %v1779
    %2160 = vmatprep.subr.mxu0 0.0
    %2161 = vmatpush1.msra.mxu0 %v1780
    %2162 = vmatprep.subr.mxu0 0.0
    %2163 = vmatpush1.msra.mxu0 %v1781
    %2164 = vmatprep.mubr.f32.mxu0 %v1175
    %2165 = vmatmul.mubr.f32.gmra.mrb[0].mxu0 %v1000
    %v2166 = vpop.f32.mrb[0].mxu0
    %v2167 = vadd.f32 %v1977, %v2166
    %v2168 = vpop.f32.mrb[0].mxu0
    %2169 = vmatprep.mubr.f32.mxu0 %v1176
    %2170 = vmatmul.mubr.f32.gmra.mrb[0].mxu0 %v1001
    %v2171 = vpop.f32.mrb[0].mxu0
    %v2172 = vadd.f32 %v1982, %v2171
    %v2173 = vpop.f32.mrb[0].mxu0
    %2174 = vmatprep.mubr.f32.mxu0 %v1177
    %2175 = vmatmul.mubr.f32.gmra.mrb[0].mxu0 %v1002
    %v2176 = vpop.f32.mrb[0].mxu0
    %v2177 = vadd.f32 %v1987, %v2176
    %v2178 = vpop.f32.mrb[0].mxu0
    %2179 = vmatprep.mubr.f32.mxu0 %v1178
    %2180 = vmatmul.mubr.f32.gmra.mrb[0].mxu0 %v1003
    %v2181 = vpop.f32.mrb[0].mxu0
    %v2182 = vadd.f32 %v1992, %v2181
    %v2183 = vpop.f32.mrb[0].mxu0
    %2184 = vmatprep.mubr.f32.mxu0 %v1179
    %2185 = vmatmul.mubr.f32.gmra.mrb[0].mxu0 %v1004
    %v2186 = vpop.f32.mrb[0].mxu0
    %v2187 = vadd.f32 %v1997, %v2186
    %v2188 = vpop.f32.mrb[0].mxu0
    %2189 = vmatprep.mubr.f32.mxu0 %v1180
    %2190 = vmatmul.mubr.f32.gmra.mrb[0].mxu0 %v1005
    %v2191 = vpop.f32.mrb[0].mxu0
    %v2192 = vadd.f32 %v2002, %v2191
    %v2193 = vpop.f32.mrb[0].mxu0
    %2194 = vmatprep.mubr.f32.mxu0 %v1181
    %2195 = vmatmul.mubr.f32.gmra.mrb[0].mxu0 %v1006
    %v2196 = vpop.f32.mrb[0].mxu0
    %v2197 = vadd.f32 %v2007, %v2196
    %v2198 = vpop.f32.mrb[0].mxu0
    %2199 = vmatprep.mubr.f32.mxu0 %v1182
    %2200 = vmatmul.mubr.f32.gmra.mrb[0].mxu0 %v1007
    %v2201 = vpop.f32.mrb[0].mxu0
    %v2202 = vadd.f32 %v2012, %v2201
    %v2203 = vpop.f32.mrb[0].mxu0
    %2204 = vmatprep.mubr.f32.mxu0 %v1183
    %2205 = vmatmul.mubr.f32.gmra.mrb[0].mxu0 %v1008
    %v2206 = vpop.f32.mrb[0].mxu0
    %v2207 = vadd.f32 %v2017, %v2206
    %v2208 = vpop.f32.mrb[0].mxu0
    %2209 = vmatprep.mubr.f32.mxu0 %v1184
    %2210 = vmatmul.mubr.f32.gmra.mrb[0].mxu0 %v1009
    %v2211 = vpop.f32.mrb[0].mxu0
    %v2212 = vadd.f32 %v2022, %v2211
    %v2213 = vpop.f32.mrb[0].mxu0
    %2214 = vmatprep.mubr.f32.mxu0 %v1185
    %2215 = vmatmul.mubr.f32.gmra.mrb[0].mxu0 %v1010
    %v2216 = vpop.f32.mrb[0].mxu0
    %v2217 = vadd.f32 %v2027, %v2216
    %v2218 = vpop.f32.mrb[0].mxu0
    %2219 = vmatprep.mubr.f32.mxu0 %v1186
    %2220 = vmatmul.mubr.f32.gmra.mrb[0].mxu0 %v1011
    %v2221 = vpop.f32.mrb[0].mxu0
    %v2222 = vadd.f32 %v2032, %v2221
    %v2223 = vpop.f32.mrb[0].mxu0
    %2224 = vmatprep.mubr.f32.mxu0 %v1187
    %2225 = vmatmul.mubr.f32.gmra.mrb[0].mxu0 %v1012
    %v2226 = vpop.f32.mrb[0].mxu0
    %v2227 = vadd.f32 %v2037, %v2226
    %v2228 = vpop.f32.mrb[0].mxu0
    %2229 = vmatprep.mubr.f32.mxu0 %v1188
    %2230 = vmatmul.mubr.f32.gmra.mrb[0].mxu0 %v1013
    %v2231 = vpop.f32.mrb[0].mxu0
    %v2232 = vadd.f32 %v2042, %v2231
    %v2233 = vpop.f32.mrb[0].mxu0
    %2234 = vmatprep.mubr.f32.mxu0 %v1189
    %2235 = vmatmul.mubr.f32.gmra.mrb[0].mxu0 %v1014
    %v2236 = vpop.f32.mrb[0].mxu0
    %v2237 = vadd.f32 %v2047, %v2236
    %v2238 = vpop.f32.mrb[0].mxu0
    %2239 = vmatprep.mubr.f32.mxu0 %v1190
    %2240 = vmatmul.mubr.f32.gmra.mrb[0].mxu0 %v1015
    %v2241 = vpop.f32.mrb[0].mxu0
    %v2242 = vadd.f32 %v2052, %v2241
    %v2243 = vpop.f32.mrb[0].mxu0
    %2244 = vmatprep.mubr.f32.mxu0 %v1191
    %2245 = vmatmul.mubr.f32.gmra.mrb[0].mxu0 %v1016
    %v2246 = vpop.f32.mrb[0].mxu0
    %v2247 = vadd.f32 %v2057, %v2246
    %v2248 = vpop.f32.mrb[0].mxu0
    %2249 = vmatprep.mubr.f32.mxu0 %v1192
    %2250 = vmatmul.mubr.f32.gmra.mrb[0].mxu0 %v1017
    %v2251 = vpop.f32.mrb[0].mxu0
    %v2252 = vadd.f32 %v2062, %v2251
    %v2253 = vpop.f32.mrb[0].mxu0
    %2254 = vmatprep.mubr.f32.mxu0 %v1193
    %2255 = vmatmul.mubr.f32.gmra.mrb[0].mxu0 %v1018
    %v2256 = vpop.f32.mrb[0].mxu0
    %v2257 = vadd.f32 %v2067, %v2256
    %v2258 = vpop.f32.mrb[0].mxu0
    %2259 = vmatprep.mubr.f32.mxu0 %v1194
    %2260 = vmatmul.mubr.f32.gmra.mrb[0].mxu0 %v1019
    %v2261 = vpop.f32.mrb[0].mxu0
    %v2262 = vadd.f32 %v2072, %v2261
    %v2263 = vpop.f32.mrb[0].mxu0
    %2264 = vmatprep.mubr.f32.mxu0 %v1195
    %2265 = vmatmul.mubr.f32.gmra.mrb[0].mxu0 %v1020
    %v2266 = vpop.f32.mrb[0].mxu0
    %v2267 = vadd.f32 %v2077, %v2266
    %v2268 = vpop.f32.mrb[0].mxu0
    %2269 = vmatprep.mubr.f32.mxu0 %v1196
    %2270 = vmatmul.mubr.f32.gmra.mrb[0].mxu0 %v1021
    %v2271 = vpop.f32.mrb[0].mxu0
    %v2272 = vadd.f32 %v2082, %v2271
    %v2273 = vpop.f32.mrb[0].mxu0
    %2274 = vmatprep.mubr.f32.mxu0 %v1197
    %2275 = vmatmul.mubr.f32.gmra.mrb[0].mxu0 %v1022
    %v2276 = vpop.f32.mrb[0].mxu0
    %v2277 = vadd.f32 %v2087, %v2276
    %v2278 = vpop.f32.mrb[0].mxu0
    %2279 = vmatprep.mubr.f32.mxu0 %v1198
    %2280 = vmatmul.mubr.f32.gmra.mrb[0].mxu0 %v1023
    %v2281 = vpop.f32.mrb[0].mxu0
    %v2282 = vadd.f32 %v2092, %v2281
    %v2283 = vpop.f32.mrb[0].mxu0
    %2284 = vmatprep.mubr.f32.mxu0 %v1199
    %2285 = vmatmul.mubr.f32.gmra.mrb[0].mxu0 %v1024
    %v2286 = vpop.f32.mrb[0].mxu0
    %v2287 = vadd.f32 %v2097, %v2286
    %v2288 = vpop.f32.mrb[0].mxu0
    %2289 = vdwg.mxu0
    %2290 = vmatprep.subr.mxu0 0.0
    %2291 = vmatpush1.msra.mxu0 %v1782
    %2292 = vmatprep.subr.mxu0 0.0
    %2293 = vmatpush1.msra.mxu0 %v1783
    %2294 = vmatprep.subr.mxu0 0.0
    %2295 = vmatpush1.msra.mxu0 %v1784
    %2296 = vmatprep.subr.mxu0 0.0
    %2297 = vmatpush1.msra.mxu0 %v1785
    %2298 = vmatprep.subr.mxu0 0.0
    %2299 = vmatpush1.msra.mxu0 %v1786
    %2300 = vmatprep.subr.mxu0 0.0
    %2301 = vmatpush1.msra.mxu0 %v1787
    %2302 = vmatprep.subr.mxu0 0.0
    %2303 = vmatpush1.msra.mxu0 %v1788
    %2304 = vmatprep.subr.mxu0 0.0
    %2305 = vmatpush1.msra.mxu0 %v1789
    %2306 = vmatprep.subr.mxu0 0.0
    %2307 = vmatpush1.msra.mxu0 %v1790
    %2308 = vmatprep.subr.mxu0 0.0
    %2309 = vmatpush1.msra.mxu0 %v1791
    %2310 = vmatprep.subr.mxu0 0.0
    %2311 = vmatpush1.msra.mxu0 %v1792
    %2312 = vmatprep.subr.mxu0 0.0
    %2313 = vmatpush1.msra.mxu0 %v1793
    %2314 = vmatprep.subr.mxu0 0.0
    %2315 = vmatpush1.msra.mxu0 %v1794
    %2316 = vmatprep.subr.mxu0 0.0
    %2317 = vmatpush1.msra.mxu0 %v1795
    %2318 = vmatprep.subr.mxu0 0.0
    %2319 = vmatpush1.msra.mxu0 %v1796
    %2320 = vmatprep.subr.mxu0 0.0
    %2321 = vmatpush1.msra.mxu0 %v1797
    %2322 = vmatprep.subr.mxu0 0.0
    %2323 = vmatpush1.msra.mxu0 %v1798
    %2324 = vmatprep.subr.mxu0 0.0
    %2325 = vmatpush1.msra.mxu0 %v1799
    %2326 = vmatprep.subr.mxu0 0.0
    %2327 = vmatpush1.msra.mxu0 %v1800
    %2328 = vmatprep.subr.mxu0 0.0
    %2329 = vmatpush1.msra.mxu0 %v1801
    %2330 = vmatprep.subr.mxu0 0.0
    %2331 = vmatpush1.msra.mxu0 %v1802
    %2332 = vmatprep.subr.mxu0 0.0
    %2333 = vmatpush1.msra.mxu0 %v1803
    %2334 = vmatprep.subr.mxu0 0.0
    %2335 = vmatpush1.msra.mxu0 %v1804
    %2336 = vmatprep.subr.mxu0 0.0
    %2337 = vmatpush1.msra.mxu0 %v1805
    %2338 = vmatprep.subr.mxu0 0.0
    %2339 = vmatpush1.msra.mxu0 %v1806
    %2340 = vmatprep.subr.mxu0 0.0
    %2341 = vmatpush1.msra.mxu0 %v1807
    %2342 = vmatprep.subr.mxu0 0.0
    %2343 = vmatpush1.msra.mxu0 %v1808
    %2344 = vmatprep.subr.mxu0 0.0
    %2345 = vmatpush1.msra.mxu0 %v1809
    %2346 = vmatprep.subr.mxu0 0.0
    %2347 = vmatpush1.msra.mxu0 %v1810
    %2348 = vmatprep.subr.mxu0 0.0
    %2349 = vmatpush1.msra.mxu0 %v1811
    %2350 = vmatprep.subr.mxu0 0.0
    %2351 = vmatpush1.msra.mxu0 %v1812
    %2352 = vmatprep.subr.mxu0 0.0
    %2353 = vmatpush1.msra.mxu0 %v1813
    %2354 = vmatprep.mubr.f32.mxu0 %v1525
    %2355 = vmatmul.mubr.f32.gmra.mrb[0].mxu0 %v1350
    %v2356 = vpop.f32.mrb[0].mxu0
    %v2357 = vadd.f32 %v2167, %v2356
    %v2358 = vpop.f32.mrb[0].mxu0
    %2359 = vmatprep.mubr.f32.mxu0 %v1526
    %2360 = vmatmul.mubr.f32.gmra.mrb[0].mxu0 %v1351
    %v2361 = vpop.f32.mrb[0].mxu0
    %v2362 = vadd.f32 %v2172, %v2361
    %v2363 = vpop.f32.mrb[0].mxu0
    %2364 = vmatprep.mubr.f32.mxu0 %v1527
    %2365 = vmatmul.mubr.f32.gmra.mrb[0].mxu0 %v1352
    %v2366 = vpop.f32.mrb[0].mxu0
    %v2367 = vadd.f32 %v2177, %v2366
    %v2368 = vpop.f32.mrb[0].mxu0
    %2369 = vmatprep.mubr.f32.mxu0 %v1528
    %2370 = vmatmul.mubr.f32.gmra.mrb[0].mxu0 %v1353
    %v2371 = vpop.f32.mrb[0].mxu0
    %v2372 = vadd.f32 %v2182, %v2371
    %v2373 = vpop.f32.mrb[0].mxu0
    %2374 = vmatprep.mubr.f32.mxu0 %v1529
    %2375 = vmatmul.mubr.f32.gmra.mrb[0].mxu0 %v1354
    %v2376 = vpop.f32.mrb[0].mxu0
    %v2377 = vadd.f32 %v2187, %v2376
    %v2378 = vpop.f32.mrb[0].mxu0
    %2379 = vmatprep.mubr.f32.mxu0 %v1530
    %2380 = vmatmul.mubr.f32.gmra.mrb[0].mxu0 %v1355
    %v2381 = vpop.f32.mrb[0].mxu0
    %v2382 = vadd.f32 %v2192, %v2381
    %v2383 = vpop.f32.mrb[0].mxu0
    %2384 = vmatprep.mubr.f32.mxu0 %v1531
    %2385 = vmatmul.mubr.f32.gmra.mrb[0].mxu0 %v1356
    %v2386 = vpop.f32.mrb[0].mxu0
    %v2387 = vadd.f32 %v2197, %v2386
    %v2388 = vpop.f32.mrb[0].mxu0
    %2389 = vmatprep.mubr.f32.mxu0 %v1532
    %2390 = vmatmul.mubr.f32.gmra.mrb[0].mxu0 %v1357
    %v2391 = vpop.f32.mrb[0].mxu0
    %v2392 = vadd.f32 %v2202, %v2391
    %v2393 = vpop.f32.mrb[0].mxu0
    %2394 = vmatprep.mubr.f32.mxu0 %v1533
    %2395 = vmatmul.mubr.f32.gmra.mrb[0].mxu0 %v1358
    %v2396 = vpop.f32.mrb[0].mxu0
    %v2397 = vadd.f32 %v2207, %v2396
    %v2398 = vpop.f32.mrb[0].mxu0
    %2399 = vmatprep.mubr.f32.mxu0 %v1534
    %2400 = vmatmul.mubr.f32.gmra.mrb[0].mxu0 %v1359
    %v2401 = vpop.f32.mrb[0].mxu0
    %v2402 = vadd.f32 %v2212, %v2401
    %v2403 = vpop.f32.mrb[0].mxu0
    %2404 = vmatprep.mubr.f32.mxu0 %v1535
    %2405 = vmatmul.mubr.f32.gmra.mrb[0].mxu0 %v1360
    %v2406 = vpop.f32.mrb[0].mxu0
    %v2407 = vadd.f32 %v2217, %v2406
    %v2408 = vpop.f32.mrb[0].mxu0
    %2409 = vmatprep.mubr.f32.mxu0 %v1536
    %2410 = vmatmul.mubr.f32.gmra.mrb[0].mxu0 %v1361
    %v2411 = vpop.f32.mrb[0].mxu0
    %v2412 = vadd.f32 %v2222, %v2411
    %v2413 = vpop.f32.mrb[0].mxu0
    %2414 = vmatprep.mubr.f32.mxu0 %v1537
    %2415 = vmatmul.mubr.f32.gmra.mrb[0].mxu0 %v1362
    %v2416 = vpop.f32.mrb[0].mxu0
    %v2417 = vadd.f32 %v2227, %v2416
    %v2418 = vpop.f32.mrb[0].mxu0
    %2419 = vmatprep.mubr.f32.mxu0 %v1538
    %2420 = vmatmul.mubr.f32.gmra.mrb[0].mxu0 %v1363
    %v2421 = vpop.f32.mrb[0].mxu0
    %v2422 = vadd.f32 %v2232, %v2421
    %v2423 = vpop.f32.mrb[0].mxu0
    %2424 = vmatprep.mubr.f32.mxu0 %v1539
    %2425 = vmatmul.mubr.f32.gmra.mrb[0].mxu0 %v1364
    %v2426 = vpop.f32.mrb[0].mxu0
    %v2427 = vadd.f32 %v2237, %v2426
    %v2428 = vpop.f32.mrb[0].mxu0
    %2429 = vmatprep.mubr.f32.mxu0 %v1540
    %2430 = vmatmul.mubr.f32.gmra.mrb[0].mxu0 %v1365
    %v2431 = vpop.f32.mrb[0].mxu0
    %v2432 = vadd.f32 %v2242, %v2431
    %v2433 = vpop.f32.mrb[0].mxu0
    %2434 = vmatprep.mubr.f32.mxu0 %v1541
    %2435 = vmatmul.mubr.f32.gmra.mrb[0].mxu0 %v1366
    %v2436 = vpop.f32.mrb[0].mxu0
    %v2437 = vadd.f32 %v2247, %v2436
    %v2438 = vpop.f32.mrb[0].mxu0
    %2439 = vmatprep.mubr.f32.mxu0 %v1542
    %2440 = vmatmul.mubr.f32.gmra.mrb[0].mxu0 %v1367
    %v2441 = vpop.f32.mrb[0].mxu0
    %v2442 = vadd.f32 %v2252, %v2441
    %v2443 = vpop.f32.mrb[0].mxu0
    %2444 = vmatprep.mubr.f32.mxu0 %v1543
    %2445 = vmatmul.mubr.f32.gmra.mrb[0].mxu0 %v1368
    %v2446 = vpop.f32.mrb[0].mxu0
    %v2447 = vadd.f32 %v2257, %v2446
    %v2448 = vpop.f32.mrb[0].mxu0
    %2449 = vmatprep.mubr.f32.mxu0 %v1544
    %2450 = vmatmul.mubr.f32.gmra.mrb[0].mxu0 %v1369
    %v2451 = vpop.f32.mrb[0].mxu0
    %v2452 = vadd.f32 %v2262, %v2451
    %v2453 = vpop.f32.mrb[0].mxu0
    %2454 = vmatprep.mubr.f32.mxu0 %v1545
    %2455 = vmatmul.mubr.f32.gmra.mrb[0].mxu0 %v1370
    %v2456 = vpop.f32.mrb[0].mxu0
    %v2457 = vadd.f32 %v2267, %v2456
    %v2458 = vpop.f32.mrb[0].mxu0
    %2459 = vmatprep.mubr.f32.mxu0 %v1546
    %2460 = vmatmul.mubr.f32.gmra.mrb[0].mxu0 %v1371
    %v2461 = vpop.f32.mrb[0].mxu0
    %v2462 = vadd.f32 %v2272, %v2461
    %v2463 = vpop.f32.mrb[0].mxu0
    %2464 = vmatprep.mubr.f32.mxu0 %v1547
    %2465 = vmatmul.mubr.f32.gmra.mrb[0].mxu0 %v1372
    %v2466 = vpop.f32.mrb[0].mxu0
    %v2467 = vadd.f32 %v2277, %v2466
    %v2468 = vpop.f32.mrb[0].mxu0
    %2469 = vmatprep.mubr.f32.mxu0 %v1548
    %2470 = vmatmul.mubr.f32.gmra.mrb[0].mxu0 %v1373
    %v2471 = vpop.f32.mrb[0].mxu0
    %v2472 = vadd.f32 %v2282, %v2471
    %v2473 = vpop.f32.mrb[0].mxu0
    %2474 = vmatprep.mubr.f32.mxu0 %v1549
    %2475 = vmatmul.mubr.f32.gmra.mrb[0].mxu0 %v1374
    %v2476 = vpop.f32.mrb[0].mxu0
    %v2477 = vadd.f32 %v2287, %v2476
    %v2478 = vpop.f32.mrb[0].mxu0
    %2479 = vdwg.mxu0
    %2480 = vmatprep.subr.mxu0 0.0
    %2481 = vmatpush1.msra.mxu0 %v1814
    %2482 = vmatprep.subr.mxu0 0.0
    %2483 = vmatpush1.msra.mxu0 %v1815
    %2484 = vmatprep.subr.mxu0 0.0
    %2485 = vmatpush1.msra.mxu0 %v1816
    %2486 = vmatprep.subr.mxu0 0.0
    %2487 = vmatpush1.msra.mxu0 %v1817
    %2488 = vmatprep.subr.mxu0 0.0
    %2489 = vmatpush1.msra.mxu0 %v1818
    %2490 = vmatprep.subr.mxu0 0.0
    %2491 = vmatpush1.msra.mxu0 %v1819
    %2492 = vmatprep.subr.mxu0 0.0
    %2493 = vmatpush1.msra.mxu0 %v1820
    %2494 = vmatprep.subr.mxu0 0.0
    %2495 = vmatpush1.msra.mxu0 %v1821
    %2496 = vmatprep.subr.mxu0 0.0
    %2497 = vmatpush1.msra.mxu0 %v1822
    %2498 = vmatprep.subr.mxu0 0.0
    %2499 = vmatpush1.msra.mxu0 %v1823
    %2500 = vmatprep.subr.mxu0 0.0
    %2501 = vmatpush1.msra.mxu0 %v1824
    %2502 = vmatprep.subr.mxu0 0.0
    %2503 = vmatpush1.msra.mxu0 %v1825
    %2504 = vmatprep.subr.mxu0 0.0
    %2505 = vmatpush1.msra.mxu0 %v1826
    %2506 = vmatprep.subr.mxu0 0.0
    %2507 = vmatpush1.msra.mxu0 %v1827
    %2508 = vmatprep.subr.mxu0 0.0
    %2509 = vmatpush1.msra.mxu0 %v1828
    %2510 = vmatprep.subr.mxu0 0.0
    %2511 = vmatpush1.msra.mxu0 %v1829
    %2512 = vmatprep.subr.mxu0 0.0
    %2513 = vmatpush1.msra.mxu0 0.0
    %2514 = vmatprep.subr.mxu0 0.0
    %2515 = vmatpush1.msra.mxu0 0.0
    %2516 = vmatprep.subr.mxu0 0.0
    %2517 = vmatpush1.msra.mxu0 0.0
    %2518 = vmatprep.subr.mxu0 0.0
    %2519 = vmatpush1.msra.mxu0 0.0
    %2520 = vmatprep.subr.mxu0 0.0
    %2521 = vmatpush1.msra.mxu0 0.0
    %2522 = vmatprep.subr.mxu0 0.0
    %2523 = vmatpush1.msra.mxu0 0.0
    %2524 = vmatprep.subr.mxu0 0.0
    %2525 = vmatpush1.msra.mxu0 0.0
    %2526 = vmatprep.subr.mxu0 0.0
    %2527 = vmatpush1.msra.mxu0 0.0
    %2528 = vmatprep.subr.mxu0 0.0
    %2529 = vmatpush1.msra.mxu0 0.0
    %2530 = vmatprep.subr.mxu0 0.0
    %2531 = vmatpush1.msra.mxu0 0.0
    %2532 = vmatprep.subr.mxu0 0.0
    %2533 = vmatpush1.msra.mxu0 0.0
    %2534 = vmatprep.subr.mxu0 0.0
    %2535 = vmatpush1.msra.mxu0 0.0
    %2536 = vmatprep.subr.mxu0 0.0
    %2537 = vmatpush1.msra.mxu0 0.0
    %2538 = vmatprep.subr.mxu0 0.0
    %2539 = vmatpush1.msra.mxu0 0.0
    %2540 = vmatprep.subr.mxu0 0.0
    %2541 = vmatpush1.msra.mxu0 0.0
    %2542 = vmatprep.subr.mxu0 0.0
    %2543 = vmatpush1.msra.mxu0 0.0
    %2544 = vmatprep.mubr.f32.mxu0 0.0
    %2545 = vmatmul.mubr.f32.gmra.mrb[0].mxu0 %v1700
    %v2546 = vpop.f32.mrb[0].mxu0
    %v2547 = vadd.f32 %v2357, %v2546
    %v2548 = vpop.f32.mrb[0].mxu0
    %2549 = vmatprep.mubr.f32.mxu0 0.0
    %2550 = vmatmul.mubr.f32.gmra.mrb[0].mxu0 %v1701
    %v2551 = vpop.f32.mrb[0].mxu0
    %v2552 = vadd.f32 %v2362, %v2551
    %v2553 = vpop.f32.mrb[0].mxu0
    %2554 = vmatprep.mubr.f32.mxu0 0.0
    %2555 = vmatmul.mubr.f32.gmra.mrb[0].mxu0 %v1702
    %v2556 = vpop.f32.mrb[0].mxu0
    %v2557 = vadd.f32 %v2367, %v2556
    %v2558 = vpop.f32.mrb[0].mxu0
    %2559 = vmatprep.mubr.f32.mxu0 0.0
    %2560 = vmatmul.mubr.f32.gmra.mrb[0].mxu0 %v1703
    %v2561 = vpop.f32.mrb[0].mxu0
    %v2562 = vadd.f32 %v2372, %v2561
    %v2563 = vpop.f32.mrb[0].mxu0
    %2564 = vmatprep.mubr.f32.mxu0 0.0
    %2565 = vmatmul.mubr.f32.gmra.mrb[0].mxu0 %v1704
    %v2566 = vpop.f32.mrb[0].mxu0
    %v2567 = vadd.f32 %v2377, %v2566
    %v2568 = vpop.f32.mrb[0].mxu0
    %2569 = vmatprep.mubr.f32.mxu0 0.0
    %2570 = vmatmul.mubr.f32.gmra.mrb[0].mxu0 %v1705
    %v2571 = vpop.f32.mrb[0].mxu0
    %v2572 = vadd.f32 %v2382, %v2571
    %v2573 = vpop.f32.mrb[0].mxu0
    %2574 = vmatprep.mubr.f32.mxu0 0.0
    %2575 = vmatmul.mubr.f32.gmra.mrb[0].mxu0 %v1706
    %v2576 = vpop.f32.mrb[0].mxu0
    %v2577 = vadd.f32 %v2387, %v2576
    %v2578 = vpop.f32.mrb[0].mxu0
    %2579 = vmatprep.mubr.f32.mxu0 0.0
    %2580 = vmatmul.mubr.f32.gmra.mrb[0].mxu0 %v1707
    %v2581 = vpop.f32.mrb[0].mxu0
    %v2582 = vadd.f32 %v2392, %v2581
    %v2583 = vpop.f32.mrb[0].mxu0
    %2584 = vmatprep.mubr.f32.mxu0 0.0
    %2585 = vmatmul.mubr.f32.gmra.mrb[0].mxu0 %v1708
    %v2586 = vpop.f32.mrb[0].mxu0
    %v2587 = vadd.f32 %v2397, %v2586
    %v2588 = vpop.f32.mrb[0].mxu0
    %2589 = vmatprep.mubr.f32.mxu0 0.0
    %2590 = vmatmul.mubr.f32.gmra.mrb[0].mxu0 %v1709
    %v2591 = vpop.f32.mrb[0].mxu0
    %v2592 = vadd.f32 %v2402, %v2591
    %v2593 = vpop.f32.mrb[0].mxu0
    %2594 = vmatprep.mubr.f32.mxu0 0.0
    %2595 = vmatmul.mubr.f32.gmra.mrb[0].mxu0 %v1710
    %v2596 = vpop.f32.mrb[0].mxu0
    %v2597 = vadd.f32 %v2407, %v2596
    %v2598 = vpop.f32.mrb[0].mxu0
    %2599 = vmatprep.mubr.f32.mxu0 0.0
    %2600 = vmatmul.mubr.f32.gmra.mrb[0].mxu0 %v1711
    %v2601 = vpop.f32.mrb[0].mxu0
    %v2602 = vadd.f32 %v2412, %v2601
    %v2603 = vpop.f32.mrb[0].mxu0
    %2604 = vmatprep.mubr.f32.mxu0 0.0
    %2605 = vmatmul.mubr.f32.gmra.mrb[0].mxu0 %v1712
    %v2606 = vpop.f32.mrb[0].mxu0
    %v2607 = vadd.f32 %v2417, %v2606
    %v2608 = vpop.f32.mrb[0].mxu0
    %2609 = vmatprep.mubr.f32.mxu0 0.0
    %2610 = vmatmul.mubr.f32.gmra.mrb[0].mxu0 %v1713
    %v2611 = vpop.f32.mrb[0].mxu0
    %v2612 = vadd.f32 %v2422, %v2611
    %v2613 = vpop.f32.mrb[0].mxu0
    %2614 = vmatprep.mubr.f32.mxu0 0.0
    %2615 = vmatmul.mubr.f32.gmra.mrb[0].mxu0 %v1714
    %v2616 = vpop.f32.mrb[0].mxu0
    %v2617 = vadd.f32 %v2427, %v2616
    %v2618 = vpop.f32.mrb[0].mxu0
    %2619 = vmatprep.mubr.f32.mxu0 0.0
    %2620 = vmatmul.mubr.f32.gmra.mrb[0].mxu0 %v1715
    %v2621 = vpop.f32.mrb[0].mxu0
    %v2622 = vadd.f32 %v2432, %v2621
    %v2623 = vpop.f32.mrb[0].mxu0
    %2624 = vmatprep.mubr.f32.mxu0 0.0
    %2625 = vmatmul.mubr.f32.gmra.mrb[0].mxu0 %v1716
    %v2626 = vpop.f32.mrb[0].mxu0
    %v2627 = vadd.f32 %v2437, %v2626
    %v2628 = vpop.f32.mrb[0].mxu0
    %2629 = vmatprep.mubr.f32.mxu0 0.0
    %2630 = vmatmul.mubr.f32.gmra.mrb[0].mxu0 %v1717
    %v2631 = vpop.f32.mrb[0].mxu0
    %v2632 = vadd.f32 %v2442, %v2631
    %v2633 = vpop.f32.mrb[0].mxu0
    %2634 = vmatprep.mubr.f32.mxu0 0.0
    %2635 = vmatmul.mubr.f32.gmra.mrb[0].mxu0 %v1718
    %v2636 = vpop.f32.mrb[0].mxu0
    %v2637 = vadd.f32 %v2447, %v2636
    %v2638 = vpop.f32.mrb[0].mxu0
    %2639 = vmatprep.mubr.f32.mxu0 0.0
    %2640 = vmatmul.mubr.f32.gmra.mrb[0].mxu0 %v1719
    %v2641 = vpop.f32.mrb[0].mxu0
    %v2642 = vadd.f32 %v2452, %v2641
    %v2643 = vpop.f32.mrb[0].mxu0
    %2644 = vmatprep.mubr.f32.mxu0 0.0
    %2645 = vmatmul.mubr.f32.gmra.mrb[0].mxu0 %v1720
    %v2646 = vpop.f32.mrb[0].mxu0
    %v2647 = vadd.f32 %v2457, %v2646
    %v2648 = vpop.f32.mrb[0].mxu0
    %2649 = vmatprep.mubr.f32.mxu0 0.0
    %2650 = vmatmul.mubr.f32.gmra.mrb[0].mxu0 %v1721
    %v2651 = vpop.f32.mrb[0].mxu0
    %v2652 = vadd.f32 %v2462, %v2651
    %v2653 = vpop.f32.mrb[0].mxu0
    %2654 = vmatprep.mubr.f32.mxu0 0.0
    %2655 = vmatmul.mubr.f32.gmra.mrb[0].mxu0 %v1722
    %v2656 = vpop.f32.mrb[0].mxu0
    %v2657 = vadd.f32 %v2467, %v2656
    %v2658 = vpop.f32.mrb[0].mxu0
    %2659 = vmatprep.mubr.f32.mxu0 0.0
    %2660 = vmatmul.mubr.f32.gmra.mrb[0].mxu0 %v1723
    %v2661 = vpop.f32.mrb[0].mxu0
    %v2662 = vadd.f32 %v2472, %v2661
    %v2663 = vpop.f32.mrb[0].mxu0
    %2664 = vmatprep.mubr.f32.mxu0 0.0
    %2665 = vmatmul.mubr.f32.gmra.mrb[0].mxu0 %v1724
    %v2666 = vpop.f32.mrb[0].mxu0
    %v2667 = vadd.f32 %v2477, %v2666
    %v2668 = vpop.f32.mrb[0].mxu0
    %2669 = vdwg.mxu0
    %v2670 = vld [vmem:[%s5] sm:$0x1]
    %v2672 = vlaneseq
    %v2673 = vshrl.u32 %v2672, 7
    %v2674 = vsub.s32 0, %v2673
    %v2675 = vrot.slane %v2670, %v2674
    %v2677 = vadd.f32 %v2547, %v2675
    %v2678 = vadd.f32 %v2552, %v2675
    %v2679 = vadd.f32 %v2557, %v2675
    %v2680 = vadd.f32 %v2562, %v2675
    %v2681 = vadd.f32 %v2567, %v2675
    %v2682 = vadd.f32 %v2572, %v2675
    %v2683 = vadd.f32 %v2577, %v2675
    %v2684 = vadd.f32 %v2582, %v2675
    %v2685 = vadd.f32 %v2587, %v2675
    %v2686 = vadd.f32 %v2592, %v2675
    %v2687 = vadd.f32 %v2597, %v2675
    %v2688 = vadd.f32 %v2602, %v2675
    %v2689 = vadd.f32 %v2607, %v2675
    %v2690 = vadd.f32 %v2612, %v2675
    %v2691 = vadd.f32 %v2617, %v2675
    %v2692 = vadd.f32 %v2622, %v2675
    %v2693 = vadd.f32 %v2627, %v2675
    %v2694 = vadd.f32 %v2632, %v2675
    %v2695 = vadd.f32 %v2637, %v2675
    %v2696 = vadd.f32 %v2642, %v2675
    %v2697 = vadd.f32 %v2647, %v2675
    %v2698 = vadd.f32 %v2652, %v2675
    %v2699 = vadd.f32 %v2657, %v2675
    %v2700 = vadd.f32 %v2662, %v2675
    %v2701 = vadd.f32 %v2667, %v2675
    %v2702 = vtanh.pop %v2677
    %v2703 = vtanh.pop %v2678
    %v2704 = vtanh.pop %v2679
    %v2705 = vtanh.pop %v2680
    %v2706 = vtanh.pop %v2681
    %v2707 = vtanh.pop %v2682
    %v2708 = vtanh.pop %v2683
    %v2709 = vtanh.pop %v2684
    %v2710 = vtanh.pop %v2685
    %v2711 = vtanh.pop %v2686
    %v2712 = vtanh.pop %v2687
    %v2713 = vtanh.pop %v2688
    %v2714 = vtanh.pop %v2689
    %v2715 = vtanh.pop %v2690
    %v2716 = vtanh.pop %v2691
    %v2717 = vtanh.pop %v2692
    %v2718 = vtanh.pop %v2693
    %v2719 = vtanh.pop %v2694
    %v2720 = vtanh.pop %v2695
    %v2721 = vtanh.pop %v2696
    %v2722 = vtanh.pop %v2697
    %v2723 = vtanh.pop %v2698
    %v2724 = vtanh.pop %v2699
    %v2725 = vtanh.pop %v2700
    %v2726 = vtanh.pop %v2701
    %v2727 = vld [vmem:[#allocation10] sm:$0xff]
    %v2728 = vld [vmem:[#allocation10 + $0x8] sm:$0xff]
    %v2729 = vld [vmem:[#allocation10 + $0x10] sm:$0xff]
    %v2730 = vld [vmem:[#allocation10 + $0x18] sm:$0xff]
    %v2731 = vld [vmem:[#allocation10 + $0x20] sm:$0xff]
    %v2732 = vld [vmem:[#allocation10 + $0x28] sm:$0xff]
    %v2733 = vld [vmem:[#allocation10 + $0x30] sm:$0xff]
    %v2734 = vld [vmem:[#allocation10 + $0x38] sm:$0xff]
    %v2735 = vld [vmem:[#allocation10 + $0x40] sm:$0xff]
    %v2736 = vld [vmem:[#allocation10 + $0x48] sm:$0xff]
    %v2737 = vld [vmem:[#allocation10 + $0x50] sm:$0xff]
    %v2738 = vld [vmem:[#allocation10 + $0x58] sm:$0xff]
    %v2739 = vld [vmem:[#allocation10 + $0x60] sm:$0xff]
    %v2740 = vld [vmem:[#allocation10 + $0x68] sm:$0xff]
    %v2741 = vld [vmem:[#allocation10 + $0x70] sm:$0xff]
    %v2742 = vld [vmem:[#allocation10 + $0x78] sm:$0xff]
    %v2743 = vld [vmem:[#allocation10 + $0x80] sm:$0xff]
    %v2744 = vld [vmem:[#allocation10 + $0x88] sm:$0xff]
    %v2745 = vld [vmem:[#allocation10 + $0x90] sm:$0xff]
    %v2746 = vld [vmem:[#allocation10 + $0x98] sm:$0xff]
    %v2747 = vld [vmem:[#allocation10 + $0xa0] sm:$0xff]
    %v2748 = vld [vmem:[#allocation10 + $0xa8] sm:$0xff]
    %v2749 = vld [vmem:[#allocation10 + $0xb0] sm:$0xff]
    %v2750 = vld [vmem:[#allocation10 + $0xb8] sm:$0xff]
    %v2751 = vld [vmem:[#allocation10 + $0xc0] sm:$0xff]
    %v2752 = vld [vmem:[#allocation10 + $0xc8] sm:$0xff]
    %v2753 = vld [vmem:[#allocation10 + $0xd0] sm:$0xff]
    %v2754 = vld [vmem:[#allocation10 + $0xd8] sm:$0xff]
    %v2755 = vld [vmem:[#allocation10 + $0xe0] sm:$0xff]
    %v2756 = vld [vmem:[#allocation10 + $0xe8] sm:$0xff]
    %v2757 = vld [vmem:[#allocation10 + $0xf0] sm:$0xff]
    %v2758 = vld [vmem:[#allocation10 + $0xf8] sm:$0xff]
    %v2759 = vld [vmem:[%s7] sm:$0x3]
    %v2761 = vlaneseq
    %v2762 = vshrl.u32 %v2761, 7
    %v2763 = vsub.s32 0, %v2762
    %v2764 = vrot.slane %v2759, %v2763
    %v2765 = vlaneseq
    %v2766 = vshrl.u32 %v2765, 7
    %v2767 = vsub.s32 1, %v2766
    %v2768 = vrot.slane %v2759, %v2767
    %2771 = vmatprep.subr.mxu0 %v2728
    %2772 = vmatpush1.msra.mxu0 %v2727
    %2773 = vmatprep.subr.mxu0 %v2730
    %2774 = vmatpush1.msra.mxu0 %v2729
    %2775 = vmatprep.subr.mxu0 %v2732
    %2776 = vmatpush1.msra.mxu0 %v2731
    %2777 = vmatprep.subr.mxu0 %v2734
    %2778 = vmatpush1.msra.mxu0 %v2733
    %2779 = vmatprep.subr.mxu0 %v2736
    %2780 = vmatpush1.msra.mxu0 %v2735
    %2781 = vmatprep.subr.mxu0 %v2738
    %2782 = vmatpush1.msra.mxu0 %v2737
    %2783 = vmatprep.subr.mxu0 %v2740
    %2784 = vmatpush1.msra.mxu0 %v2739
    %2785 = vmatprep.subr.mxu0 %v2742
    %2786 = vmatpush1.msra.mxu0 %v2741
    %2787 = vmatprep.subr.mxu0 %v2744
    %2788 = vmatpush1.msra.mxu0 %v2743
    %2789 = vmatprep.subr.mxu0 %v2746
    %2790 = vmatpush1.msra.mxu0 %v2745
    %2791 = vmatprep.subr.mxu0 %v2748
    %2792 = vmatpush1.msra.mxu0 %v2747
    %2793 = vmatprep.subr.mxu0 %v2750
    %2794 = vmatpush1.msra.mxu0 %v2749
    %2795 = vmatprep.subr.mxu0 %v2752
    %2796 = vmatpush1.msra.mxu0 %v2751
    %2797 = vmatprep.subr.mxu0 %v2754
    %2798 = vmatpush1.msra.mxu0 %v2753
    %2799 = vmatprep.subr.mxu0 %v2756
    %2800 = vmatpush1.msra.mxu0 %v2755
    %2801 = vmatprep.subr.mxu0 %v2758
    %2802 = vmatpush1.msra.mxu0 %v2757
    %2803 = vmatprep.subr.mxu0 0.0
    %2804 = vmatpush1.msra.mxu0 0.0
    %2805 = vmatprep.subr.mxu0 0.0
    %2806 = vmatpush1.msra.mxu0 0.0
    %2807 = vmatprep.subr.mxu0 0.0
    %2808 = vmatpush1.msra.mxu0 0.0
    %2809 = vmatprep.subr.mxu0 0.0
    %2810 = vmatpush1.msra.mxu0 0.0
    %2811 = vmatprep.subr.mxu0 0.0
    %2812 = vmatpush1.msra.mxu0 0.0
    %2813 = vmatprep.subr.mxu0 0.0
    %2814 = vmatpush1.msra.mxu0 0.0
    %2815 = vmatprep.subr.mxu0 0.0
    %2816 = vmatpush1.msra.mxu0 0.0
    %2817 = vmatprep.subr.mxu0 0.0
    %2818 = vmatpush1.msra.mxu0 0.0
    %2819 = vmatprep.subr.mxu0 0.0
    %2820 = vmatpush1.msra.mxu0 0.0
    %2821 = vmatprep.subr.mxu0 0.0
    %2822 = vmatpush1.msra.mxu0 0.0
    %2823 = vmatprep.subr.mxu0 0.0
    %2824 = vmatpush1.msra.mxu0 0.0
    %2825 = vmatprep.subr.mxu0 0.0
    %2826 = vmatpush1.msra.mxu0 0.0
    %2827 = vmatprep.subr.mxu0 0.0
    %2828 = vmatpush1.msra.mxu0 0.0
    %2829 = vmatprep.subr.mxu0 0.0
    %2830 = vmatpush1.msra.mxu0 0.0
    %2831 = vmatprep.subr.mxu0 0.0
    %2832 = vmatpush1.msra.mxu0 0.0
    %2833 = vmatprep.subr.mxu0 0.0
    %2834 = vmatpush1.msra.mxu0 0.0
    %2835 = vmatprep.mubr.f32.mxu0 0.0
    %2836 = vmatmul.mubr.f32.gmra.mrb[0].mxu0 %v2702
    %v2837 = vpop.f32.mrb[0].mxu0
    %v2838 = vadd.f32 %v2764, %v2837
    %v2839 = vpop.f32.mrb[0].mxu0
    %v2840 = vadd.f32 %v2768, %v2839
    %2841 = vmatprep.mubr.f32.mxu0 0.0
    %2842 = vmatmul.mubr.f32.gmra.mrb[0].mxu0 %v2703
    %v2843 = vpop.f32.mrb[0].mxu0
    %v2844 = vadd.f32 %v2764, %v2843
    %v2845 = vpop.f32.mrb[0].mxu0
    %v2846 = vadd.f32 %v2768, %v2845
    %2847 = vmatprep.mubr.f32.mxu0 0.0
    %2848 = vmatmul.mubr.f32.gmra.mrb[0].mxu0 %v2704
    %v2849 = vpop.f32.mrb[0].mxu0
    %v2850 = vadd.f32 %v2764, %v2849
    %v2851 = vpop.f32.mrb[0].mxu0
    %v2852 = vadd.f32 %v2768, %v2851
    %2853 = vmatprep.mubr.f32.mxu0 0.0
    %2854 = vmatmul.mubr.f32.gmra.mrb[0].mxu0 %v2705
    %v2855 = vpop.f32.mrb[0].mxu0
    %v2856 = vadd.f32 %v2764, %v2855
    %v2857 = vpop.f32.mrb[0].mxu0
    %v2858 = vadd.f32 %v2768, %v2857
    %2859 = vmatprep.mubr.f32.mxu0 0.0
    %2860 = vmatmul.mubr.f32.gmra.mrb[0].mxu0 %v2706
    %v2861 = vpop.f32.mrb[0].mxu0
    %v2862 = vadd.f32 %v2764, %v2861
    %v2863 = vpop.f32.mrb[0].mxu0
    %v2864 = vadd.f32 %v2768, %v2863
    %2865 = vmatprep.mubr.f32.mxu0 0.0
    %2866 = vmatmul.mubr.f32.gmra.mrb[0].mxu0 %v2707
    %v2867 = vpop.f32.mrb[0].mxu0
    %v2868 = vadd.f32 %v2764, %v2867
    %v2869 = vpop.f32.mrb[0].mxu0
    %v2870 = vadd.f32 %v2768, %v2869
    %2871 = vmatprep.mubr.f32.mxu0 0.0
    %2872 = vmatmul.mubr.f32.gmra.mrb[0].mxu0 %v2708
    %v2873 = vpop.f32.mrb[0].mxu0
    %v2874 = vadd.f32 %v2764, %v2873
    %v2875 = vpop.f32.mrb[0].mxu0
    %v2876 = vadd.f32 %v2768, %v2875
    %2877 = vmatprep.mubr.f32.mxu0 0.0
    %2878 = vmatmul.mubr.f32.gmra.mrb[0].mxu0 %v2709
    %v2879 = vpop.f32.mrb[0].mxu0
    %v2880 = vadd.f32 %v2764, %v2879
    %v2881 = vpop.f32.mrb[0].mxu0
    %v2882 = vadd.f32 %v2768, %v2881
    %2883 = vmatprep.mubr.f32.mxu0 0.0
    %2884 = vmatmul.mubr.f32.gmra.mrb[0].mxu0 %v2710
    %v2885 = vpop.f32.mrb[0].mxu0
    %v2886 = vadd.f32 %v2764, %v2885
    %v2887 = vpop.f32.mrb[0].mxu0
    %v2888 = vadd.f32 %v2768, %v2887
    %2889 = vmatprep.mubr.f32.mxu0 0.0
    %2890 = vmatmul.mubr.f32.gmra.mrb[0].mxu0 %v2711
    %v2891 = vpop.f32.mrb[0].mxu0
    %v2892 = vadd.f32 %v2764, %v2891
    %v2893 = vpop.f32.mrb[0].mxu0
    %v2894 = vadd.f32 %v2768, %v2893
    %2895 = vmatprep.mubr.f32.mxu0 0.0
    %2896 = vmatmul.mubr.f32.gmra.mrb[0].mxu0 %v2712
    %v2897 = vpop.f32.mrb[0].mxu0
    %v2898 = vadd.f32 %v2764, %v2897
    %v2899 = vpop.f32.mrb[0].mxu0
    %v2900 = vadd.f32 %v2768, %v2899
    %2901 = vmatprep.mubr.f32.mxu0 0.0
    %2902 = vmatmul.mubr.f32.gmra.mrb[0].mxu0 %v2713
    %v2903 = vpop.f32.mrb[0].mxu0
    %v2904 = vadd.f32 %v2764, %v2903
    %v2905 = vpop.f32.mrb[0].mxu0
    %v2906 = vadd.f32 %v2768, %v2905
    %2907 = vmatprep.mubr.f32.mxu0 0.0
    %2908 = vmatmul.mubr.f32.gmra.mrb[0].mxu0 %v2714
    %v2909 = vpop.f32.mrb[0].mxu0
    %v2910 = vadd.f32 %v2764, %v2909
    %v2911 = vpop.f32.mrb[0].mxu0
    %v2912 = vadd.f32 %v2768, %v2911
    %2913 = vmatprep.mubr.f32.mxu0 0.0
    %2914 = vmatmul.mubr.f32.gmra.mrb[0].mxu0 %v2715
    %v2915 = vpop.f32.mrb[0].mxu0
    %v2916 = vadd.f32 %v2764, %v2915
    %v2917 = vpop.f32.mrb[0].mxu0
    %v2918 = vadd.f32 %v2768, %v2917
    %2919 = vmatprep.mubr.f32.mxu0 0.0
    %2920 = vmatmul.mubr.f32.gmra.mrb[0].mxu0 %v2716
    %v2921 = vpop.f32.mrb[0].mxu0
    %v2922 = vadd.f32 %v2764, %v2921
    %v2923 = vpop.f32.mrb[0].mxu0
    %v2924 = vadd.f32 %v2768, %v2923
    %2925 = vmatprep.mubr.f32.mxu0 0.0
    %2926 = vmatmul.mubr.f32.gmra.mrb[0].mxu0 %v2717
    %v2927 = vpop.f32.mrb[0].mxu0
    %v2928 = vadd.f32 %v2764, %v2927
    %v2929 = vpop.f32.mrb[0].mxu0
    %v2930 = vadd.f32 %v2768, %v2929
    %2931 = vmatprep.mubr.f32.mxu0 0.0
    %2932 = vmatmul.mubr.f32.gmra.mrb[0].mxu0 %v2718
    %v2933 = vpop.f32.mrb[0].mxu0
    %v2934 = vadd.f32 %v2764, %v2933
    %v2935 = vpop.f32.mrb[0].mxu0
    %v2936 = vadd.f32 %v2768, %v2935
    %2937 = vmatprep.mubr.f32.mxu0 0.0
    %2938 = vmatmul.mubr.f32.gmra.mrb[0].mxu0 %v2719
    %v2939 = vpop.f32.mrb[0].mxu0
    %v2940 = vadd.f32 %v2764, %v2939
    %v2941 = vpop.f32.mrb[0].mxu0
    %v2942 = vadd.f32 %v2768, %v2941
    %2943 = vmatprep.mubr.f32.mxu0 0.0
    %2944 = vmatmul.mubr.f32.gmra.mrb[0].mxu0 %v2720
    %v2945 = vpop.f32.mrb[0].mxu0
    %v2946 = vadd.f32 %v2764, %v2945
    %v2947 = vpop.f32.mrb[0].mxu0
    %v2948 = vadd.f32 %v2768, %v2947
    %2949 = vmatprep.mubr.f32.mxu0 0.0
    %2950 = vmatmul.mubr.f32.gmra.mrb[0].mxu0 %v2721
    %v2951 = vpop.f32.mrb[0].mxu0
    %v2952 = vadd.f32 %v2764, %v2951
    %v2953 = vpop.f32.mrb[0].mxu0
    %v2954 = vadd.f32 %v2768, %v2953
    %2955 = vmatprep.mubr.f32.mxu0 0.0
    %2956 = vmatmul.mubr.f32.gmra.mrb[0].mxu0 %v2722
    %v2957 = vpop.f32.mrb[0].mxu0
    %v2958 = vadd.f32 %v2764, %v2957
    %v2959 = vpop.f32.mrb[0].mxu0
    %v2960 = vadd.f32 %v2768, %v2959
    %2961 = vmatprep.mubr.f32.mxu0 0.0
    %2962 = vmatmul.mubr.f32.gmra.mrb[0].mxu0 %v2723
    %v2963 = vpop.f32.mrb[0].mxu0
    %v2964 = vadd.f32 %v2764, %v2963
    %v2965 = vpop.f32.mrb[0].mxu0
    %v2966 = vadd.f32 %v2768, %v2965
    %2967 = vmatprep.mubr.f32.mxu0 0.0
    %2968 = vmatmul.mubr.f32.gmra.mrb[0].mxu0 %v2724
    %v2969 = vpop.f32.mrb[0].mxu0
    %v2970 = vadd.f32 %v2764, %v2969
    %v2971 = vpop.f32.mrb[0].mxu0
    %v2972 = vadd.f32 %v2768, %v2971
    %2973 = vmatprep.mubr.f32.mxu0 0.0
    %2974 = vmatmul.mubr.f32.gmra.mrb[0].mxu0 %v2725
    %v2975 = vpop.f32.mrb[0].mxu0
    %v2976 = vadd.f32 %v2764, %v2975
    %v2977 = vpop.f32.mrb[0].mxu0
    %v2978 = vadd.f32 %v2768, %v2977
    %2979 = vmatprep.mubr.f32.mxu0 0.0
    %2980 = vmatmul.mubr.f32.gmra.mrb[0].mxu0 %v2726
    %v2981 = vpop.f32.mrb[0].mxu0
    %v2982 = vadd.f32 %v2764, %v2981
    %v2983 = vpop.f32.mrb[0].mxu0
    %v2984 = vadd.f32 %v2768, %v2983
    %2985 = vdwg.mxu0
    %v2986 = vmul.f32 %v2838, %v2838
    %v2987 = vmul.f32 %v2844, %v2844
    %v2988 = vmul.f32 %v2850, %v2850
    %v2989 = vmul.f32 %v2856, %v2856
    %v2990 = vmul.f32 %v2862, %v2862
    %v2991 = vmul.f32 %v2868, %v2868
    %v2992 = vmul.f32 %v2874, %v2874
    %v2993 = vmul.f32 %v2880, %v2880
    %v2994 = vmul.f32 %v2886, %v2886
    %v2995 = vmul.f32 %v2892, %v2892
    %v2996 = vmul.f32 %v2898, %v2898
    %v2997 = vmul.f32 %v2904, %v2904
    %v2998 = vmul.f32 %v2910, %v2910
    %v2999 = vmul.f32 %v2916, %v2916
    %v3000 = vmul.f32 %v2922, %v2922
    %v3001 = vmul.f32 %v2928, %v2928
    %v3002 = vmul.f32 %v2934, %v2934
    %v3003 = vmul.f32 %v2940, %v2940
    %v3004 = vmul.f32 %v2946, %v2946
    %v3005 = vmul.f32 %v2952, %v2952
    %v3006 = vmul.f32 %v2958, %v2958
    %v3007 = vmul.f32 %v2964, %v2964
    %v3008 = vmul.f32 %v2970, %v2970
    %v3009 = vmul.f32 %v2976, %v2976
    %v3010 = vmul.f32 %v2982, %v2982
    %3011 = vadd.xlane.f32.xlu0 %v2986
    %v3012 = vpop.xlane.xlu0 %3011
    %3013 = vadd.xlane.f32.xlu0 %v2987
    %v3014 = vpop.xlane.xlu0 %3013
    %3015 = vadd.xlane.f32.xlu0 %v2988
    %v3016 = vpop.xlane.xlu0 %3015
    %3017 = vadd.xlane.f32.xlu0 %v2989
    %v3018 = vpop.xlane.xlu0 %3017
    %3019 = vadd.xlane.f32.xlu0 %v2990
    %v3020 = vpop.xlane.xlu0 %3019
    %3021 = vadd.xlane.f32.xlu0 %v2991
    %v3022 = vpop.xlane.xlu0 %3021
    %3023 = vadd.xlane.f32.xlu0 %v2992
    %v3024 = vpop.xlane.xlu0 %3023
    %3025 = vadd.xlane.f32.xlu0 %v2993
    %v3026 = vpop.xlane.xlu0 %3025
    %3027 = vadd.xlane.f32.xlu0 %v2994
    %v3028 = vpop.xlane.xlu0 %3027
    %3029 = vadd.xlane.f32.xlu0 %v2995
    %v3030 = vpop.xlane.xlu0 %3029
    %3031 = vadd.xlane.f32.xlu0 %v2996
    %v3032 = vpop.xlane.xlu0 %3031
    %3033 = vadd.xlane.f32.xlu0 %v2997
    %v3034 = vpop.xlane.xlu0 %3033
    %3035 = vadd.xlane.f32.xlu0 %v2998
    %v3036 = vpop.xlane.xlu0 %3035
    %3037 = vadd.xlane.f32.xlu0 %v2999
    %v3038 = vpop.xlane.xlu0 %3037
    %3039 = vadd.xlane.f32.xlu0 %v3000
    %v3040 = vpop.xlane.xlu0 %3039
    %3041 = vadd.xlane.f32.xlu0 %v3001
    %v3042 = vpop.xlane.xlu0 %3041
    %3043 = vadd.xlane.f32.xlu0 %v3002
    %v3044 = vpop.xlane.xlu0 %3043
    %3045 = vadd.xlane.f32.xlu0 %v3003
    %v3046 = vpop.xlane.xlu0 %3045
    %3047 = vadd.xlane.f32.xlu0 %v3004
    %v3048 = vpop.xlane.xlu0 %3047
    %3049 = vadd.xlane.f32.xlu0 %v3005
    %v3050 = vpop.xlane.xlu0 %3049
    %3051 = vadd.xlane.f32.xlu0 %v3006
    %v3052 = vpop.xlane.xlu0 %3051
    %3053 = vadd.xlane.f32.xlu0 %v3007
    %v3054 = vpop.xlane.xlu0 %3053
    %3055 = vadd.xlane.f32.xlu0 %v3008
    %v3056 = vpop.xlane.xlu0 %3055
    %3057 = vadd.xlane.f32.xlu0 %v3009
    %v3058 = vpop.xlane.xlu0 %3057
    %3059 = vadd.xlane.f32.xlu0 %v3010
    %v3060 = vpop.xlane.xlu0 %3059
    %v3061 = vmax.f32 %v3012, 1e-24
    %v3062 = vmax.f32 %v3014, 1e-24
    %v3063 = vmax.f32 %v3016, 1e-24
    %v3064 = vmax.f32 %v3018, 1e-24
    %v3065 = vmax.f32 %v3020, 1e-24
    %v3066 = vmax.f32 %v3022, 1e-24
    %v3067 = vmax.f32 %v3024, 1e-24
    %v3068 = vmax.f32 %v3026, 1e-24
    %v3069 = vmax.f32 %v3028, 1e-24
    %v3070 = vmax.f32 %v3030, 1e-24
    %v3071 = vmax.f32 %v3032, 1e-24
    %v3072 = vmax.f32 %v3034, 1e-24
    %v3073 = vmax.f32 %v3036, 1e-24
    %v3074 = vmax.f32 %v3038, 1e-24
    %v3075 = vmax.f32 %v3040, 1e-24
    %v3076 = vmax.f32 %v3042, 1e-24
    %v3077 = vmax.f32 %v3044, 1e-24
    %v3078 = vmax.f32 %v3046, 1e-24
    %v3079 = vmax.f32 %v3048, 1e-24
    %v3080 = vmax.f32 %v3050, 1e-24
    %v3081 = vmax.f32 %v3052, 1e-24
    %v3082 = vmax.f32 %v3054, 1e-24
    %v3083 = vmax.f32 %v3056, 1e-24
    %v3084 = vmax.f32 %v3058, 1e-24
    %v3085 = vmax.f32 %v3060, 1e-24
    %v3086 = vrsqrt.pop %v3061
    %v3087 = vrsqrt.pop %v3062
    %v3088 = vrsqrt.pop %v3063
    %v3089 = vrsqrt.pop %v3064
    %v3090 = vrsqrt.pop %v3065
    %v3091 = vrsqrt.pop %v3066
    %v3092 = vrsqrt.pop %v3067
    %v3093 = vrsqrt.pop %v3068
    %v3094 = vrsqrt.pop %v3069
    %v3095 = vrsqrt.pop %v3070
    %v3096 = vrsqrt.pop %v3071
    %v3097 = vrsqrt.pop %v3072
    %v3098 = vrsqrt.pop %v3073
    %v3099 = vrsqrt.pop %v3074
    %v3100 = vrsqrt.pop %v3075
    %v3101 = vrsqrt.pop %v3076
    %v3102 = vrsqrt.pop %v3077
    %v3103 = vrsqrt.pop %v3078
    %v3104 = vrsqrt.pop %v3079
    %v3105 = vrsqrt.pop %v3080
    %v3106 = vrsqrt.pop %v3081
    %v3107 = vrsqrt.pop %v3082
    %v3108 = vrsqrt.pop %v3083
    %v3109 = vrsqrt.pop %v3084
    %v3110 = vrsqrt.pop %v3085
    %v3111 = vmul.f32 %v2838, %v3086
    %v3112 = vmul.f32 %v2844, %v3087
    %v3113 = vmul.f32 %v2850, %v3088
    %v3114 = vmul.f32 %v2856, %v3089
    %v3115 = vmul.f32 %v2862, %v3090
    %v3116 = vmul.f32 %v2868, %v3091
    %v3117 = vmul.f32 %v2874, %v3092
    %v3118 = vmul.f32 %v2880, %v3093
    %v3119 = vmul.f32 %v2886, %v3094
    %v3120 = vmul.f32 %v2892, %v3095
    %v3121 = vmul.f32 %v2898, %v3096
    %v3122 = vmul.f32 %v2904, %v3097
    %v3123 = vmul.f32 %v2910, %v3098
    %v3124 = vmul.f32 %v2916, %v3099
    %v3125 = vmul.f32 %v2922, %v3100
    %v3126 = vmul.f32 %v2928, %v3101
    %v3127 = vmul.f32 %v2934, %v3102
    %v3128 = vmul.f32 %v2940, %v3103
    %v3129 = vmul.f32 %v2946, %v3104
    %v3130 = vmul.f32 %v2952, %v3105
    %v3131 = vmul.f32 %v2958, %v3106
    %v3132 = vmul.f32 %v2964, %v3107
    %v3133 = vmul.f32 %v2970, %v3108
    %v3134 = vmul.f32 %v2976, %v3109
    %v3135 = vmul.f32 %v2982, %v3110
    %v3136 = vtanh.pop %v2840
    %v3137 = vtanh.pop %v2846
    %v3138 = vtanh.pop %v2852
    %v3139 = vtanh.pop %v2858
    %v3140 = vtanh.pop %v2864
    %v3141 = vtanh.pop %v2870
    %v3142 = vtanh.pop %v2876
    %v3143 = vtanh.pop %v2882
    %v3144 = vtanh.pop %v2888
    %v3145 = vtanh.pop %v2894
    %v3146 = vtanh.pop %v2900
    %v3147 = vtanh.pop %v2906
    %v3148 = vtanh.pop %v2912
    %v3149 = vtanh.pop %v2918
    %v3150 = vtanh.pop %v2924
    %v3151 = vtanh.pop %v2930
    %v3152 = vtanh.pop %v2936
    %v3153 = vtanh.pop %v2942
    %v3154 = vtanh.pop %v2948
    %v3155 = vtanh.pop %v2954
    %v3156 = vtanh.pop %v2960
    %v3157 = vtanh.pop %v2966
    %v3158 = vtanh.pop %v2972
    %v3159 = vtanh.pop %v2978
    %v3160 = vtanh.pop %v2984
    %3161 = vst [vmem:[#allocation11] sm:$0xff] %v3111
    %3162 = vst [vmem:[#allocation11 + $0x8] sm:$0xff] %v3136
    %3163 = vst [vmem:[#allocation11 + $0x10] sm:$0xff] %v3112
    %3164 = vst [vmem:[#allocation11 + $0x18] sm:$0xff] %v3137
    %3165 = vst [vmem:[#allocation11 + $0x20] sm:$0xff] %v3113
    %3166 = vst [vmem:[#allocation11 + $0x28] sm:$0xff] %v3138
    %3167 = vst [vmem:[#allocation11 + $0x30] sm:$0xff] %v3114
    %3168 = vst [vmem:[#allocation11 + $0x38] sm:$0xff] %v3139
    %3169 = vst [vmem:[#allocation11 + $0x40] sm:$0xff] %v3115
    %3170 = vst [vmem:[#allocation11 + $0x48] sm:$0xff] %v3140
    %3171 = vst [vmem:[#allocation11 + $0x50] sm:$0xff] %v3116
    %3172 = vst [vmem:[#allocation11 + $0x58] sm:$0xff] %v3141
    %3173 = vst [vmem:[#allocation11 + $0x60] sm:$0xff] %v3117
    %3174 = vst [vmem:[#allocation11 + $0x68] sm:$0xff] %v3142
    %3175 = vst [vmem:[#allocation11 + $0x70] sm:$0xff] %v3118
    %3176 = vst [vmem:[#allocation11 + $0x78] sm:$0xff] %v3143
    %3177 = vst [vmem:[#allocation11 + $0x80] sm:$0xff] %v3119
    %3178 = vst [vmem:[#allocation11 + $0x88] sm:$0xff] %v3144
    %3179 = vst [vmem:[#allocation11 + $0x90] sm:$0xff] %v3120
    %3180 = vst [vmem:[#allocation11 + $0x98] sm:$0xff] %v3145
    %3181 = vst [vmem:[#allocation11 + $0xa0] sm:$0xff] %v3121
    %3182 = vst [vmem:[#allocation11 + $0xa8] sm:$0xff] %v3146
    %3183 = vst [vmem:[#allocation11 + $0xb0] sm:$0xff] %v3122
    %3184 = vst [vmem:[#allocation11 + $0xb8] sm:$0xff] %v3147
    %3185 = vst [vmem:[#allocation11 + $0xc0] sm:$0xff] %v3123
    %3186 = vst [vmem:[#allocation11 + $0xc8] sm:$0xff] %v3148
    %3187 = vst [vmem:[#allocation11 + $0xd0] sm:$0xff] %v3124
    %3188 = vst [vmem:[#allocation11 + $0xd8] sm:$0xff] %v3149
    %3189 = vst [vmem:[#allocation11 + $0xe0] sm:$0xff] %v3125
    %3190 = vst [vmem:[#allocation11 + $0xe8] sm:$0xff] %v3150
    %3191 = vst [vmem:[#allocation11 + $0xf0] sm:$0xff] %v3126
    %3192 = vst [vmem:[#allocation11 + $0xf8] sm:$0xff] %v3151
    %3193 = vst [vmem:[#allocation11 + $0x100] sm:$0xff] %v3127
    %3194 = vst [vmem:[#allocation11 + $0x108] sm:$0xff] %v3152
    %3195 = vst [vmem:[#allocation11 + $0x110] sm:$0xff] %v3128
    %3196 = vst [vmem:[#allocation11 + $0x118] sm:$0xff] %v3153
    %3197 = vst [vmem:[#allocation11 + $0x120] sm:$0xff] %v3129
    %3198 = vst [vmem:[#allocation11 + $0x128] sm:$0xff] %v3154
    %3199 = vst [vmem:[#allocation11 + $0x130] sm:$0xff] %v3130
    %3200 = vst [vmem:[#allocation11 + $0x138] sm:$0xff] %v3155
    %3201 = vst [vmem:[#allocation11 + $0x140] sm:$0xff] %v3131
    %3202 = vst [vmem:[#allocation11 + $0x148] sm:$0xff] %v3156
    %3203 = vst [vmem:[#allocation11 + $0x150] sm:$0xff] %v3132
    %3204 = vst [vmem:[#allocation11 + $0x158] sm:$0xff] %v3157
    %3205 = vst [vmem:[#allocation11 + $0x160] sm:$0xff] %v3133
    %3206 = vst [vmem:[#allocation11 + $0x168] sm:$0xff] %v3158
    %3207 = vst [vmem:[#allocation11 + $0x170] sm:$0xff] %v3134
    %3208 = vst [vmem:[#allocation11 + $0x178] sm:$0xff] %v3159
    %3209 = vst [vmem:[#allocation11 + $0x180] sm:$0xff] %v3135
    %3210 = vst [vmem:[#allocation11 + $0x188] sm:$0xff] %v3160
    // Predicated region
    $region54: #{tpu_custom_call.1} parent=1 // pred_check
      _
    $region55: #{tpu_custom_call.1} parent=1 // pred_check_branch
      %3212 = sbr.rel (0) target = $region57
    $region56: #{tpu_custom_call.1} parent=1 // pred_region
      %s3214 = ssub.s32 6400, 6400
      %3215 = vsyncadd [#allocation4], %s3214
      %s3216 = sshll.u32 [#allocation11], 4
      %s3217 = int_to_ptr.vmem [resolvable:$true] %s3216
      %3222 = dma.vmem_to_hbm [thread:$0]  %s3217, 6400, %s8, [#allocation4], 256, 256, 16
    $region57: #{tpu_custom_call.1} parent=1 // pred_fallthru
      _
    // Predicated region
    $region58: #{tpu_custom_call.1} parent=1 // pred_check
      _
    $region59: #{tpu_custom_call.1} parent=1 // pred_check_branch
      %3224 = sbr.rel (0) target = $region61
    $region60: #{tpu_custom_call.1} parent=1 // pred_region
      %3225 = dma.done [#allocation4], 6400
    $region61: #{tpu_custom_call.1} parent=1 // pred_fallthru
      _
    %3226 = vsyncpa [#allocation3], 1
    %3227 = vsyncpa [#allocation6], 1
    %3228 = vsyncpa [#allocation9], 1
    %3229 = vsyncpa [#allocation4], 1

</llo_original>
